<compile_context>
chip_gen: v7x
topology: tpu7x:2x2x1
jax: 0.10.0
libtpu: 0.0.40
codegen_flags: <defaults>
</compile_context>

<pallas_src>
import jax
import jax.numpy as jnp
from jax.experimental import pallas as pl
from jax.experimental.pallas import tpu as pltpu

D = 768        # embedding dim (from nn.Linear(768 * ..., ...))
H = 768 // 2   # hidden dim = 384


def entity_classifier_kernel(base_ref, mean_ref, desc_ref, w1_ref, w2_ref, out_ref):
    mean = mean_ref[0]                           # (1, D) f32
    desc_bf = desc_ref[0]                        # (TILE_C, D) bf16 (streamed)
    desc = desc_bf.astype(jnp.float32)

    # Elementwise feature prep in f32 (no bf16 VPU on v5e); broadcasts stay in-register.
    diff = jnp.abs(mean - desc)                  # |mean - desc|
    mult = mean * desc                           # mean * desc

    # Candidate-dependent chunks of the first Linear: bf16 MXU inputs, f32 accumulation.
    h = jnp.dot(desc_bf, w1_ref[0], preferred_element_type=jnp.float32)
    h = h + jnp.dot(diff.astype(jnp.bfloat16), w1_ref[1],
                    preferred_element_type=jnp.float32)
    h = h + jnp.dot(mult.astype(jnp.bfloat16), w1_ref[2],
                    preferred_element_type=jnp.float32)

    # Add the hoisted candidate-independent base (ctx/ent chunks + b1), then ReLU.
    h = jnp.maximum(h + base_ref[0], 0.0)        # (TILE_C, H)
    # TODO(synk): Dropout(0.5) is identity here (inference / eval-mode semantics).

    # Second Linear (H -> 1): N=1, so VPU multiply + lane reduction, not the MXU.
    row = jnp.sum(h * w2_ref[...], axis=-1)      # (TILE_C,)
    out_ref[...] = row.reshape(1, 1, -1)


def entity_classifier_forward(batch_context_embeddings, batch_entity_embeddings,
                              candidate_ids_batch, candidate_description_embeddings_batch,
                              params, *, tile_c=256):
    """Returns candidate_preds of shape (B, C), matching the PyTorch module output."""
    B, C = candidate_ids_batch.shape  # candidate_ids only contribute their shape
    w1, b1, w2, b2 = params           # w1: (5, D, H) -> [ctx, ent, desc, |diff|, mult]

    ctx = batch_context_embeddings.astype(jnp.float32)
    ent = batch_entity_embeddings.astype(jnp.float32)

    # Hoisted candidate-independent part: one tiny f32 XLA matmul per batch, amortized
    # over all candidate tiles.
    base = ctx @ w1[0] + ent @ w1[1] + b1.reshape(1, H)      # (B, H) f32
    mean = (ctx + ent) * 0.5                                  # (B, D) f32

    # Candidate-axis padding / tile selection.
    if C <= tile_c:
        c_pad = max(8, pl.cdiv(C, 8) * 8)       # tiny C: pad to 8, tile = full dim
        tile = c_pad
    else:
        c_pad = pl.cdiv(C, tile_c) * tile_c     # large C: lane-dense 256-wide tiles
        tile = tile_c

    desc = candidate_description_embeddings_batch.astype(jnp.bfloat16)
    if c_pad != C:
        desc = jnp.pad(desc, ((0, 0), (0, c_pad - C), (0, 0)))

    w1_cand = w1[2:5].astype(jnp.bfloat16)                    # (3, D, H) resident
    w2_row = w2.reshape(1, H).astype(jnp.float32)

    grid = (B, c_pad // tile)
    out = pl.pallas_call(
        entity_classifier_kernel,
        out_shape=jax.ShapeDtypeStruct((B, 1, c_pad), jnp.float32),
        grid_spec=pltpu.PrefetchScalarGridSpec(
            num_scalar_prefetch=0,
            grid=grid,
            in_specs=[
                pl.BlockSpec((1, 1, H), lambda b, c: (b, 0, 0)),       # base (per row)
                pl.BlockSpec((1, 1, D), lambda b, c: (b, 0, 0)),       # mean (per row)
                pl.BlockSpec((1, tile, D), lambda b, c: (b, c, 0)),    # desc (streamed)
                pl.BlockSpec((3, D, H), lambda b, c: (0, 0, 0)),       # w1 cand chunks
                pl.BlockSpec((1, H), lambda b, c: (0, 0)),             # w2 row
            ],
            out_specs=pl.BlockSpec((1, 1, tile), lambda b, c: (b, 0, c)),
        ),
        compiler_params=pltpu.CompilerParams(
            dimension_semantics=("parallel", "parallel"),
            vmem_limit_bytes=32 * 1024 * 1024,
        ),
    )(base.reshape(B, 1, H), mean.reshape(B, 1, D), desc, w1_cand, w2_row)

    # b2 is a scalar: fold it in the wrapper instead of a padded (1,1) VMEM block.
    return out.reshape(B, c_pad)[:, :C] + b2.reshape(1, 1)


def init_params(key):
    # TODO(synk): the PyTorch __init__ declares nn.Linear(768*4, 384) but the forward
    # concatenates 5 chunks of 768 (context, entity, desc, |mean-desc|, mean*desc) = 3840
    # features; we size W1 to match the forward: (5, 768, 384).
    k1, k2, k3, k4 = jax.random.split(key, 4)
    w1 = jax.random.normal(k1, (5, D, H), jnp.float32) * 0.02
    b1 = jax.random.normal(k2, (1, H), jnp.float32) * 0.02
    w2 = jax.random.normal(k3, (H, 1), jnp.float32) * 0.02
    b2 = jax.random.normal(k4, (1, 1), jnp.float32) * 0.02
    return w1, b1, w2, b2


def reference_forward(ctx, ent, cand_ids, desc, params):
    """Pure-JAX port of the PyTorch forward (eval mode), used as a correctness check."""
    w1, b1, w2, b2 = params
    w1_flat = w1.reshape(5 * D, H)
    B, C = cand_ids.shape
    mean = (ctx + ent) / 2.0
    ce = jnp.concatenate([ctx, ent], axis=1)                         # (B, 2D)
    ce_b = jnp.broadcast_to(ce[:, None, :], (B, C, 2 * D))
    mean_b = mean[:, None, :]
    feat = jnp.concatenate([ce_b, desc, jnp.abs(mean_b - desc), mean_b * desc], axis=-1)
    h = jnp.maximum(feat @ w1_flat + b1, 0.0)
    return (h @ w2 + b2)[..., 0]


if __name__ == "__main__":
    key = jax.random.PRNGKey(0)
    kc, ke, kd, kp = jax.random.split(key, 4)
    params = init_params(kp)

    # Small-C path (pad-to-8, tile = full candidate dim).
    B, C = 2, 4
    batch_context_embeddings = jax.random.normal(kc, (B, D), jnp.float32)
    batch_entity_embeddings = jax.random.normal(ke, (B, D), jnp.float32)
    candidate_ids_batch = jnp.arange(B * C, dtype=jnp.int32).reshape(B, C)
    candidate_description_embeddings_batch = jax.random.normal(kd, (B, C, D), jnp.float32)

    out = entity_classifier_forward(batch_context_embeddings, batch_entity_embeddings,
                                    candidate_ids_batch,
                                    candidate_description_embeddings_batch, params)
    out = jax.block_until_ready(out)
    ref = reference_forward(batch_context_embeddings, batch_entity_embeddings,
                            candidate_ids_batch, candidate_description_embeddings_batch,
                            params)
    assert out.shape == (B, C)
    # bf16 MXU inputs / bf16 streamed desc with f32 accumulation -> loosened tolerance.
    assert jnp.allclose(out, ref, rtol=2e-2, atol=2e-2), \
        float(jnp.max(jnp.abs(out - ref)))

    # Large-C path (tile_c = 256, multi-tile grid, padded candidate axis).
    C2 = 272
    cand_ids2 = jnp.arange(B * C2, dtype=jnp.int32).reshape(B, C2)
    desc2 = jax.random.normal(jax.random.PRNGKey(1), (B, C2, D), jnp.float32)
    out2 = entity_classifier_forward(batch_context_embeddings, batch_entity_embeddings,
                                     cand_ids2, desc2, params)
    out2 = jax.block_until_ready(out2)
    ref2 = reference_forward(batch_context_embeddings, batch_entity_embeddings,
                             cand_ids2, desc2, params)
    assert out2.shape == (B, C2)
    assert jnp.allclose(out2, ref2, rtol=2e-2, atol=2e-2), \
        float(jnp.max(jnp.abs(out2 - ref2)))

    print("KERNEL_OK")
</pallas_src>

<mosaic_0001>
module attributes {stable_mosaic.version = 11 : i64} {
  func.func @entity_classifier_kernel(%arg0: i32, %arg1: i32, %arg2: memref<1x1x384xf32, #tpu.memory_space<vmem>>, %arg3: memref<1x1x768xf32, #tpu.memory_space<vmem>>, %arg4: memref<1x8x768xbf16, #tpu.memory_space<vmem>>, %arg5: memref<3x768x384xbf16, #tpu.memory_space<vmem>>, %arg6: memref<1x384xf32, #tpu.memory_space<vmem>>, %arg7: memref<1x1x8xf32, #tpu.memory_space<vmem>>) attributes {dimension_semantics = [#tpu.dimension_semantics<parallel>, #tpu.dimension_semantics<parallel>], iteration_bounds = array<i64: 2, 1>, scalar_prefetch = 0 : i64, scratch_operands = 0 : i64, tpu.core_type = #tpu.core_type<tc>, window_params = [{transform_indices = @transform_0, window_bounds = array<i64: 1, 1, 384>}, {transform_indices = @transform_1, window_bounds = array<i64: 1, 1, 768>}, {transform_indices = @transform_2, window_bounds = array<i64: 1, 8, 768>}, {pipeline_mode = #tpu.pipeline_mode<synchronous>, transform_indices = @transform_3, window_bounds = array<i64: 3, 768, 384>}, {pipeline_mode = #tpu.pipeline_mode<synchronous>, transform_indices = @transform_4, window_bounds = array<i64: 1, 384>}, {transform_indices = @transform_5, window_bounds = array<i64: 1, 1, 8>}]} {
    %c0 = arith.constant 0 : index
    %c0_0 = arith.constant 0 : index
    %c0_1 = arith.constant 0 : index
    %0 = vector.load %arg3[%c0, %c0_0, %c0_1] : memref<1x1x768xf32, #tpu.memory_space<vmem>>, vector<1x1x768xf32>
    %1 = vector.shape_cast %0 : vector<1x1x768xf32> to vector<1x768xf32>
    %c0_2 = arith.constant 0 : index
    %c0_3 = arith.constant 0 : index
    %c0_4 = arith.constant 0 : index
    %2 = vector.load %arg4[%c0_2, %c0_3, %c0_4] : memref<1x8x768xbf16, #tpu.memory_space<vmem>>, vector<1x8x768xbf16>
    %3 = vector.shape_cast %2 : vector<1x8x768xbf16> to vector<8x768xbf16>
    %4 = arith.extf %3 : vector<8x768xbf16> to vector<8x768xf32>
    %5 = vector.broadcast %1 : vector<1x768xf32> to vector<8x768xf32>
    %6 = arith.subf %5, %4 : vector<8x768xf32>
    %7 = math.absf %6 : vector<8x768xf32>
    %8 = vector.broadcast %1 : vector<1x768xf32> to vector<8x768xf32>
    %9 = arith.mulf %8, %4 : vector<8x768xf32>
    %c0_5 = arith.constant 0 : index
    %c0_6 = arith.constant 0 : index
    %c0_7 = arith.constant 0 : index
    %10 = vector.load %arg5[%c0_5, %c0_6, %c0_7] : memref<3x768x384xbf16, #tpu.memory_space<vmem>>, vector<1x768x384xbf16>
    %11 = vector.shape_cast %10 : vector<1x768x384xbf16> to vector<768x384xbf16>
    %cst = arith.constant dense<0.000000e+00> : vector<8x384xf32>
    %12 = tpu.matmul %3, %11, %cst {dimension_numbers = #tpu.dot_dimension_numbers<[1], [0], [0], [1], [0, 0, 1, 1], [], []>} : vector<8x768xbf16>, vector<768x384xbf16>, vector<8x384xf32> -> vector<8x384xf32>
    %13 = arith.truncf %7 : vector<8x768xf32> to vector<8x768xbf16>
    %c1 = arith.constant 1 : index
    %c0_8 = arith.constant 0 : index
    %c0_9 = arith.constant 0 : index
    %14 = vector.load %arg5[%c1, %c0_8, %c0_9] : memref<3x768x384xbf16, #tpu.memory_space<vmem>>, vector<1x768x384xbf16>
    %15 = vector.shape_cast %14 : vector<1x768x384xbf16> to vector<768x384xbf16>
    %cst_10 = arith.constant dense<0.000000e+00> : vector<8x384xf32>
    %16 = tpu.matmul %13, %15, %cst_10 {dimension_numbers = #tpu.dot_dimension_numbers<[1], [0], [0], [1], [0, 0, 1, 1], [], []>} : vector<8x768xbf16>, vector<768x384xbf16>, vector<8x384xf32> -> vector<8x384xf32>
    %17 = arith.addf %12, %16 : vector<8x384xf32>
    %18 = arith.truncf %9 : vector<8x768xf32> to vector<8x768xbf16>
    %c2 = arith.constant 2 : index
    %c0_11 = arith.constant 0 : index
    %c0_12 = arith.constant 0 : index
    %19 = vector.load %arg5[%c2, %c0_11, %c0_12] : memref<3x768x384xbf16, #tpu.memory_space<vmem>>, vector<1x768x384xbf16>
    %20 = vector.shape_cast %19 : vector<1x768x384xbf16> to vector<768x384xbf16>
    %cst_13 = arith.constant dense<0.000000e+00> : vector<8x384xf32>
    %21 = tpu.matmul %18, %20, %cst_13 {dimension_numbers = #tpu.dot_dimension_numbers<[1], [0], [0], [1], [0, 0, 1, 1], [], []>} : vector<8x768xbf16>, vector<768x384xbf16>, vector<8x384xf32> -> vector<8x384xf32>
    %22 = arith.addf %17, %21 : vector<8x384xf32>
    %c0_14 = arith.constant 0 : index
    %c0_15 = arith.constant 0 : index
    %c0_16 = arith.constant 0 : index
    %23 = vector.load %arg2[%c0_14, %c0_15, %c0_16] : memref<1x1x384xf32, #tpu.memory_space<vmem>>, vector<1x1x384xf32>
    %24 = vector.shape_cast %23 : vector<1x1x384xf32> to vector<1x384xf32>
    %25 = vector.broadcast %24 : vector<1x384xf32> to vector<8x384xf32>
    %26 = arith.addf %22, %25 : vector<8x384xf32>
    %cst_17 = arith.constant 0.000000e+00 : f32
    %27 = vector.broadcast %cst_17 : f32 to vector<8x384xf32>
    %28 = arith.maximumf %26, %27 : vector<8x384xf32>
    %c0_18 = arith.constant 0 : index
    %c0_19 = arith.constant 0 : index
    %29 = vector.load %arg6[%c0_18, %c0_19] : memref<1x384xf32, #tpu.memory_space<vmem>>, vector<1x384xf32>
    %30 = vector.broadcast %29 : vector<1x384xf32> to vector<8x384xf32>
    %31 = arith.mulf %28, %30 : vector<8x384xf32>
    %cst_20 = arith.constant dense<0.000000e+00> : vector<8xf32>
    %32 = vector.multi_reduction <add>, %31, %cst_20 [1] : vector<8x384xf32> to vector<8xf32>
    %33 = vector.shape_cast %32 : vector<8xf32> to vector<1x1x8xf32>
    %c0_21 = arith.constant 0 : index
    %c0_22 = arith.constant 0 : index
    %c0_23 = arith.constant 0 : index
    %34 = vector.load %arg7[%c0_21, %c0_22, %c0_23] : memref<1x1x8xf32, #tpu.memory_space<vmem>>, vector<1x1x8xf32>
    tpu.vector_store %arg7[%c0_21, %c0_22, %c0_23], %33 {strides = array<i32>} : memref<1x1x8xf32, #tpu.memory_space<vmem>>, vector<1x1x8xf32>,
    return
  }
  func.func @transform_0(%arg0: i32, %arg1: i32) -> (i32, i32, i32) {
    %c0_i32 = arith.constant 0 : i32
    %c0_i32_0 = arith.constant 0 : i32
    %c0_i32_1 = arith.constant 0 : i32
    return %arg0, %c0_i32, %c0_i32_0 : i32, i32, i32
  }
  func.func @transform_1(%arg0: i32, %arg1: i32) -> (i32, i32, i32) {
    %c0_i32 = arith.constant 0 : i32
    %c0_i32_0 = arith.constant 0 : i32
    %c0_i32_1 = arith.constant 0 : i32
    return %arg0, %c0_i32, %c0_i32_0 : i32, i32, i32
  }
  func.func @transform_2(%arg0: i32, %arg1: i32) -> (i32, i32, i32) {
    %c0_i32 = arith.constant 0 : i32
    %c0_i32_0 = arith.constant 0 : i32
    return %arg0, %arg1, %c0_i32 : i32, i32, i32
  }
  func.func @transform_3(%arg0: i32, %arg1: i32) -> (i32, i32, i32) {
    %c0_i32 = arith.constant 0 : i32
    %c0_i32_0 = arith.constant 0 : i32
    %c0_i32_1 = arith.constant 0 : i32
    %c0_i32_2 = arith.constant 0 : i32
    return %c0_i32, %c0_i32_0, %c0_i32_1 : i32, i32, i32
  }
  func.func @transform_4(%arg0: i32, %arg1: i32) -> (i32, i32) {
    %c0_i32 = arith.constant 0 : i32
    %c0_i32_0 = arith.constant 0 : i32
    %c0_i32_1 = arith.constant 0 : i32
    return %c0_i32, %c0_i32_0 : i32, i32
  }
  func.func @transform_5(%arg0: i32, %arg1: i32) -> (i32, i32, i32) {
    %c0_i32 = arith.constant 0 : i32
    %c0_i32_0 = arith.constant 0 : i32
    return %arg0, %c0_i32, %arg1 : i32, i32, i32
  }
}

</mosaic_0001>

<llo_original>
// kernel: tpu_custom_call.1
$region0: #{tpu_custom_call.1}
  #allocation0 [shape = 'u32[]', space=smem, size = 0x4, offset = 0x4, fixed_abs, tag = 'smem constant byte address 0x4 - core index']
  #allocation1 [shape = 'u32[144,128]{1,0:T(1,128)}', space=vmem, size = 0x12000, scoped, tag = 'internal scratch']
  %s0 = inlined_call_operand.hbm [shape: f32[2,1,384], index: 0, kind: input, shape index: {}]
  %s1 = inlined_call_operand.hbm [shape: f32[2,1,768], index: 1, kind: input, shape index: {}]
  %s2 = inlined_call_operand.hbm [shape: bf16[2,8,768], index: 2, kind: input, shape index: {}]
  %s3 = inlined_call_operand.hbm [shape: bf16[3,768,384], index: 3, kind: input, shape index: {}]
  %s4 = inlined_call_operand.hbm [shape: f32[1,384], index: 4, kind: input, shape index: {}]
  %s5 = inlined_call_operand.hbm [shape: f32[2,1,8], index: 5, kind: output, shape index: {}]
  %s6 = sld [smem:[#allocation0]]
  $region73: #{tpu_custom_call.1} parent=0
    _
  %s8 = ssub.s32 1, %s6
  %s9 = scalar_select 0, %s8, %s6
  $region1: #{tpu_custom_call.1} parent=0
    #allocation2 [shape = 'u8[3072]{0}', space=vmem, size = 0xc00, scoped, tag = 'input window, operand 0']
    #allocation3 [shape = 's32[2]{0}', space=sflag, size = 0x8, scoped, tag = 'scoped memory for tpu_custom_call.1']
    #allocation4 [shape = 's32[2]{0}', space=sflag, size = 0x8, scoped, tag = 'scoped memory for tpu_custom_call.1']
    #allocation5 [shape = 'u8[6144]{0}', space=vmem, size = 0x1800, scoped, tag = 'input window, operand 1']
    #allocation6 [shape = 's32[2]{0}', space=sflag, size = 0x8, scoped, tag = 'scoped memory for tpu_custom_call.1']
    #allocation7 [shape = 'u8[24576]{0}', space=vmem, size = 0x6000, scoped, tag = 'input window, operand 2']
    #allocation8 [shape = 'u8[1769472]{0}', space=vmem, size = 0x1b0000, scoped, tag = 'input window, operand 3, single buffered']
    #allocation9 [shape = 's32[1]{0}', space=sflag, size = 0x4, scoped, tag = 'scoped memory for tpu_custom_call.1']
    #allocation10 [shape = 'u8[1536]{0}', space=vmem, size = 0x800, scoped, tag = 'input window, operand 4, single buffered']
    #allocation11 [shape = 'u8[1024]{0}', space=vmem, size = 0x400, scoped, tag = 'output window, operand 0']
    %10 = vsyncpa [#allocation3], 0
    %s11 = scalar_lea.sflag [#allocation3], 1
    %12 = vsyncpa %s11, 0
    %13 = vsyncpa [#allocation6], 0
    %s14 = scalar_lea.sflag [#allocation6], 1
    %15 = vsyncpa %s14, 0
    %16 = vsyncpa [#allocation9], 0
    %17 = vsyncpa [#allocation4], 0
    %s18 = scalar_lea.sflag [#allocation4], 1
    %19 = vsyncpa %s18, 0
    loop: start=0, step=1, limit=4
    $region2: #{tpu_custom_call.1} parent=1 // loop_pre_header
      _
    $region3: #{tpu_custom_call.1} parent=1 // loop_header
      %s21 = sphi 0, %s25
      %p22 = scmp.ge.s32.totalorder %s21, 4
      %s28 = sphi 0, %s40
      %s29 = sphi 0, %s36
      %s30 = sphi 0, %s28
      %s31 = sphi 0, %s29
      %s32 = sphi 0, %s30
      %s33 = sphi 0, %s31
      %s43 = sphi 0, %s45
      %s46 = sphi 0, %s43
      %s47 = sphi 0, %s46
      %s63 = sphi 0, %s47
      %s69 = sphi 0, %s71
      %s72 = sphi 0, %s69
      %s73 = sphi 0, %s72
      %s89 = sphi 0, %s73
      %s97 = sphi 0, %s99
      %s100 = sphi 0, %s97
      %s101 = sphi 0, %s100
      %s117 = sphi 0, %s101
      %s121 = sphi 0, %s121
      %s123 = sphi 0, %s121
      %s124 = sphi 0, %s123
      %s138 = sphi 0, %s124
      %s142 = sphi 0, %s142
      %s144 = sphi 0, %s142
      %s145 = sphi 0, %s144
      %s159 = sphi 0, %s145
      %s167 = sphi 0, %s169
      %s170 = sphi 0, %s167
      %s171 = sphi 0, %s170
      %s187 = sphi 0, %s171
    $region4: #{tpu_custom_call.1} parent=1 // loop_header_branch
      %24 = sbr.rel (%p22) target = $region8
    $region5: #{tpu_custom_call.1} parent=1 // loop_body
      %s26 = ssub.s32 %s21, 1
      %s27 = ssub.s32 %s21, 2
      %s34 = sadd.s32 1, %s29
      %p35 = scmp.ge.s32.totalorder %s34, 1
      %s36 = scalar_select %p35, 0, %s34
      %s37 = sadd.s32 1, %s28
      %s38 = scalar_select %p35, %s37, %s28
      %p39 = scmp.ge.s32.totalorder %s38, 2
      %s40 = scalar_select %p39, 0, %s38
      %s41 = ssub.s32 %s28, %s40
      %p42 = scmp.eq.s32.totalorder %s41, 0
      %s44 = sadd.s32 %s43, 1
      %s45 = scalar_select %p42, %s43, %s44
      %p48 = pneg %p42
      %p49 = scmp.eq.s32.totalorder %s21, 1
      %p50 = por %p48, %p49
      %p51 = scmp.ne.s32.totalorder %s43, %s46
      %p52 = scmp.eq.s32.totalorder %s21, 0
      %p53 = por %p51, %p52
      %p54 = scmp.ne.s32.totalorder %s43, %s46
      %p55 = scmp.eq.s32.totalorder %s26, 1
      %p56 = por %p54, %p55
      %p57 = scmp.ne.s32.totalorder %s46, %s47
      %p58 = scmp.eq.s32.totalorder %s26, 0
      %p59 = por %p57, %p58
      %p60 = scmp.ne.s32.totalorder %s46, %s47
      %p61 = scmp.eq.s32.totalorder %s27, 1
      %p62 = por %p60, %p61
      %p64 = scmp.ne.s32.totalorder %s47, %s63
      %p65 = scmp.eq.s32.totalorder %s27, 0
      %p66 = por %p64, %p65
      %s67 = ssub.s32 %s28, %s40
      %p68 = scmp.eq.s32.totalorder %s67, 0
      %s70 = sadd.s32 %s69, 1
      %s71 = scalar_select %p68, %s69, %s70
      %p74 = pneg %p68
      %p75 = scmp.eq.s32.totalorder %s21, 1
      %p76 = por %p74, %p75
      %p77 = scmp.ne.s32.totalorder %s69, %s72
      %p78 = scmp.eq.s32.totalorder %s21, 0
      %p79 = por %p77, %p78
      %p80 = scmp.ne.s32.totalorder %s69, %s72
      %p81 = scmp.eq.s32.totalorder %s26, 1
      %p82 = por %p80, %p81
      %p83 = scmp.ne.s32.totalorder %s72, %s73
      %p84 = scmp.eq.s32.totalorder %s26, 0
      %p85 = por %p83, %p84
      %p86 = scmp.ne.s32.totalorder %s72, %s73
      %p87 = scmp.eq.s32.totalorder %s27, 1
      %p88 = por %p86, %p87
      %p90 = scmp.ne.s32.totalorder %s73, %s89
      %p91 = scmp.eq.s32.totalorder %s27, 0
      %p92 = por %p90, %p91
      %s93 = ssub.s32 %s28, %s40
      %s94 = ssub.s32 %s29, %s36
      %s95 = sor.u32 %s93, %s94
      %p96 = scmp.eq.s32.totalorder %s95, 0
      %s98 = sadd.s32 %s97, 1
      %s99 = scalar_select %p96, %s97, %s98
      %p102 = pneg %p96
      %p103 = scmp.eq.s32.totalorder %s21, 1
      %p104 = por %p102, %p103
      %p105 = scmp.ne.s32.totalorder %s97, %s100
      %p106 = scmp.eq.s32.totalorder %s21, 0
      %p107 = por %p105, %p106
      %p108 = scmp.ne.s32.totalorder %s97, %s100
      %p109 = scmp.eq.s32.totalorder %s26, 1
      %p110 = por %p108, %p109
      %p111 = scmp.ne.s32.totalorder %s100, %s101
      %p112 = scmp.eq.s32.totalorder %s26, 0
      %p113 = por %p111, %p112
      %p114 = scmp.ne.s32.totalorder %s100, %s101
      %p115 = scmp.eq.s32.totalorder %s27, 1
      %p116 = por %p114, %p115
      %p118 = scmp.ne.s32.totalorder %s101, %s117
      %p119 = scmp.eq.s32.totalorder %s27, 0
      %p120 = por %p118, %p119
      %s122 = sadd.s32 %s121, 1
      %p125 = scmp.eq.s32.totalorder %s21, 1
      %p126 = scmp.ne.s32.totalorder %s121, %s123
      %p127 = scmp.eq.s32.totalorder %s21, 0
      %p128 = por %p126, %p127
      %p129 = scmp.ne.s32.totalorder %s121, %s123
      %p130 = scmp.eq.s32.totalorder %s26, 1
      %p131 = por %p129, %p130
      %p132 = scmp.ne.s32.totalorder %s123, %s124
      %p133 = scmp.eq.s32.totalorder %s26, 0
      %p134 = por %p132, %p133
      %p135 = scmp.ne.s32.totalorder %s123, %s124
      %p136 = scmp.eq.s32.totalorder %s27, 1
      %p137 = por %p135, %p136
      %p139 = scmp.ne.s32.totalorder %s124, %s138
      %p140 = scmp.eq.s32.totalorder %s27, 0
      %p141 = por %p139, %p140
      %s143 = sadd.s32 %s142, 1
      %p146 = scmp.eq.s32.totalorder %s21, 1
      %p147 = scmp.ne.s32.totalorder %s142, %s144
      %p148 = scmp.eq.s32.totalorder %s21, 0
      %p149 = por %p147, %p148
      %p150 = scmp.ne.s32.totalorder %s142, %s144
      %p151 = scmp.eq.s32.totalorder %s26, 1
      %p152 = por %p150, %p151
      %p153 = scmp.ne.s32.totalorder %s144, %s145
      %p154 = scmp.eq.s32.totalorder %s26, 0
      %p155 = por %p153, %p154
      %p156 = scmp.ne.s32.totalorder %s144, %s145
      %p157 = scmp.eq.s32.totalorder %s27, 1
      %p158 = por %p156, %p157
      %p160 = scmp.ne.s32.totalorder %s145, %s159
      %p161 = scmp.eq.s32.totalorder %s27, 0
      %p162 = por %p160, %p161
      %s163 = ssub.s32 %s28, %s40
      %s164 = ssub.s32 %s29, %s36
      %s165 = sor.u32 %s163, %s164
      %p166 = scmp.eq.s32.totalorder %s165, 0
      %s168 = sadd.s32 %s167, 1
      %s169 = scalar_select %p166, %s167, %s168
      %p172 = pneg %p166
      %p173 = scmp.eq.s32.totalorder %s21, 1
      %p174 = por %p172, %p173
      %p175 = scmp.ne.s32.totalorder %s167, %s170
      %p176 = scmp.eq.s32.totalorder %s21, 0
      %p177 = por %p175, %p176
      %p178 = scmp.ne.s32.totalorder %s167, %s170
      %p179 = scmp.eq.s32.totalorder %s26, 1
      %p180 = por %p178, %p179
      %p181 = scmp.ne.s32.totalorder %s170, %s171
      %p182 = scmp.eq.s32.totalorder %s26, 0
      %p183 = por %p181, %p182
      %p184 = scmp.ne.s32.totalorder %s170, %s171
      %p185 = scmp.eq.s32.totalorder %s27, 1
      %p186 = por %p184, %p185
      %p188 = scmp.ne.s32.totalorder %s171, %s187
      %p189 = scmp.eq.s32.totalorder %s27, 0
      %p190 = por %p188, %p189
      %p191 = scmp.le.s32.totalorder 1, %s21
      %p192 = scmp.lt.s32.totalorder %s21, 3
      %p193 = pnand %p191, %p192
      %p194 = pneg %p193
      // Predicated region
      $region9: #{tpu_custom_call.1} parent=5 // pred_check
        _
      $region10: #{tpu_custom_call.1} parent=5 // pred_check_branch
        %196 = sbr.rel (%p193) target = $region12
      $region11: #{tpu_custom_call.1} parent=5 // pred_region
        %s197 = ssub.s32 %s21, 1
        // Predicated region
        $region13: #{tpu_custom_call.1} parent=11 // pred_check
          %p198 = pneg %p134
        $region14: #{tpu_custom_call.1} parent=11 // pred_check_branch
          %200 = sbr.rel (%p198) target = $region16
        $region15: #{tpu_custom_call.1} parent=11 // pred_region
          %s202 = ssub.s32 55296, 55296
          %203 = vsyncadd [#allocation9], %s202
          %s204 = sshll.u32 [#allocation8], 4
          %s205 = int_to_ptr.vmem [resolvable:$true] %s204
          %210 = dma.hbm_to_vmem [thread:$0]  %s3, 55296, %s205, [#allocation9], 192, 192, 12
        $region16: #{tpu_custom_call.1} parent=11 // pred_fallthru
          _
        // Predicated region
        $region17: #{tpu_custom_call.1} parent=11 // pred_check
          %p211 = pneg %p155
        $region18: #{tpu_custom_call.1} parent=11 // pred_check_branch
          %213 = sbr.rel (%p211) target = $region20
        $region19: #{tpu_custom_call.1} parent=11 // pred_region
          %s215 = ssub.s32 48, 48
          %216 = vsyncadd [#allocation9], %s215
          %s218 = sshll.u32 [#allocation10], 4
          %s219 = int_to_ptr.vmem [resolvable:$true] %s218
          %221 = dma.hbm_to_vmem [thread:$0]  %s4, 48, %s219, [#allocation9]
        $region20: #{tpu_custom_call.1} parent=11 // pred_fallthru
          _
      $region12: #{tpu_custom_call.1} parent=5 // pred_fallthru
        _
      %p222 = scmp.lt.s32.totalorder %s21, 2
      // Predicated region
      $region21: #{tpu_custom_call.1} parent=5 // pred_check
        %p223 = pneg %p222
      $region22: #{tpu_custom_call.1} parent=5 // pred_check_branch
        %225 = sbr.rel (%p223) target = $region24
      $region23: #{tpu_custom_call.1} parent=5 // pred_region
        // Predicated region
        $region25: #{tpu_custom_call.1} parent=23 // pred_check
          %p226 = pneg %p53
        $region26: #{tpu_custom_call.1} parent=23 // pred_check_branch
          %228 = sbr.rel (%p226) target = $region28
        $region27: #{tpu_custom_call.1} parent=23 // pred_region
          %s229 = sand.u32 %s43, 1
          %s230 = scalar_lea.sflag [#allocation3], %s229
          %s231 = sand.u32 %s43, 1
          %s232 = smul.addr %s231, 3
          %s233 = scalar_lea.vmem [#allocation2], %s232
          %s235 = ssub.s32 48, 48
          %236 = vsyncadd %s230, %s235
          %s237 = smul.addr %s28, 3
          %s238 = smul.addr %s237, 16
          %s239 = scalar_lea.hbm %s0, %s238
          %s241 = sshll.u32 %s233, 4
          %s242 = int_to_ptr.vmem [resolvable:$true] %s241
          %244 = dma.hbm_to_vmem [thread:$0]  %s239, 48, %s242, %s230
        $region28: #{tpu_custom_call.1} parent=23 // pred_fallthru
          _
        // Predicated region
        $region29: #{tpu_custom_call.1} parent=23 // pred_check
          %p245 = pneg %p79
        $region30: #{tpu_custom_call.1} parent=23 // pred_check_branch
          %247 = sbr.rel (%p245) target = $region32
        $region31: #{tpu_custom_call.1} parent=23 // pred_region
          %s248 = sand.u32 %s21, 1
          %s249 = scalar_lea.sflag [#allocation6], %s248
          %s250 = sand.u32 %s69, 1
          %s251 = smul.addr %s250, 6
          %s252 = scalar_lea.vmem [#allocation5], %s251
          %s254 = ssub.s32 96, 96
          %255 = vsyncadd %s249, %s254
          %s256 = smul.addr %s28, 6
          %s257 = smul.addr %s256, 16
          %s258 = scalar_lea.hbm %s1, %s257
          %s260 = sshll.u32 %s252, 4
          %s261 = int_to_ptr.vmem [resolvable:$true] %s260
          %263 = dma.hbm_to_vmem [thread:$0]  %s258, 96, %s261, %s249
        $region32: #{tpu_custom_call.1} parent=23 // pred_fallthru
          _
        // Predicated region
        $region33: #{tpu_custom_call.1} parent=23 // pred_check
          %p264 = pneg %p107
        $region34: #{tpu_custom_call.1} parent=23 // pred_check_branch
          %266 = sbr.rel (%p264) target = $region36
        $region35: #{tpu_custom_call.1} parent=23 // pred_region
          %s267 = sand.u32 %s21, 1
          %s268 = scalar_lea.sflag [#allocation6], %s267
          %s269 = sand.u32 %s97, 1
          %s270 = smul.addr %s269, 24
          %s271 = scalar_lea.vmem [#allocation7], %s270
          %s273 = ssub.s32 384, 384
          %274 = vsyncadd %s268, %s273
          %s275 = smul.addr %s29, 6
          %s276 = smul.addr %s28, 6
          %s277 = sadd.s32 %s275, %s276
          %s278 = smul.addr %s277, 64
          %s279 = scalar_lea.hbm %s2, %s278
          %s281 = sshll.u32 %s271, 4
          %s282 = int_to_ptr.vmem [resolvable:$true] %s281
          %284 = dma.hbm_to_vmem [thread:$0]  %s279, 384, %s282, %s268
        $region36: #{tpu_custom_call.1} parent=23 // pred_fallthru
          _
      $region24: #{tpu_custom_call.1} parent=5 // pred_fallthru
        _
      %p285 = scmp.le.s32.totalorder 1, %s21
      %p286 = scmp.lt.s32.totalorder %s21, 3
      %p287 = pnand %p285, %p286
      %p288 = pneg %p287
      // Predicated region
      $region37: #{tpu_custom_call.1} parent=5 // pred_check
        _
      $region38: #{tpu_custom_call.1} parent=5 // pred_check_branch
        %290 = sbr.rel (%p287) target = $region40
      $region39: #{tpu_custom_call.1} parent=5 // pred_region
        %s291 = ssub.s32 %s21, 1
        %s292 = sand.u32 %s46, 1
        %s293 = scalar_lea.sflag [#allocation3], %s292
        %s294 = sand.u32 %s46, 1
        %s295 = smul.addr %s294, 3
        %s296 = scalar_lea.vmem [#allocation2], %s295
        // Predicated region
        $region41: #{tpu_custom_call.1} parent=39 // pred_check
          %p297 = pneg %p59
        $region42: #{tpu_custom_call.1} parent=39 // pred_check_branch
          %299 = sbr.rel (%p297) target = $region44
        $region43: #{tpu_custom_call.1} parent=39 // pred_region
          %300 = dma.done %s293, 48
        $region44: #{tpu_custom_call.1} parent=39 // pred_fallthru
          _
        %s301 = sand.u32 %s26, 1
        %s302 = scalar_lea.sflag [#allocation6], %s301
        %s303 = sand.u32 %s72, 1
        %s304 = smul.addr %s303, 6
        %s305 = scalar_lea.vmem [#allocation5], %s304
        // Predicated region
        $region45: #{tpu_custom_call.1} parent=39 // pred_check
          %p306 = pneg %p85
        $region46: #{tpu_custom_call.1} parent=39 // pred_check_branch
          %308 = sbr.rel (%p306) target = $region48
        $region47: #{tpu_custom_call.1} parent=39 // pred_region
          %309 = dma.done %s302, 96
        $region48: #{tpu_custom_call.1} parent=39 // pred_fallthru
          _
        %s310 = sand.u32 %s26, 1
        %s311 = scalar_lea.sflag [#allocation6], %s310
        %s312 = sand.u32 %s100, 1
        %s313 = smul.addr %s312, 24
        %s314 = scalar_lea.vmem [#allocation7], %s313
        // Predicated region
        $region49: #{tpu_custom_call.1} parent=39 // pred_check
          %p315 = pneg %p113
        $region50: #{tpu_custom_call.1} parent=39 // pred_check_branch
          %317 = sbr.rel (%p315) target = $region52
        $region51: #{tpu_custom_call.1} parent=39 // pred_region
          %318 = dma.done %s311, 384
        $region52: #{tpu_custom_call.1} parent=39 // pred_fallthru
          _
        // Predicated region
        $region53: #{tpu_custom_call.1} parent=39 // pred_check
          %p319 = pneg %p134
        $region54: #{tpu_custom_call.1} parent=39 // pred_check_branch
          %321 = sbr.rel (%p319) target = $region56
        $region55: #{tpu_custom_call.1} parent=39 // pred_region
          %322 = dma.done [#allocation9], 55296
        $region56: #{tpu_custom_call.1} parent=39 // pred_fallthru
          _
        // Predicated region
        $region57: #{tpu_custom_call.1} parent=39 // pred_check
          %p323 = pneg %p155
        $region58: #{tpu_custom_call.1} parent=39 // pred_check_branch
          %325 = sbr.rel (%p323) target = $region60
        $region59: #{tpu_custom_call.1} parent=39 // pred_region
          %326 = dma.done [#allocation9], 48
        $region60: #{tpu_custom_call.1} parent=39 // pred_fallthru
          _
        %s327 = sand.u32 %s46, 1
        %s328 = scalar_lea.sflag [#allocation3], %s327
        %s329 = sand.u32 %s46, 1
        %s330 = smul.addr %s329, 3
        %s331 = scalar_lea.vmem [#allocation2], %s330
        %p332 = pneg %p59
        %p333 = pneg %p56
        %s334 = sand.u32 %s26, 1
        %s335 = scalar_lea.sflag [#allocation6], %s334
        %s336 = sand.u32 %s72, 1
        %s337 = smul.addr %s336, 6
        %s338 = scalar_lea.vmem [#allocation5], %s337
        %p339 = pneg %p85
        %p340 = pneg %p82
        %s341 = sand.u32 %s26, 1
        %s342 = scalar_lea.sflag [#allocation6], %s341
        %s343 = sand.u32 %s100, 1
        %s344 = smul.addr %s343, 24
        %s345 = scalar_lea.vmem [#allocation7], %s344
        %p346 = pneg %p113
        %p347 = pneg %p110
        %p348 = pneg %p134
        %p349 = pneg %p131
        %p350 = pneg %p155
        %p351 = pneg %p152
        %p352 = pneg %p183
        %p353 = pneg %p180
        %s354 = sand.u32 %s170, 1
        %s355 = scalar_lea.sflag [#allocation4], %s354
        %s356 = sand.u32 %s170, 1
        %s357 = scalar_lea.vmem [#allocation11], %s356
        %v359 = vld [vmem:[%s305] sm:$0x3f]
        %v360 = vld [vmem:[%s314] sm:$0xff]
        %v361 = vld [vmem:[%s314 + $0x8] sm:$0xff]
        %v362 = vld [vmem:[%s314 + $0x10] sm:$0xff]
        %v363 = vunpack.c.l.bf16 %v360
        %v364 = vunpack.c.h.bf16 %v360
        %v365 = vunpack.c.l.bf16 %v361
        %v366 = vunpack.c.h.bf16 %v361
        %v367 = vunpack.c.l.bf16 %v362
        %v368 = vunpack.c.h.bf16 %v362
        %v370 = vlaneseq
        %v371 = vshrl.u32 %v370, 7
        %v372 = vsub.s32 0, %v371
        %v373 = vrot.slane %v359, %v372
        %v374 = vlaneseq
        %v375 = vshrl.u32 %v374, 7
        %v376 = vsub.s32 1, %v375
        %v377 = vrot.slane %v359, %v376
        %v378 = vlaneseq
        %v379 = vshrl.u32 %v378, 7
        %v380 = vsub.s32 2, %v379
        %v381 = vrot.slane %v359, %v380
        %v382 = vlaneseq
        %v383 = vshrl.u32 %v382, 7
        %v384 = vsub.s32 3, %v383
        %v385 = vrot.slane %v359, %v384
        %v386 = vlaneseq
        %v387 = vshrl.u32 %v386, 7
        %v388 = vsub.s32 4, %v387
        %v389 = vrot.slane %v359, %v388
        %v390 = vlaneseq
        %v391 = vshrl.u32 %v390, 7
        %v392 = vsub.s32 5, %v391
        %v393 = vrot.slane %v359, %v392
        %v400 = vsub.f32 %v373, %v363
        %v401 = vsub.f32 %v377, %v364
        %v402 = vsub.f32 %v381, %v365
        %v403 = vsub.f32 %v385, %v366
        %v404 = vsub.f32 %v389, %v367
        %v405 = vsub.f32 %v393, %v368
        %v406 = vand.u32 2147483647, %v400
        %v407 = vand.u32 2147483647, %v401
        %v408 = vand.u32 2147483647, %v402
        %v409 = vand.u32 2147483647, %v403
        %v410 = vand.u32 2147483647, %v404
        %v411 = vand.u32 2147483647, %v405
        %v412 = vmul.f32 %v373, %v363
        %v413 = vmul.f32 %v377, %v364
        %v414 = vmul.f32 %v381, %v365
        %v415 = vmul.f32 %v385, %v366
        %v416 = vmul.f32 %v389, %v367
        %v417 = vmul.f32 %v393, %v368
        %v418 = vld [vmem:[#allocation8] sm:$0xff]
        %v419 = vld [vmem:[#allocation8 + $0x8] sm:$0xf]
        %v420 = vld [vmem:[#allocation8 + $0xc] sm:$0xff]
        %v421 = vld [vmem:[#allocation8 + $0x14] sm:$0xf]
        %v422 = vld [vmem:[#allocation8 + $0x18] sm:$0xff]
        %v423 = vld [vmem:[#allocation8 + $0x20] sm:$0xf]
        %v424 = vld [vmem:[#allocation8 + $0x24] sm:$0xff]
        %v425 = vld [vmem:[#allocation8 + $0x2c] sm:$0xf]
        %v426 = vld [vmem:[#allocation8 + $0x30] sm:$0xff]
        %v427 = vld [vmem:[#allocation8 + $0x38] sm:$0xf]
        %v428 = vld [vmem:[#allocation8 + $0x3c] sm:$0xff]
        %v429 = vld [vmem:[#allocation8 + $0x44] sm:$0xf]
        %v430 = vld [vmem:[#allocation8 + $0x48] sm:$0xff]
        %v431 = vld [vmem:[#allocation8 + $0x50] sm:$0xf]
        %v432 = vld [vmem:[#allocation8 + $0x54] sm:$0xff]
        %v433 = vld [vmem:[#allocation8 + $0x5c] sm:$0xf]
        %v434 = vld [vmem:[#allocation8 + $0x60] sm:$0xff]
        %v435 = vld [vmem:[#allocation8 + $0x68] sm:$0xf]
        %v436 = vld [vmem:[#allocation8 + $0x6c] sm:$0xff]
        %v437 = vld [vmem:[#allocation8 + $0x74] sm:$0xf]
        %v438 = vld [vmem:[#allocation8 + $0x78] sm:$0xff]
        %v439 = vld [vmem:[#allocation8 + $0x80] sm:$0xf]
        %v440 = vld [vmem:[#allocation8 + $0x84] sm:$0xff]
        %v441 = vld [vmem:[#allocation8 + $0x8c] sm:$0xf]
        %v442 = vld [vmem:[#allocation8 + $0x90] sm:$0xff]
        %v443 = vld [vmem:[#allocation8 + $0x98] sm:$0xf]
        %v444 = vld [vmem:[#allocation8 + $0x9c] sm:$0xff]
        %v445 = vld [vmem:[#allocation8 + $0xa4] sm:$0xf]
        %v446 = vld [vmem:[#allocation8 + $0xa8] sm:$0xff]
        %v447 = vld [vmem:[#allocation8 + $0xb0] sm:$0xf]
        %v448 = vld [vmem:[#allocation8 + $0xb4] sm:$0xff]
        %v449 = vld [vmem:[#allocation8 + $0xbc] sm:$0xf]
        %v450 = vld [vmem:[#allocation8 + $0xc0] sm:$0xff]
        %v451 = vld [vmem:[#allocation8 + $0xc8] sm:$0xf]
        %v452 = vld [vmem:[#allocation8 + $0xcc] sm:$0xff]
        %v453 = vld [vmem:[#allocation8 + $0xd4] sm:$0xf]
        %v454 = vld [vmem:[#allocation8 + $0xd8] sm:$0xff]
        %v455 = vld [vmem:[#allocation8 + $0xe0] sm:$0xf]
        %v456 = vld [vmem:[#allocation8 + $0xe4] sm:$0xff]
        %v457 = vld [vmem:[#allocation8 + $0xec] sm:$0xf]
        %v458 = vld [vmem:[#allocation8 + $0xf0] sm:$0xff]
        %v459 = vld [vmem:[#allocation8 + $0xf8] sm:$0xf]
        %v460 = vld [vmem:[#allocation8 + $0xfc] sm:$0xff]
        %v461 = vld [vmem:[#allocation8 + $0x104] sm:$0xf]
        %v462 = vld [vmem:[#allocation8 + $0x108] sm:$0xff]
        %v463 = vld [vmem:[#allocation8 + $0x110] sm:$0xf]
        %v464 = vld [vmem:[#allocation8 + $0x114] sm:$0xff]
        %v465 = vld [vmem:[#allocation8 + $0x11c] sm:$0xf]
        %v466 = vld [vmem:[#allocation8 + $0x120] sm:$0xff]
        %v467 = vld [vmem:[#allocation8 + $0x128] sm:$0xf]
        %v468 = vld [vmem:[#allocation8 + $0x12c] sm:$0xff]
        %v469 = vld [vmem:[#allocation8 + $0x134] sm:$0xf]
        %v470 = vld [vmem:[#allocation8 + $0x138] sm:$0xff]
        %v471 = vld [vmem:[#allocation8 + $0x140] sm:$0xf]
        %v472 = vld [vmem:[#allocation8 + $0x144] sm:$0xff]
        %v473 = vld [vmem:[#allocation8 + $0x14c] sm:$0xf]
        %v474 = vld [vmem:[#allocation8 + $0x150] sm:$0xff]
        %v475 = vld [vmem:[#allocation8 + $0x158] sm:$0xf]
        %v476 = vld [vmem:[#allocation8 + $0x15c] sm:$0xff]
        %v477 = vld [vmem:[#allocation8 + $0x164] sm:$0xf]
        %v478 = vld [vmem:[#allocation8 + $0x168] sm:$0xff]
        %v479 = vld [vmem:[#allocation8 + $0x170] sm:$0xf]
        %v480 = vld [vmem:[#allocation8 + $0x174] sm:$0xff]
        %v481 = vld [vmem:[#allocation8 + $0x17c] sm:$0xf]
        %v482 = vld [vmem:[#allocation8 + $0x180] sm:$0xff]
        %v483 = vld [vmem:[#allocation8 + $0x188] sm:$0xf]
        %v484 = vld [vmem:[#allocation8 + $0x18c] sm:$0xff]
        %v485 = vld [vmem:[#allocation8 + $0x194] sm:$0xf]
        %v486 = vld [vmem:[#allocation8 + $0x198] sm:$0xff]
        %v487 = vld [vmem:[#allocation8 + $0x1a0] sm:$0xf]
        %v488 = vld [vmem:[#allocation8 + $0x1a4] sm:$0xff]
        %v489 = vld [vmem:[#allocation8 + $0x1ac] sm:$0xf]
        %v490 = vld [vmem:[#allocation8 + $0x1b0] sm:$0xff]
        %v491 = vld [vmem:[#allocation8 + $0x1b8] sm:$0xf]
        %v492 = vld [vmem:[#allocation8 + $0x1bc] sm:$0xff]
        %v493 = vld [vmem:[#allocation8 + $0x1c4] sm:$0xf]
        %v494 = vld [vmem:[#allocation8 + $0x1c8] sm:$0xff]
        %v495 = vld [vmem:[#allocation8 + $0x1d0] sm:$0xf]
        %v496 = vld [vmem:[#allocation8 + $0x1d4] sm:$0xff]
        %v497 = vld [vmem:[#allocation8 + $0x1dc] sm:$0xf]
        %v498 = vld [vmem:[#allocation8 + $0x1e0] sm:$0xff]
        %v499 = vld [vmem:[#allocation8 + $0x1e8] sm:$0xf]
        %v500 = vld [vmem:[#allocation8 + $0x1ec] sm:$0xff]
        %v501 = vld [vmem:[#allocation8 + $0x1f4] sm:$0xf]
        %v502 = vld [vmem:[#allocation8 + $0x1f8] sm:$0xff]
        %v503 = vld [vmem:[#allocation8 + $0x200] sm:$0xf]
        %v504 = vld [vmem:[#allocation8 + $0x204] sm:$0xff]
        %v505 = vld [vmem:[#allocation8 + $0x20c] sm:$0xf]
        %v506 = vld [vmem:[#allocation8 + $0x210] sm:$0xff]
        %v507 = vld [vmem:[#allocation8 + $0x218] sm:$0xf]
        %v508 = vld [vmem:[#allocation8 + $0x21c] sm:$0xff]
        %v509 = vld [vmem:[#allocation8 + $0x224] sm:$0xf]
        %v510 = vld [vmem:[#allocation8 + $0x228] sm:$0xff]
        %v511 = vld [vmem:[#allocation8 + $0x230] sm:$0xf]
        %v512 = vld [vmem:[#allocation8 + $0x234] sm:$0xff]
        %v513 = vld [vmem:[#allocation8 + $0x23c] sm:$0xf]
        %v514 = vld [vmem:[#allocation8 + $0x240] sm:$0xff]
        %v515 = vld [vmem:[#allocation8 + $0x248] sm:$0xf]
        %v516 = vld [vmem:[#allocation8 + $0x24c] sm:$0xff]
        %v517 = vld [vmem:[#allocation8 + $0x254] sm:$0xf]
        %v518 = vld [vmem:[#allocation8 + $0x258] sm:$0xff]
        %v519 = vld [vmem:[#allocation8 + $0x260] sm:$0xf]
        %v520 = vld [vmem:[#allocation8 + $0x264] sm:$0xff]
        %v521 = vld [vmem:[#allocation8 + $0x26c] sm:$0xf]
        %v522 = vld [vmem:[#allocation8 + $0x270] sm:$0xff]
        %v523 = vld [vmem:[#allocation8 + $0x278] sm:$0xf]
        %v524 = vld [vmem:[#allocation8 + $0x27c] sm:$0xff]
        %v525 = vld [vmem:[#allocation8 + $0x284] sm:$0xf]
        %v526 = vld [vmem:[#allocation8 + $0x288] sm:$0xff]
        %v527 = vld [vmem:[#allocation8 + $0x290] sm:$0xf]
        %v528 = vld [vmem:[#allocation8 + $0x294] sm:$0xff]
        %v529 = vld [vmem:[#allocation8 + $0x29c] sm:$0xf]
        %v530 = vld [vmem:[#allocation8 + $0x2a0] sm:$0xff]
        %v531 = vld [vmem:[#allocation8 + $0x2a8] sm:$0xf]
        %v532 = vld [vmem:[#allocation8 + $0x2ac] sm:$0xff]
        %v533 = vld [vmem:[#allocation8 + $0x2b4] sm:$0xf]
        %v534 = vld [vmem:[#allocation8 + $0x2b8] sm:$0xff]
        %v535 = vld [vmem:[#allocation8 + $0x2c0] sm:$0xf]
        %v536 = vld [vmem:[#allocation8 + $0x2c4] sm:$0xff]
        %v537 = vld [vmem:[#allocation8 + $0x2cc] sm:$0xf]
        %v538 = vld [vmem:[#allocation8 + $0x2d0] sm:$0xff]
        %v539 = vld [vmem:[#allocation8 + $0x2d8] sm:$0xf]
        %v540 = vld [vmem:[#allocation8 + $0x2dc] sm:$0xff]
        %v541 = vld [vmem:[#allocation8 + $0x2e4] sm:$0xf]
        %v542 = vld [vmem:[#allocation8 + $0x2e8] sm:$0xff]
        %v543 = vld [vmem:[#allocation8 + $0x2f0] sm:$0xf]
        %v544 = vld [vmem:[#allocation8 + $0x2f4] sm:$0xff]
        %v545 = vld [vmem:[#allocation8 + $0x2fc] sm:$0xf]
        %v546 = vld [vmem:[#allocation8 + $0x300] sm:$0xff]
        %v547 = vld [vmem:[#allocation8 + $0x308] sm:$0xf]
        %v548 = vld [vmem:[#allocation8 + $0x30c] sm:$0xff]
        %v549 = vld [vmem:[#allocation8 + $0x314] sm:$0xf]
        %v550 = vld [vmem:[#allocation8 + $0x318] sm:$0xff]
        %v551 = vld [vmem:[#allocation8 + $0x320] sm:$0xf]
        %v552 = vld [vmem:[#allocation8 + $0x324] sm:$0xff]
        %v553 = vld [vmem:[#allocation8 + $0x32c] sm:$0xf]
        %v554 = vld [vmem:[#allocation8 + $0x330] sm:$0xff]
        %v555 = vld [vmem:[#allocation8 + $0x338] sm:$0xf]
        %v556 = vld [vmem:[#allocation8 + $0x33c] sm:$0xff]
        %v557 = vld [vmem:[#allocation8 + $0x344] sm:$0xf]
        %v558 = vld [vmem:[#allocation8 + $0x348] sm:$0xff]
        %v559 = vld [vmem:[#allocation8 + $0x350] sm:$0xf]
        %v560 = vld [vmem:[#allocation8 + $0x354] sm:$0xff]
        %v561 = vld [vmem:[#allocation8 + $0x35c] sm:$0xf]
        %v562 = vld [vmem:[#allocation8 + $0x360] sm:$0xff]
        %v563 = vld [vmem:[#allocation8 + $0x368] sm:$0xf]
        %v564 = vld [vmem:[#allocation8 + $0x36c] sm:$0xff]
        %v565 = vld [vmem:[#allocation8 + $0x374] sm:$0xf]
        %v566 = vld [vmem:[#allocation8 + $0x378] sm:$0xff]
        %v567 = vld [vmem:[#allocation8 + $0x380] sm:$0xf]
        %v568 = vld [vmem:[#allocation8 + $0x384] sm:$0xff]
        %v569 = vld [vmem:[#allocation8 + $0x38c] sm:$0xf]
        %v570 = vld [vmem:[#allocation8 + $0x390] sm:$0xff]
        %v571 = vld [vmem:[#allocation8 + $0x398] sm:$0xf]
        %v572 = vld [vmem:[#allocation8 + $0x39c] sm:$0xff]
        %v573 = vld [vmem:[#allocation8 + $0x3a4] sm:$0xf]
        %v574 = vld [vmem:[#allocation8 + $0x3a8] sm:$0xff]
        %v575 = vld [vmem:[#allocation8 + $0x3b0] sm:$0xf]
        %v576 = vld [vmem:[#allocation8 + $0x3b4] sm:$0xff]
        %v577 = vld [vmem:[#allocation8 + $0x3bc] sm:$0xf]
        %v578 = vld [vmem:[#allocation8 + $0x3c0] sm:$0xff]
        %v579 = vld [vmem:[#allocation8 + $0x3c8] sm:$0xf]
        %v580 = vld [vmem:[#allocation8 + $0x3cc] sm:$0xff]
        %v581 = vld [vmem:[#allocation8 + $0x3d4] sm:$0xf]
        %v582 = vld [vmem:[#allocation8 + $0x3d8] sm:$0xff]
        %v583 = vld [vmem:[#allocation8 + $0x3e0] sm:$0xf]
        %v584 = vld [vmem:[#allocation8 + $0x3e4] sm:$0xff]
        %v585 = vld [vmem:[#allocation8 + $0x3ec] sm:$0xf]
        %v586 = vld [vmem:[#allocation8 + $0x3f0] sm:$0xff]
        %v587 = vld [vmem:[#allocation8 + $0x3f8] sm:$0xf]
        %v588 = vld [vmem:[#allocation8 + $0x3fc] sm:$0xff]
        %v589 = vld [vmem:[#allocation8 + $0x404] sm:$0xf]
        %v590 = vld [vmem:[#allocation8 + $0x408] sm:$0xff]
        %v591 = vld [vmem:[#allocation8 + $0x410] sm:$0xf]
        %v592 = vld [vmem:[#allocation8 + $0x414] sm:$0xff]
        %v593 = vld [vmem:[#allocation8 + $0x41c] sm:$0xf]
        %v594 = vld [vmem:[#allocation8 + $0x420] sm:$0xff]
        %v595 = vld [vmem:[#allocation8 + $0x428] sm:$0xf]
        %v596 = vld [vmem:[#allocation8 + $0x42c] sm:$0xff]
        %v597 = vld [vmem:[#allocation8 + $0x434] sm:$0xf]
        %v598 = vld [vmem:[#allocation8 + $0x438] sm:$0xff]
        %v599 = vld [vmem:[#allocation8 + $0x440] sm:$0xf]
        %v600 = vld [vmem:[#allocation8 + $0x444] sm:$0xff]
        %v601 = vld [vmem:[#allocation8 + $0x44c] sm:$0xf]
        %v602 = vld [vmem:[#allocation8 + $0x450] sm:$0xff]
        %v603 = vld [vmem:[#allocation8 + $0x458] sm:$0xf]
        %v604 = vld [vmem:[#allocation8 + $0x45c] sm:$0xff]
        %v605 = vld [vmem:[#allocation8 + $0x464] sm:$0xf]
        %v606 = vld [vmem:[#allocation8 + $0x468] sm:$0xff]
        %v607 = vld [vmem:[#allocation8 + $0x470] sm:$0xf]
        %v608 = vld [vmem:[#allocation8 + $0x474] sm:$0xff]
        %v609 = vld [vmem:[#allocation8 + $0x47c] sm:$0xf]
        %v610 = vpack.c.bf16 %v406, %v406
        %v611 = vpack.c.bf16 %v407, %v407
        %v612 = vpack.c.bf16 %v408, %v408
        %v613 = vpack.c.bf16 %v409, %v409
        %v614 = vpack.c.bf16 %v410, %v410
        %v615 = vpack.c.bf16 %v411, %v411
        %s616 = scalar_lea.vmem [#allocation8], 1152
        %v617 = vld [vmem:[%s616] sm:$0xff]
        %v618 = vld [vmem:[%s616 + $0x8] sm:$0xf]
        %v619 = vld [vmem:[%s616 + $0xc] sm:$0xff]
        %v620 = vld [vmem:[%s616 + $0x14] sm:$0xf]
        %v621 = vld [vmem:[%s616 + $0x18] sm:$0xff]
        %v622 = vld [vmem:[%s616 + $0x20] sm:$0xf]
        %v623 = vld [vmem:[%s616 + $0x24] sm:$0xff]
        %v624 = vld [vmem:[%s616 + $0x2c] sm:$0xf]
        %v625 = vld [vmem:[%s616 + $0x30] sm:$0xff]
        %v626 = vld [vmem:[%s616 + $0x38] sm:$0xf]
        %v627 = vld [vmem:[%s616 + $0x3c] sm:$0xff]
        %v628 = vld [vmem:[%s616 + $0x44] sm:$0xf]
        %v629 = vld [vmem:[%s616 + $0x48] sm:$0xff]
        %v630 = vld [vmem:[%s616 + $0x50] sm:$0xf]
        %v631 = vld [vmem:[%s616 + $0x54] sm:$0xff]
        %v632 = vld [vmem:[%s616 + $0x5c] sm:$0xf]
        %v633 = vld [vmem:[%s616 + $0x60] sm:$0xff]
        %v634 = vld [vmem:[%s616 + $0x68] sm:$0xf]
        %v635 = vld [vmem:[%s616 + $0x6c] sm:$0xff]
        %v636 = vld [vmem:[%s616 + $0x74] sm:$0xf]
        %v637 = vld [vmem:[%s616 + $0x78] sm:$0xff]
        %v638 = vld [vmem:[%s616 + $0x80] sm:$0xf]
        %v639 = vld [vmem:[%s616 + $0x84] sm:$0xff]
        %v640 = vld [vmem:[%s616 + $0x8c] sm:$0xf]
        %v641 = vld [vmem:[%s616 + $0x90] sm:$0xff]
        %v642 = vld [vmem:[%s616 + $0x98] sm:$0xf]
        %v643 = vld [vmem:[%s616 + $0x9c] sm:$0xff]
        %v644 = vld [vmem:[%s616 + $0xa4] sm:$0xf]
        %v645 = vld [vmem:[%s616 + $0xa8] sm:$0xff]
        %v646 = vld [vmem:[%s616 + $0xb0] sm:$0xf]
        %v647 = vld [vmem:[%s616 + $0xb4] sm:$0xff]
        %v648 = vld [vmem:[%s616 + $0xbc] sm:$0xf]
        %v649 = vld [vmem:[%s616 + $0xc0] sm:$0xff]
        %v650 = vld [vmem:[%s616 + $0xc8] sm:$0xf]
        %v651 = vld [vmem:[%s616 + $0xcc] sm:$0xff]
        %v652 = vld [vmem:[%s616 + $0xd4] sm:$0xf]
        %v653 = vld [vmem:[%s616 + $0xd8] sm:$0xff]
        %v654 = vld [vmem:[%s616 + $0xe0] sm:$0xf]
        %v655 = vld [vmem:[%s616 + $0xe4] sm:$0xff]
        %v656 = vld [vmem:[%s616 + $0xec] sm:$0xf]
        %v657 = vld [vmem:[%s616 + $0xf0] sm:$0xff]
        %v658 = vld [vmem:[%s616 + $0xf8] sm:$0xf]
        %v659 = vld [vmem:[%s616 + $0xfc] sm:$0xff]
        %v660 = vld [vmem:[%s616 + $0x104] sm:$0xf]
        %v661 = vld [vmem:[%s616 + $0x108] sm:$0xff]
        %v662 = vld [vmem:[%s616 + $0x110] sm:$0xf]
        %v663 = vld [vmem:[%s616 + $0x114] sm:$0xff]
        %v664 = vld [vmem:[%s616 + $0x11c] sm:$0xf]
        %v665 = vld [vmem:[%s616 + $0x120] sm:$0xff]
        %v666 = vld [vmem:[%s616 + $0x128] sm:$0xf]
        %v667 = vld [vmem:[%s616 + $0x12c] sm:$0xff]
        %v668 = vld [vmem:[%s616 + $0x134] sm:$0xf]
        %v669 = vld [vmem:[%s616 + $0x138] sm:$0xff]
        %v670 = vld [vmem:[%s616 + $0x140] sm:$0xf]
        %v671 = vld [vmem:[%s616 + $0x144] sm:$0xff]
        %v672 = vld [vmem:[%s616 + $0x14c] sm:$0xf]
        %v673 = vld [vmem:[%s616 + $0x150] sm:$0xff]
        %v674 = vld [vmem:[%s616 + $0x158] sm:$0xf]
        %v675 = vld [vmem:[%s616 + $0x15c] sm:$0xff]
        %v676 = vld [vmem:[%s616 + $0x164] sm:$0xf]
        %v677 = vld [vmem:[%s616 + $0x168] sm:$0xff]
        %v678 = vld [vmem:[%s616 + $0x170] sm:$0xf]
        %v679 = vld [vmem:[%s616 + $0x174] sm:$0xff]
        %v680 = vld [vmem:[%s616 + $0x17c] sm:$0xf]
        %v681 = vld [vmem:[%s616 + $0x180] sm:$0xff]
        %v682 = vld [vmem:[%s616 + $0x188] sm:$0xf]
        %v683 = vld [vmem:[%s616 + $0x18c] sm:$0xff]
        %v684 = vld [vmem:[%s616 + $0x194] sm:$0xf]
        %v685 = vld [vmem:[%s616 + $0x198] sm:$0xff]
        %v686 = vld [vmem:[%s616 + $0x1a0] sm:$0xf]
        %v687 = vld [vmem:[%s616 + $0x1a4] sm:$0xff]
        %v688 = vld [vmem:[%s616 + $0x1ac] sm:$0xf]
        %v689 = vld [vmem:[%s616 + $0x1b0] sm:$0xff]
        %v690 = vld [vmem:[%s616 + $0x1b8] sm:$0xf]
        %v691 = vld [vmem:[%s616 + $0x1bc] sm:$0xff]
        %v692 = vld [vmem:[%s616 + $0x1c4] sm:$0xf]
        %v693 = vld [vmem:[%s616 + $0x1c8] sm:$0xff]
        %v694 = vld [vmem:[%s616 + $0x1d0] sm:$0xf]
        %v695 = vld [vmem:[%s616 + $0x1d4] sm:$0xff]
        %v696 = vld [vmem:[%s616 + $0x1dc] sm:$0xf]
        %v697 = vld [vmem:[%s616 + $0x1e0] sm:$0xff]
        %v698 = vld [vmem:[%s616 + $0x1e8] sm:$0xf]
        %v699 = vld [vmem:[%s616 + $0x1ec] sm:$0xff]
        %v700 = vld [vmem:[%s616 + $0x1f4] sm:$0xf]
        %v701 = vld [vmem:[%s616 + $0x1f8] sm:$0xff]
        %v702 = vld [vmem:[%s616 + $0x200] sm:$0xf]
        %v703 = vld [vmem:[%s616 + $0x204] sm:$0xff]
        %v704 = vld [vmem:[%s616 + $0x20c] sm:$0xf]
        %v705 = vld [vmem:[%s616 + $0x210] sm:$0xff]
        %v706 = vld [vmem:[%s616 + $0x218] sm:$0xf]
        %v707 = vld [vmem:[%s616 + $0x21c] sm:$0xff]
        %v708 = vld [vmem:[%s616 + $0x224] sm:$0xf]
        %v709 = vld [vmem:[%s616 + $0x228] sm:$0xff]
        %v710 = vld [vmem:[%s616 + $0x230] sm:$0xf]
        %v711 = vld [vmem:[%s616 + $0x234] sm:$0xff]
        %v712 = vld [vmem:[%s616 + $0x23c] sm:$0xf]
        %v713 = vld [vmem:[%s616 + $0x240] sm:$0xff]
        %v714 = vld [vmem:[%s616 + $0x248] sm:$0xf]
        %v715 = vld [vmem:[%s616 + $0x24c] sm:$0xff]
        %v716 = vld [vmem:[%s616 + $0x254] sm:$0xf]
        %v717 = vld [vmem:[%s616 + $0x258] sm:$0xff]
        %v718 = vld [vmem:[%s616 + $0x260] sm:$0xf]
        %v719 = vld [vmem:[%s616 + $0x264] sm:$0xff]
        %v720 = vld [vmem:[%s616 + $0x26c] sm:$0xf]
        %v721 = vld [vmem:[%s616 + $0x270] sm:$0xff]
        %v722 = vld [vmem:[%s616 + $0x278] sm:$0xf]
        %v723 = vld [vmem:[%s616 + $0x27c] sm:$0xff]
        %v724 = vld [vmem:[%s616 + $0x284] sm:$0xf]
        %v725 = vld [vmem:[%s616 + $0x288] sm:$0xff]
        %v726 = vld [vmem:[%s616 + $0x290] sm:$0xf]
        %v727 = vld [vmem:[%s616 + $0x294] sm:$0xff]
        %v728 = vld [vmem:[%s616 + $0x29c] sm:$0xf]
        %v729 = vld [vmem:[%s616 + $0x2a0] sm:$0xff]
        %v730 = vld [vmem:[%s616 + $0x2a8] sm:$0xf]
        %v731 = vld [vmem:[%s616 + $0x2ac] sm:$0xff]
        %v732 = vld [vmem:[%s616 + $0x2b4] sm:$0xf]
        %v733 = vld [vmem:[%s616 + $0x2b8] sm:$0xff]
        %v734 = vld [vmem:[%s616 + $0x2c0] sm:$0xf]
        %v735 = vld [vmem:[%s616 + $0x2c4] sm:$0xff]
        %v736 = vld [vmem:[%s616 + $0x2cc] sm:$0xf]
        %v737 = vld [vmem:[%s616 + $0x2d0] sm:$0xff]
        %v738 = vld [vmem:[%s616 + $0x2d8] sm:$0xf]
        %v739 = vld [vmem:[%s616 + $0x2dc] sm:$0xff]
        %v740 = vld [vmem:[%s616 + $0x2e4] sm:$0xf]
        %v741 = vld [vmem:[%s616 + $0x2e8] sm:$0xff]
        %v742 = vld [vmem:[%s616 + $0x2f0] sm:$0xf]
        %v743 = vld [vmem:[%s616 + $0x2f4] sm:$0xff]
        %v744 = vld [vmem:[%s616 + $0x2fc] sm:$0xf]
        %v745 = vld [vmem:[%s616 + $0x300] sm:$0xff]
        %v746 = vld [vmem:[%s616 + $0x308] sm:$0xf]
        %v747 = vld [vmem:[%s616 + $0x30c] sm:$0xff]
        %v748 = vld [vmem:[%s616 + $0x314] sm:$0xf]
        %v749 = vld [vmem:[%s616 + $0x318] sm:$0xff]
        %v750 = vld [vmem:[%s616 + $0x320] sm:$0xf]
        %v751 = vld [vmem:[%s616 + $0x324] sm:$0xff]
        %v752 = vld [vmem:[%s616 + $0x32c] sm:$0xf]
        %v753 = vld [vmem:[%s616 + $0x330] sm:$0xff]
        %v754 = vld [vmem:[%s616 + $0x338] sm:$0xf]
        %v755 = vld [vmem:[%s616 + $0x33c] sm:$0xff]
        %v756 = vld [vmem:[%s616 + $0x344] sm:$0xf]
        %v757 = vld [vmem:[%s616 + $0x348] sm:$0xff]
        %v758 = vld [vmem:[%s616 + $0x350] sm:$0xf]
        %v759 = vld [vmem:[%s616 + $0x354] sm:$0xff]
        %v760 = vld [vmem:[%s616 + $0x35c] sm:$0xf]
        %v761 = vld [vmem:[%s616 + $0x360] sm:$0xff]
        %v762 = vld [vmem:[%s616 + $0x368] sm:$0xf]
        %v763 = vld [vmem:[%s616 + $0x36c] sm:$0xff]
        %v764 = vld [vmem:[%s616 + $0x374] sm:$0xf]
        %v765 = vld [vmem:[%s616 + $0x378] sm:$0xff]
        %v766 = vld [vmem:[%s616 + $0x380] sm:$0xf]
        %v767 = vld [vmem:[%s616 + $0x384] sm:$0xff]
        %v768 = vld [vmem:[%s616 + $0x38c] sm:$0xf]
        %v769 = vld [vmem:[%s616 + $0x390] sm:$0xff]
        %v770 = vld [vmem:[%s616 + $0x398] sm:$0xf]
        %v771 = vld [vmem:[%s616 + $0x39c] sm:$0xff]
        %v772 = vld [vmem:[%s616 + $0x3a4] sm:$0xf]
        %v773 = vld [vmem:[%s616 + $0x3a8] sm:$0xff]
        %v774 = vld [vmem:[%s616 + $0x3b0] sm:$0xf]
        %v775 = vld [vmem:[%s616 + $0x3b4] sm:$0xff]
        %v776 = vld [vmem:[%s616 + $0x3bc] sm:$0xf]
        %v777 = vld [vmem:[%s616 + $0x3c0] sm:$0xff]
        %v778 = vld [vmem:[%s616 + $0x3c8] sm:$0xf]
        %v779 = vld [vmem:[%s616 + $0x3cc] sm:$0xff]
        %v780 = vld [vmem:[%s616 + $0x3d4] sm:$0xf]
        %v781 = vld [vmem:[%s616 + $0x3d8] sm:$0xff]
        %v782 = vld [vmem:[%s616 + $0x3e0] sm:$0xf]
        %v783 = vld [vmem:[%s616 + $0x3e4] sm:$0xff]
        %v784 = vld [vmem:[%s616 + $0x3ec] sm:$0xf]
        %v785 = vld [vmem:[%s616 + $0x3f0] sm:$0xff]
        %v786 = vld [vmem:[%s616 + $0x3f8] sm:$0xf]
        %v787 = vld [vmem:[%s616 + $0x3fc] sm:$0xff]
        %v788 = vld [vmem:[%s616 + $0x404] sm:$0xf]
        %v789 = vld [vmem:[%s616 + $0x408] sm:$0xff]
        %v790 = vld [vmem:[%s616 + $0x410] sm:$0xf]
        %v791 = vld [vmem:[%s616 + $0x414] sm:$0xff]
        %v792 = vld [vmem:[%s616 + $0x41c] sm:$0xf]
        %v793 = vld [vmem:[%s616 + $0x420] sm:$0xff]
        %v794 = vld [vmem:[%s616 + $0x428] sm:$0xf]
        %v795 = vld [vmem:[%s616 + $0x42c] sm:$0xff]
        %v796 = vld [vmem:[%s616 + $0x434] sm:$0xf]
        %v797 = vld [vmem:[%s616 + $0x438] sm:$0xff]
        %v798 = vld [vmem:[%s616 + $0x440] sm:$0xf]
        %v799 = vld [vmem:[%s616 + $0x444] sm:$0xff]
        %v800 = vld [vmem:[%s616 + $0x44c] sm:$0xf]
        %v801 = vld [vmem:[%s616 + $0x450] sm:$0xff]
        %v802 = vld [vmem:[%s616 + $0x458] sm:$0xf]
        %v803 = vld [vmem:[%s616 + $0x45c] sm:$0xff]
        %v804 = vld [vmem:[%s616 + $0x464] sm:$0xf]
        %v805 = vld [vmem:[%s616 + $0x468] sm:$0xff]
        %v806 = vld [vmem:[%s616 + $0x470] sm:$0xf]
        %v807 = vld [vmem:[%s616 + $0x474] sm:$0xff]
        %v808 = vld [vmem:[%s616 + $0x47c] sm:$0xf]
        %v1001 = vunpack.c.l.b16 %v617
        %v1002 = vunpack.c.h.b16 %v617
        %v1003 = vunpack.c.l.b16 %v618
        %v1004 = vunpack.c.l.b16 %v619
        %v1005 = vunpack.c.h.b16 %v619
        %v1006 = vunpack.c.l.b16 %v620
        %v1007 = vunpack.c.l.b16 %v621
        %v1008 = vunpack.c.h.b16 %v621
        %v1009 = vunpack.c.l.b16 %v622
        %v1010 = vunpack.c.l.b16 %v623
        %v1011 = vunpack.c.h.b16 %v623
        %v1012 = vunpack.c.l.b16 %v624
        %v1013 = vunpack.c.l.b16 %v625
        %v1014 = vunpack.c.h.b16 %v625
        %v1015 = vunpack.c.l.b16 %v626
        %v1016 = vunpack.c.l.b16 %v627
        %v1017 = vunpack.c.h.b16 %v627
        %v1018 = vunpack.c.l.b16 %v628
        %v1019 = vunpack.c.l.b16 %v629
        %v1020 = vunpack.c.h.b16 %v629
        %v1021 = vunpack.c.l.b16 %v630
        %v1022 = vunpack.c.l.b16 %v631
        %v1023 = vunpack.c.h.b16 %v631
        %v1024 = vunpack.c.l.b16 %v632
        %v1025 = vunpack.c.l.b16 %v633
        %v1026 = vunpack.c.h.b16 %v633
        %v1027 = vunpack.c.l.b16 %v634
        %v1028 = vunpack.c.l.b16 %v635
        %v1029 = vunpack.c.h.b16 %v635
        %v1030 = vunpack.c.l.b16 %v636
        %v1031 = vunpack.c.l.b16 %v637
        %v1032 = vunpack.c.h.b16 %v637
        %v1033 = vunpack.c.l.b16 %v638
        %v1034 = vunpack.c.l.b16 %v639
        %v1035 = vunpack.c.h.b16 %v639
        %v1036 = vunpack.c.l.b16 %v640
        %v1037 = vunpack.c.l.b16 %v641
        %v1038 = vunpack.c.h.b16 %v641
        %v1039 = vunpack.c.l.b16 %v642
        %v1040 = vunpack.c.l.b16 %v643
        %v1041 = vunpack.c.h.b16 %v643
        %v1042 = vunpack.c.l.b16 %v644
        %v1043 = vunpack.c.l.b16 %v645
        %v1044 = vunpack.c.h.b16 %v645
        %v1045 = vunpack.c.l.b16 %v646
        %v1046 = vunpack.c.l.b16 %v647
        %v1047 = vunpack.c.h.b16 %v647
        %v1048 = vunpack.c.l.b16 %v648
        %v1049 = vunpack.c.l.b16 %v649
        %v1050 = vunpack.c.h.b16 %v649
        %v1051 = vunpack.c.l.b16 %v650
        %v1052 = vunpack.c.l.b16 %v651
        %v1053 = vunpack.c.h.b16 %v651
        %v1054 = vunpack.c.l.b16 %v652
        %v1055 = vunpack.c.l.b16 %v653
        %v1056 = vunpack.c.h.b16 %v653
        %v1057 = vunpack.c.l.b16 %v654
        %v1058 = vunpack.c.l.b16 %v655
        %v1059 = vunpack.c.h.b16 %v655
        %v1060 = vunpack.c.l.b16 %v656
        %v1061 = vunpack.c.l.b16 %v657
        %v1062 = vunpack.c.h.b16 %v657
        %v1063 = vunpack.c.l.b16 %v658
        %v1064 = vunpack.c.l.b16 %v659
        %v1065 = vunpack.c.h.b16 %v659
        %v1066 = vunpack.c.l.b16 %v660
        %v1067 = vunpack.c.l.b16 %v661
        %v1068 = vunpack.c.h.b16 %v661
        %v1069 = vunpack.c.l.b16 %v662
        %v1070 = vunpack.c.l.b16 %v663
        %v1071 = vunpack.c.h.b16 %v663
        %v1072 = vunpack.c.l.b16 %v664
        %v1073 = vunpack.c.l.b16 %v665
        %v1074 = vunpack.c.h.b16 %v665
        %v1075 = vunpack.c.l.b16 %v666
        %v1076 = vunpack.c.l.b16 %v667
        %v1077 = vunpack.c.h.b16 %v667
        %v1078 = vunpack.c.l.b16 %v668
        %v1079 = vunpack.c.l.b16 %v669
        %v1080 = vunpack.c.h.b16 %v669
        %v1081 = vunpack.c.l.b16 %v670
        %v1082 = vunpack.c.l.b16 %v671
        %v1083 = vunpack.c.h.b16 %v671
        %v1084 = vunpack.c.l.b16 %v672
        %v1085 = vunpack.c.l.b16 %v673
        %v1086 = vunpack.c.h.b16 %v673
        %v1087 = vunpack.c.l.b16 %v674
        %v1088 = vunpack.c.l.b16 %v675
        %v1089 = vunpack.c.h.b16 %v675
        %v1090 = vunpack.c.l.b16 %v676
        %v1091 = vunpack.c.l.b16 %v677
        %v1092 = vunpack.c.h.b16 %v677
        %v1093 = vunpack.c.l.b16 %v678
        %v1094 = vunpack.c.l.b16 %v679
        %v1095 = vunpack.c.h.b16 %v679
        %v1096 = vunpack.c.l.b16 %v680
        %v1097 = vunpack.c.l.b16 %v681
        %v1098 = vunpack.c.h.b16 %v681
        %v1099 = vunpack.c.l.b16 %v682
        %v1100 = vunpack.c.l.b16 %v683
        %v1101 = vunpack.c.h.b16 %v683
        %v1102 = vunpack.c.l.b16 %v684
        %v1103 = vunpack.c.l.b16 %v685
        %v1104 = vunpack.c.h.b16 %v685
        %v1105 = vunpack.c.l.b16 %v686
        %v1106 = vunpack.c.l.b16 %v687
        %v1107 = vunpack.c.h.b16 %v687
        %v1108 = vunpack.c.l.b16 %v688
        %v1109 = vunpack.c.l.b16 %v689
        %v1110 = vunpack.c.h.b16 %v689
        %v1111 = vunpack.c.l.b16 %v690
        %v1112 = vunpack.c.l.b16 %v691
        %v1113 = vunpack.c.h.b16 %v691
        %v1114 = vunpack.c.l.b16 %v692
        %v1115 = vunpack.c.l.b16 %v693
        %v1116 = vunpack.c.h.b16 %v693
        %v1117 = vunpack.c.l.b16 %v694
        %v1118 = vunpack.c.l.b16 %v695
        %v1119 = vunpack.c.h.b16 %v695
        %v1120 = vunpack.c.l.b16 %v696
        %v1121 = vunpack.c.l.b16 %v697
        %v1122 = vunpack.c.h.b16 %v697
        %v1123 = vunpack.c.l.b16 %v698
        %v1124 = vunpack.c.l.b16 %v699
        %v1125 = vunpack.c.h.b16 %v699
        %v1126 = vunpack.c.l.b16 %v700
        %v1127 = vunpack.c.l.b16 %v701
        %v1128 = vunpack.c.h.b16 %v701
        %v1129 = vunpack.c.l.b16 %v702
        %v1130 = vunpack.c.l.b16 %v703
        %v1131 = vunpack.c.h.b16 %v703
        %v1132 = vunpack.c.l.b16 %v704
        %v1133 = vunpack.c.l.b16 %v705
        %v1134 = vunpack.c.h.b16 %v705
        %v1135 = vunpack.c.l.b16 %v706
        %v1136 = vunpack.c.l.b16 %v707
        %v1137 = vunpack.c.h.b16 %v707
        %v1138 = vunpack.c.l.b16 %v708
        %v1139 = vunpack.c.l.b16 %v709
        %v1140 = vunpack.c.h.b16 %v709
        %v1141 = vunpack.c.l.b16 %v710
        %v1142 = vunpack.c.l.b16 %v711
        %v1143 = vunpack.c.h.b16 %v711
        %v1144 = vunpack.c.l.b16 %v712
        %v1145 = vunpack.c.l.b16 %v713
        %v1146 = vunpack.c.h.b16 %v713
        %v1147 = vunpack.c.l.b16 %v714
        %v1148 = vunpack.c.l.b16 %v715
        %v1149 = vunpack.c.h.b16 %v715
        %v1150 = vunpack.c.l.b16 %v716
        %v1151 = vunpack.c.l.b16 %v717
        %v1152 = vunpack.c.h.b16 %v717
        %v1153 = vunpack.c.l.b16 %v718
        %v1154 = vunpack.c.l.b16 %v719
        %v1155 = vunpack.c.h.b16 %v719
        %v1156 = vunpack.c.l.b16 %v720
        %v1157 = vunpack.c.l.b16 %v721
        %v1158 = vunpack.c.h.b16 %v721
        %v1159 = vunpack.c.l.b16 %v722
        %v1160 = vunpack.c.l.b16 %v723
        %v1161 = vunpack.c.h.b16 %v723
        %v1162 = vunpack.c.l.b16 %v724
        %v1163 = vunpack.c.l.b16 %v725
        %v1164 = vunpack.c.h.b16 %v725
        %v1165 = vunpack.c.l.b16 %v726
        %v1166 = vunpack.c.l.b16 %v727
        %v1167 = vunpack.c.h.b16 %v727
        %v1168 = vunpack.c.l.b16 %v728
        %v1169 = vunpack.c.l.b16 %v729
        %v1170 = vunpack.c.h.b16 %v729
        %v1171 = vunpack.c.l.b16 %v730
        %v1172 = vunpack.c.l.b16 %v731
        %v1173 = vunpack.c.h.b16 %v731
        %v1174 = vunpack.c.l.b16 %v732
        %v1175 = vunpack.c.l.b16 %v733
        %v1176 = vunpack.c.h.b16 %v733
        %v1177 = vunpack.c.l.b16 %v734
        %v1178 = vunpack.c.l.b16 %v735
        %v1179 = vunpack.c.h.b16 %v735
        %v1180 = vunpack.c.l.b16 %v736
        %v1181 = vunpack.c.l.b16 %v737
        %v1182 = vunpack.c.h.b16 %v737
        %v1183 = vunpack.c.l.b16 %v738
        %v1184 = vunpack.c.l.b16 %v739
        %v1185 = vunpack.c.h.b16 %v739
        %v1186 = vunpack.c.l.b16 %v740
        %v1187 = vunpack.c.l.b16 %v741
        %v1188 = vunpack.c.h.b16 %v741
        %v1189 = vunpack.c.l.b16 %v742
        %v1190 = vunpack.c.l.b16 %v743
        %v1191 = vunpack.c.h.b16 %v743
        %v1192 = vunpack.c.l.b16 %v744
        %v1193 = vunpack.c.l.b16 %v745
        %v1194 = vunpack.c.h.b16 %v745
        %v1195 = vunpack.c.l.b16 %v746
        %v1196 = vunpack.c.l.b16 %v747
        %v1197 = vunpack.c.h.b16 %v747
        %v1198 = vunpack.c.l.b16 %v748
        %v1199 = vunpack.c.l.b16 %v749
        %v1200 = vunpack.c.h.b16 %v749
        %v1201 = vunpack.c.l.b16 %v750
        %v1202 = vunpack.c.l.b16 %v751
        %v1203 = vunpack.c.h.b16 %v751
        %v1204 = vunpack.c.l.b16 %v752
        %v1205 = vunpack.c.l.b16 %v753
        %v1206 = vunpack.c.h.b16 %v753
        %v1207 = vunpack.c.l.b16 %v754
        %v1208 = vunpack.c.l.b16 %v755
        %v1209 = vunpack.c.h.b16 %v755
        %v1210 = vunpack.c.l.b16 %v756
        %v1211 = vunpack.c.l.b16 %v757
        %v1212 = vunpack.c.h.b16 %v757
        %v1213 = vunpack.c.l.b16 %v758
        %v1214 = vunpack.c.l.b16 %v759
        %v1215 = vunpack.c.h.b16 %v759
        %v1216 = vunpack.c.l.b16 %v760
        %v1217 = vunpack.c.l.b16 %v761
        %v1218 = vunpack.c.h.b16 %v761
        %v1219 = vunpack.c.l.b16 %v762
        %v1220 = vunpack.c.l.b16 %v763
        %v1221 = vunpack.c.h.b16 %v763
        %v1222 = vunpack.c.l.b16 %v764
        %v1223 = vunpack.c.l.b16 %v765
        %v1224 = vunpack.c.h.b16 %v765
        %v1225 = vunpack.c.l.b16 %v766
        %v1226 = vunpack.c.l.b16 %v767
        %v1227 = vunpack.c.h.b16 %v767
        %v1228 = vunpack.c.l.b16 %v768
        %v1229 = vunpack.c.l.b16 %v769
        %v1230 = vunpack.c.h.b16 %v769
        %v1231 = vunpack.c.l.b16 %v770
        %v1232 = vunpack.c.l.b16 %v771
        %v1233 = vunpack.c.h.b16 %v771
        %v1234 = vunpack.c.l.b16 %v772
        %v1235 = vunpack.c.l.b16 %v773
        %v1236 = vunpack.c.h.b16 %v773
        %v1237 = vunpack.c.l.b16 %v774
        %v1238 = vunpack.c.l.b16 %v775
        %v1239 = vunpack.c.h.b16 %v775
        %v1240 = vunpack.c.l.b16 %v776
        %v1241 = vunpack.c.l.b16 %v777
        %v1242 = vunpack.c.h.b16 %v777
        %v1243 = vunpack.c.l.b16 %v778
        %v1244 = vunpack.c.l.b16 %v779
        %v1245 = vunpack.c.h.b16 %v779
        %v1246 = vunpack.c.l.b16 %v780
        %v1247 = vunpack.c.l.b16 %v781
        %v1248 = vunpack.c.h.b16 %v781
        %v1249 = vunpack.c.l.b16 %v782
        %v1250 = vunpack.c.l.b16 %v783
        %v1251 = vunpack.c.h.b16 %v783
        %v1252 = vunpack.c.l.b16 %v784
        %v1253 = vunpack.c.l.b16 %v785
        %v1254 = vunpack.c.h.b16 %v785
        %v1255 = vunpack.c.l.b16 %v786
        %v1256 = vunpack.c.l.b16 %v787
        %v1257 = vunpack.c.h.b16 %v787
        %v1258 = vunpack.c.l.b16 %v788
        %v1259 = vunpack.c.l.b16 %v789
        %v1260 = vunpack.c.h.b16 %v789
        %v1261 = vunpack.c.l.b16 %v790
        %v1262 = vunpack.c.l.b16 %v791
        %v1263 = vunpack.c.h.b16 %v791
        %v1264 = vunpack.c.l.b16 %v792
        %v1265 = vunpack.c.l.b16 %v793
        %v1266 = vunpack.c.h.b16 %v793
        %v1267 = vunpack.c.l.b16 %v794
        %v1268 = vunpack.c.l.b16 %v795
        %v1269 = vunpack.c.h.b16 %v795
        %v1270 = vunpack.c.l.b16 %v796
        %v1271 = vunpack.c.l.b16 %v797
        %v1272 = vunpack.c.h.b16 %v797
        %v1273 = vunpack.c.l.b16 %v798
        %v1274 = vunpack.c.l.b16 %v799
        %v1275 = vunpack.c.h.b16 %v799
        %v1276 = vunpack.c.l.b16 %v800
        %v1277 = vunpack.c.l.b16 %v801
        %v1278 = vunpack.c.h.b16 %v801
        %v1279 = vunpack.c.l.b16 %v802
        %v1280 = vunpack.c.l.b16 %v803
        %v1281 = vunpack.c.h.b16 %v803
        %v1282 = vunpack.c.l.b16 %v804
        %v1283 = vunpack.c.l.b16 %v805
        %v1284 = vunpack.c.h.b16 %v805
        %v1285 = vunpack.c.l.b16 %v806
        %v1286 = vunpack.c.l.b16 %v807
        %v1287 = vunpack.c.h.b16 %v807
        %v1288 = vunpack.c.l.b16 %v808
        %v1289 = vpack.c.b16 %v1004, %v1001
        %v1290 = vpack.c.b16 %v1005, %v1002
        %v1291 = vpack.c.b16 %v1006, %v1003
        %v1292 = vpack.c.b16 %v1010, %v1007
        %v1293 = vpack.c.b16 %v1011, %v1008
        %v1294 = vpack.c.b16 %v1012, %v1009
        %v1295 = vpack.c.b16 %v1016, %v1013
        %v1296 = vpack.c.b16 %v1017, %v1014
        %v1297 = vpack.c.b16 %v1018, %v1015
        %v1298 = vpack.c.b16 %v1022, %v1019
        %v1299 = vpack.c.b16 %v1023, %v1020
        %v1300 = vpack.c.b16 %v1024, %v1021
        %v1301 = vpack.c.b16 %v1028, %v1025
        %v1302 = vpack.c.b16 %v1029, %v1026
        %v1303 = vpack.c.b16 %v1030, %v1027
        %v1304 = vpack.c.b16 %v1034, %v1031
        %v1305 = vpack.c.b16 %v1035, %v1032
        %v1306 = vpack.c.b16 %v1036, %v1033
        %v1307 = vpack.c.b16 %v1040, %v1037
        %v1308 = vpack.c.b16 %v1041, %v1038
        %v1309 = vpack.c.b16 %v1042, %v1039
        %v1310 = vpack.c.b16 %v1046, %v1043
        %v1311 = vpack.c.b16 %v1047, %v1044
        %v1312 = vpack.c.b16 %v1048, %v1045
        %v1313 = vpack.c.b16 %v1052, %v1049
        %v1314 = vpack.c.b16 %v1053, %v1050
        %v1315 = vpack.c.b16 %v1054, %v1051
        %v1316 = vpack.c.b16 %v1058, %v1055
        %v1317 = vpack.c.b16 %v1059, %v1056
        %v1318 = vpack.c.b16 %v1060, %v1057
        %v1319 = vpack.c.b16 %v1064, %v1061
        %v1320 = vpack.c.b16 %v1065, %v1062
        %v1321 = vpack.c.b16 %v1066, %v1063
        %v1322 = vpack.c.b16 %v1070, %v1067
        %v1323 = vpack.c.b16 %v1071, %v1068
        %v1324 = vpack.c.b16 %v1072, %v1069
        %v1325 = vpack.c.b16 %v1076, %v1073
        %v1326 = vpack.c.b16 %v1077, %v1074
        %v1327 = vpack.c.b16 %v1078, %v1075
        %v1328 = vpack.c.b16 %v1082, %v1079
        %v1329 = vpack.c.b16 %v1083, %v1080
        %v1330 = vpack.c.b16 %v1084, %v1081
        %v1331 = vpack.c.b16 %v1088, %v1085
        %v1332 = vpack.c.b16 %v1089, %v1086
        %v1333 = vpack.c.b16 %v1090, %v1087
        %v1334 = vpack.c.b16 %v1094, %v1091
        %v1335 = vpack.c.b16 %v1095, %v1092
        %v1336 = vpack.c.b16 %v1096, %v1093
        %v1337 = vpack.c.b16 %v1100, %v1097
        %v1338 = vpack.c.b16 %v1101, %v1098
        %v1339 = vpack.c.b16 %v1102, %v1099
        %v1340 = vpack.c.b16 %v1106, %v1103
        %v1341 = vpack.c.b16 %v1107, %v1104
        %v1342 = vpack.c.b16 %v1108, %v1105
        %v1343 = vpack.c.b16 %v1112, %v1109
        %v1344 = vpack.c.b16 %v1113, %v1110
        %v1345 = vpack.c.b16 %v1114, %v1111
        %v1346 = vpack.c.b16 %v1118, %v1115
        %v1347 = vpack.c.b16 %v1119, %v1116
        %v1348 = vpack.c.b16 %v1120, %v1117
        %v1349 = vpack.c.b16 %v1124, %v1121
        %v1350 = vpack.c.b16 %v1125, %v1122
        %v1351 = vpack.c.b16 %v1126, %v1123
        %v1352 = vpack.c.b16 %v1130, %v1127
        %v1353 = vpack.c.b16 %v1131, %v1128
        %v1354 = vpack.c.b16 %v1132, %v1129
        %v1355 = vpack.c.b16 %v1136, %v1133
        %v1356 = vpack.c.b16 %v1137, %v1134
        %v1357 = vpack.c.b16 %v1138, %v1135
        %v1358 = vpack.c.b16 %v1142, %v1139
        %v1359 = vpack.c.b16 %v1143, %v1140
        %v1360 = vpack.c.b16 %v1144, %v1141
        %v1361 = vpack.c.b16 %v1148, %v1145
        %v1362 = vpack.c.b16 %v1149, %v1146
        %v1363 = vpack.c.b16 %v1150, %v1147
        %v1364 = vpack.c.b16 %v1154, %v1151
        %v1365 = vpack.c.b16 %v1155, %v1152
        %v1366 = vpack.c.b16 %v1156, %v1153
        %v1367 = vpack.c.b16 %v1160, %v1157
        %v1368 = vpack.c.b16 %v1161, %v1158
        %v1369 = vpack.c.b16 %v1162, %v1159
        %v1370 = vpack.c.b16 %v1166, %v1163
        %v1371 = vpack.c.b16 %v1167, %v1164
        %v1372 = vpack.c.b16 %v1168, %v1165
        %v1373 = vpack.c.b16 %v1172, %v1169
        %v1374 = vpack.c.b16 %v1173, %v1170
        %v1375 = vpack.c.b16 %v1174, %v1171
        %v1376 = vpack.c.b16 %v1178, %v1175
        %v1377 = vpack.c.b16 %v1179, %v1176
        %v1378 = vpack.c.b16 %v1180, %v1177
        %v1379 = vpack.c.b16 %v1184, %v1181
        %v1380 = vpack.c.b16 %v1185, %v1182
        %v1381 = vpack.c.b16 %v1186, %v1183
        %v1382 = vpack.c.b16 %v1190, %v1187
        %v1383 = vpack.c.b16 %v1191, %v1188
        %v1384 = vpack.c.b16 %v1192, %v1189
        %v1385 = vpack.c.b16 %v1196, %v1193
        %v1386 = vpack.c.b16 %v1197, %v1194
        %v1387 = vpack.c.b16 %v1198, %v1195
        %v1388 = vpack.c.b16 %v1202, %v1199
        %v1389 = vpack.c.b16 %v1203, %v1200
        %v1390 = vpack.c.b16 %v1204, %v1201
        %v1391 = vpack.c.b16 %v1208, %v1205
        %v1392 = vpack.c.b16 %v1209, %v1206
        %v1393 = vpack.c.b16 %v1210, %v1207
        %v1394 = vpack.c.b16 %v1214, %v1211
        %v1395 = vpack.c.b16 %v1215, %v1212
        %v1396 = vpack.c.b16 %v1216, %v1213
        %v1397 = vpack.c.b16 %v1220, %v1217
        %v1398 = vpack.c.b16 %v1221, %v1218
        %v1399 = vpack.c.b16 %v1222, %v1219
        %v1400 = vpack.c.b16 %v1226, %v1223
        %v1401 = vpack.c.b16 %v1227, %v1224
        %v1402 = vpack.c.b16 %v1228, %v1225
        %v1403 = vpack.c.b16 %v1232, %v1229
        %v1404 = vpack.c.b16 %v1233, %v1230
        %v1405 = vpack.c.b16 %v1234, %v1231
        %v1406 = vpack.c.b16 %v1238, %v1235
        %v1407 = vpack.c.b16 %v1239, %v1236
        %v1408 = vpack.c.b16 %v1240, %v1237
        %v1409 = vpack.c.b16 %v1244, %v1241
        %v1410 = vpack.c.b16 %v1245, %v1242
        %v1411 = vpack.c.b16 %v1246, %v1243
        %v1412 = vpack.c.b16 %v1250, %v1247
        %v1413 = vpack.c.b16 %v1251, %v1248
        %v1414 = vpack.c.b16 %v1252, %v1249
        %v1415 = vpack.c.b16 %v1256, %v1253
        %v1416 = vpack.c.b16 %v1257, %v1254
        %v1417 = vpack.c.b16 %v1258, %v1255
        %v1418 = vpack.c.b16 %v1262, %v1259
        %v1419 = vpack.c.b16 %v1263, %v1260
        %v1420 = vpack.c.b16 %v1264, %v1261
        %v1421 = vpack.c.b16 %v1268, %v1265
        %v1422 = vpack.c.b16 %v1269, %v1266
        %v1423 = vpack.c.b16 %v1270, %v1267
        %v1424 = vpack.c.b16 %v1274, %v1271
        %v1425 = vpack.c.b16 %v1275, %v1272
        %v1426 = vpack.c.b16 %v1276, %v1273
        %v1427 = vpack.c.b16 %v1280, %v1277
        %v1428 = vpack.c.b16 %v1281, %v1278
        %v1429 = vpack.c.b16 %v1282, %v1279
        %v1430 = vpack.c.b16 %v1286, %v1283
        %v1431 = vpack.c.b16 %v1287, %v1284
        %v1432 = vpack.c.b16 %v1288, %v1285
        %1577 = vmatprep.subr.bf16.mxu0 %v1290
        %1578 = vmatpush1.bf16.msra.mxu0 %v1289
        %1579 = vmatprep.subr.bf16.mxu0 %v1293
        %1580 = vmatpush1.bf16.msra.mxu0 %v1292
        %1581 = vmatprep.subr.bf16.mxu0 %v1296
        %1582 = vmatpush1.bf16.msra.mxu0 %v1295
        %1583 = vmatprep.subr.bf16.mxu0 %v1299
        %1584 = vmatpush1.bf16.msra.mxu0 %v1298
        %1585 = vmatprep.subr.bf16.mxu0 %v1302
        %1586 = vmatpush1.bf16.msra.mxu0 %v1301
        %1587 = vmatprep.subr.bf16.mxu0 %v1305
        %1588 = vmatpush1.bf16.msra.mxu0 %v1304
        %1589 = vmatprep.subr.bf16.mxu0 %v1308
        %1590 = vmatpush1.bf16.msra.mxu0 %v1307
        %1591 = vmatprep.subr.bf16.mxu0 %v1311
        %1592 = vmatpush1.bf16.msra.mxu0 %v1310
        %1593 = vmatprep.subr.bf16.mxu0 %v1314
        %1594 = vmatpush1.bf16.msra.mxu0 %v1313
        %1595 = vmatprep.subr.bf16.mxu0 %v1317
        %1596 = vmatpush1.bf16.msra.mxu0 %v1316
        %1597 = vmatprep.subr.bf16.mxu0 %v1320
        %1598 = vmatpush1.bf16.msra.mxu0 %v1319
        %1599 = vmatprep.subr.bf16.mxu0 %v1323
        %1600 = vmatpush1.bf16.msra.mxu0 %v1322
        %1601 = vmatprep.subr.bf16.mxu0 %v1326
        %1602 = vmatpush1.bf16.msra.mxu0 %v1325
        %1603 = vmatprep.subr.bf16.mxu0 %v1329
        %1604 = vmatpush1.bf16.msra.mxu0 %v1328
        %1605 = vmatprep.subr.bf16.mxu0 %v1332
        %1606 = vmatpush1.bf16.msra.mxu0 %v1331
        %1607 = vmatprep.subr.bf16.mxu0 %v1335
        %1608 = vmatpush1.bf16.msra.mxu0 %v1334
        %1609 = vmatprep.mubr.bf16.mxu0 %v611
        %1610 = vmatmul.mubr.bf16.gmra.mrb[0].mxu0 %v610
        %v1611 = vpop.f32.mrb[0].mxu0
        %v1612 = vadd.f32 0.0, %v1611
        %v1613 = vpop.f32.mrb[0].mxu0
        %v1614 = vadd.f32 0.0, %v1613
        %v1615 = vpop.f32.mrb[0].mxu0
        %v1616 = vpop.f32.mrb[0].mxu0
        %1617 = vdwg.mxu0
        %1618 = vmatprep.subr.bf16.mxu0 %v1338
        %1619 = vmatpush1.bf16.msra.mxu0 %v1337
        %1620 = vmatprep.subr.bf16.mxu0 %v1341
        %1621 = vmatpush1.bf16.msra.mxu0 %v1340
        %1622 = vmatprep.subr.bf16.mxu0 %v1344
        %1623 = vmatpush1.bf16.msra.mxu0 %v1343
        %1624 = vmatprep.subr.bf16.mxu0 %v1347
        %1625 = vmatpush1.bf16.msra.mxu0 %v1346
        %1626 = vmatprep.subr.bf16.mxu0 %v1350
        %1627 = vmatpush1.bf16.msra.mxu0 %v1349
        %1628 = vmatprep.subr.bf16.mxu0 %v1353
        %1629 = vmatpush1.bf16.msra.mxu0 %v1352
        %1630 = vmatprep.subr.bf16.mxu0 %v1356
        %1631 = vmatpush1.bf16.msra.mxu0 %v1355
        %1632 = vmatprep.subr.bf16.mxu0 %v1359
        %1633 = vmatpush1.bf16.msra.mxu0 %v1358
        %1634 = vmatprep.subr.bf16.mxu0 %v1362
        %1635 = vmatpush1.bf16.msra.mxu0 %v1361
        %1636 = vmatprep.subr.bf16.mxu0 %v1365
        %1637 = vmatpush1.bf16.msra.mxu0 %v1364
        %1638 = vmatprep.subr.bf16.mxu0 %v1368
        %1639 = vmatpush1.bf16.msra.mxu0 %v1367
        %1640 = vmatprep.subr.bf16.mxu0 %v1371
        %1641 = vmatpush1.bf16.msra.mxu0 %v1370
        %1642 = vmatprep.subr.bf16.mxu0 %v1374
        %1643 = vmatpush1.bf16.msra.mxu0 %v1373
        %1644 = vmatprep.subr.bf16.mxu0 %v1377
        %1645 = vmatpush1.bf16.msra.mxu0 %v1376
        %1646 = vmatprep.subr.bf16.mxu0 %v1380
        %1647 = vmatpush1.bf16.msra.mxu0 %v1379
        %1648 = vmatprep.subr.bf16.mxu0 %v1383
        %1649 = vmatpush1.bf16.msra.mxu0 %v1382
        %1650 = vmatprep.mubr.bf16.mxu0 %v613
        %1651 = vmatmul.mubr.bf16.gmra.mrb[0].mxu0 %v612
        %v1652 = vpop.f32.mrb[0].mxu0
        %v1653 = vadd.f32 %v1612, %v1652
        %v1654 = vpop.f32.mrb[0].mxu0
        %v1655 = vadd.f32 %v1614, %v1654
        %v1656 = vpop.f32.mrb[0].mxu0
        %v1657 = vpop.f32.mrb[0].mxu0
        %1658 = vdwg.mxu0
        %1659 = vmatprep.subr.bf16.mxu0 %v1386
        %1660 = vmatpush1.bf16.msra.mxu0 %v1385
        %1661 = vmatprep.subr.bf16.mxu0 %v1389
        %1662 = vmatpush1.bf16.msra.mxu0 %v1388
        %1663 = vmatprep.subr.bf16.mxu0 %v1392
        %1664 = vmatpush1.bf16.msra.mxu0 %v1391
        %1665 = vmatprep.subr.bf16.mxu0 %v1395
        %1666 = vmatpush1.bf16.msra.mxu0 %v1394
        %1667 = vmatprep.subr.bf16.mxu0 %v1398
        %1668 = vmatpush1.bf16.msra.mxu0 %v1397
        %1669 = vmatprep.subr.bf16.mxu0 %v1401
        %1670 = vmatpush1.bf16.msra.mxu0 %v1400
        %1671 = vmatprep.subr.bf16.mxu0 %v1404
        %1672 = vmatpush1.bf16.msra.mxu0 %v1403
        %1673 = vmatprep.subr.bf16.mxu0 %v1407
        %1674 = vmatpush1.bf16.msra.mxu0 %v1406
        %1675 = vmatprep.subr.bf16.mxu0 %v1410
        %1676 = vmatpush1.bf16.msra.mxu0 %v1409
        %1677 = vmatprep.subr.bf16.mxu0 %v1413
        %1678 = vmatpush1.bf16.msra.mxu0 %v1412
        %1679 = vmatprep.subr.bf16.mxu0 %v1416
        %1680 = vmatpush1.bf16.msra.mxu0 %v1415
        %1681 = vmatprep.subr.bf16.mxu0 %v1419
        %1682 = vmatpush1.bf16.msra.mxu0 %v1418
        %1683 = vmatprep.subr.bf16.mxu0 %v1422
        %1684 = vmatpush1.bf16.msra.mxu0 %v1421
        %1685 = vmatprep.subr.bf16.mxu0 %v1425
        %1686 = vmatpush1.bf16.msra.mxu0 %v1424
        %1687 = vmatprep.subr.bf16.mxu0 %v1428
        %1688 = vmatpush1.bf16.msra.mxu0 %v1427
        %1689 = vmatprep.subr.bf16.mxu0 %v1431
        %1690 = vmatpush1.bf16.msra.mxu0 %v1430
        %1691 = vmatprep.mubr.bf16.mxu0 %v615
        %1692 = vmatmul.mubr.bf16.gmra.mrb[0].mxu0 %v614
        %v1693 = vpop.f32.mrb[0].mxu0
        %v1694 = vadd.f32 %v1653, %v1693
        %v1695 = vpop.f32.mrb[0].mxu0
        %v1696 = vadd.f32 %v1655, %v1695
        %v1697 = vpop.f32.mrb[0].mxu0
        %v1698 = vpop.f32.mrb[0].mxu0
        %1699 = vdwg.mxu0
        %1700 = vmatprep.subr.bf16.mxu0 0
        %1701 = vmatpush1.bf16.msra.mxu0 %v1291
        %1702 = vmatprep.subr.bf16.mxu0 0
        %1703 = vmatpush1.bf16.msra.mxu0 %v1294
        %1704 = vmatprep.subr.bf16.mxu0 0
        %1705 = vmatpush1.bf16.msra.mxu0 %v1297
        %1706 = vmatprep.subr.bf16.mxu0 0
        %1707 = vmatpush1.bf16.msra.mxu0 %v1300
        %1708 = vmatprep.subr.bf16.mxu0 0
        %1709 = vmatpush1.bf16.msra.mxu0 %v1303
        %1710 = vmatprep.subr.bf16.mxu0 0
        %1711 = vmatpush1.bf16.msra.mxu0 %v1306
        %1712 = vmatprep.subr.bf16.mxu0 0
        %1713 = vmatpush1.bf16.msra.mxu0 %v1309
        %1714 = vmatprep.subr.bf16.mxu0 0
        %1715 = vmatpush1.bf16.msra.mxu0 %v1312
        %1716 = vmatprep.subr.bf16.mxu0 0
        %1717 = vmatpush1.bf16.msra.mxu0 %v1315
        %1718 = vmatprep.subr.bf16.mxu0 0
        %1719 = vmatpush1.bf16.msra.mxu0 %v1318
        %1720 = vmatprep.subr.bf16.mxu0 0
        %1721 = vmatpush1.bf16.msra.mxu0 %v1321
        %1722 = vmatprep.subr.bf16.mxu0 0
        %1723 = vmatpush1.bf16.msra.mxu0 %v1324
        %1724 = vmatprep.subr.bf16.mxu0 0
        %1725 = vmatpush1.bf16.msra.mxu0 %v1327
        %1726 = vmatprep.subr.bf16.mxu0 0
        %1727 = vmatpush1.bf16.msra.mxu0 %v1330
        %1728 = vmatprep.subr.bf16.mxu0 0
        %1729 = vmatpush1.bf16.msra.mxu0 %v1333
        %1730 = vmatprep.subr.bf16.mxu0 0
        %1731 = vmatpush1.bf16.msra.mxu0 %v1336
        %1732 = vmatprep.mubr.bf16.mxu0 %v611
        %1733 = vmatmul.mubr.bf16.gmra.mrb[0].mxu0 %v610
        %v1734 = vpop.f32.mrb[0].mxu0
        %v1735 = vadd.f32 0.0, %v1734
        %v1736 = vpop.f32.mrb[0].mxu0
        %v1737 = vpop.f32.mrb[0].mxu0
        %v1738 = vpop.f32.mrb[0].mxu0
        %1739 = vdwg.mxu0
        %1740 = vmatprep.subr.bf16.mxu0 0
        %1741 = vmatpush1.bf16.msra.mxu0 %v1339
        %1742 = vmatprep.subr.bf16.mxu0 0
        %1743 = vmatpush1.bf16.msra.mxu0 %v1342
        %1744 = vmatprep.subr.bf16.mxu0 0
        %1745 = vmatpush1.bf16.msra.mxu0 %v1345
        %1746 = vmatprep.subr.bf16.mxu0 0
        %1747 = vmatpush1.bf16.msra.mxu0 %v1348
        %1748 = vmatprep.subr.bf16.mxu0 0
        %1749 = vmatpush1.bf16.msra.mxu0 %v1351
        %1750 = vmatprep.subr.bf16.mxu0 0
        %1751 = vmatpush1.bf16.msra.mxu0 %v1354
        %1752 = vmatprep.subr.bf16.mxu0 0
        %1753 = vmatpush1.bf16.msra.mxu0 %v1357
        %1754 = vmatprep.subr.bf16.mxu0 0
        %1755 = vmatpush1.bf16.msra.mxu0 %v1360
        %1756 = vmatprep.subr.bf16.mxu0 0
        %1757 = vmatpush1.bf16.msra.mxu0 %v1363
        %1758 = vmatprep.subr.bf16.mxu0 0
        %1759 = vmatpush1.bf16.msra.mxu0 %v1366
        %1760 = vmatprep.subr.bf16.mxu0 0
        %1761 = vmatpush1.bf16.msra.mxu0 %v1369
        %1762 = vmatprep.subr.bf16.mxu0 0
        %1763 = vmatpush1.bf16.msra.mxu0 %v1372
        %1764 = vmatprep.subr.bf16.mxu0 0
        %1765 = vmatpush1.bf16.msra.mxu0 %v1375
        %1766 = vmatprep.subr.bf16.mxu0 0
        %1767 = vmatpush1.bf16.msra.mxu0 %v1378
        %1768 = vmatprep.subr.bf16.mxu0 0
        %1769 = vmatpush1.bf16.msra.mxu0 %v1381
        %1770 = vmatprep.subr.bf16.mxu0 0
        %1771 = vmatpush1.bf16.msra.mxu0 %v1384
        %1772 = vmatprep.mubr.bf16.mxu0 %v613
        %1773 = vmatmul.mubr.bf16.gmra.mrb[0].mxu0 %v612
        %v1774 = vpop.f32.mrb[0].mxu0
        %v1775 = vadd.f32 %v1735, %v1774
        %v1776 = vpop.f32.mrb[0].mxu0
        %v1777 = vpop.f32.mrb[0].mxu0
        %v1778 = vpop.f32.mrb[0].mxu0
        %1779 = vdwg.mxu0
        %1780 = vmatprep.subr.bf16.mxu0 0
        %1781 = vmatpush1.bf16.msra.mxu0 %v1387
        %1782 = vmatprep.subr.bf16.mxu0 0
        %1783 = vmatpush1.bf16.msra.mxu0 %v1390
        %1784 = vmatprep.subr.bf16.mxu0 0
        %1785 = vmatpush1.bf16.msra.mxu0 %v1393
        %1786 = vmatprep.subr.bf16.mxu0 0
        %1787 = vmatpush1.bf16.msra.mxu0 %v1396
        %1788 = vmatprep.subr.bf16.mxu0 0
        %1789 = vmatpush1.bf16.msra.mxu0 %v1399
        %1790 = vmatprep.subr.bf16.mxu0 0
        %1791 = vmatpush1.bf16.msra.mxu0 %v1402
        %1792 = vmatprep.subr.bf16.mxu0 0
        %1793 = vmatpush1.bf16.msra.mxu0 %v1405
        %1794 = vmatprep.subr.bf16.mxu0 0
        %1795 = vmatpush1.bf16.msra.mxu0 %v1408
        %1796 = vmatprep.subr.bf16.mxu0 0
        %1797 = vmatpush1.bf16.msra.mxu0 %v1411
        %1798 = vmatprep.subr.bf16.mxu0 0
        %1799 = vmatpush1.bf16.msra.mxu0 %v1414
        %1800 = vmatprep.subr.bf16.mxu0 0
        %1801 = vmatpush1.bf16.msra.mxu0 %v1417
        %1802 = vmatprep.subr.bf16.mxu0 0
        %1803 = vmatpush1.bf16.msra.mxu0 %v1420
        %1804 = vmatprep.subr.bf16.mxu0 0
        %1805 = vmatpush1.bf16.msra.mxu0 %v1423
        %1806 = vmatprep.subr.bf16.mxu0 0
        %1807 = vmatpush1.bf16.msra.mxu0 %v1426
        %1808 = vmatprep.subr.bf16.mxu0 0
        %1809 = vmatpush1.bf16.msra.mxu0 %v1429
        %1810 = vmatprep.subr.bf16.mxu0 0
        %1811 = vmatpush1.bf16.msra.mxu0 %v1432
        %1812 = vmatprep.mubr.bf16.mxu0 %v615
        %1813 = vmatmul.mubr.bf16.gmra.mrb[0].mxu0 %v614
        %v1814 = vpop.f32.mrb[0].mxu0
        %v1815 = vadd.f32 %v1775, %v1814
        %v1816 = vpop.f32.mrb[0].mxu0
        %v1817 = vpop.f32.mrb[0].mxu0
        %v1818 = vpop.f32.mrb[0].mxu0
        %1819 = vdwg.mxu0
        %v1823 = vunpack.c.l.b16 %v360
        %v1824 = vunpack.c.h.b16 %v360
        %v1825 = vunpack.c.l.b16 %v361
        %v1826 = vunpack.c.h.b16 %v361
        %v1827 = vunpack.c.l.b16 %v362
        %v1828 = vunpack.c.h.b16 %v362
        %v1829 = vpack.c.b16 %v1823, %v1823
        %v1830 = vpack.c.b16 %v1824, %v1824
        %v1831 = vpack.c.b16 %v1825, %v1825
        %v1832 = vpack.c.b16 %v1826, %v1826
        %v1833 = vpack.c.b16 %v1827, %v1827
        %v1834 = vpack.c.b16 %v1828, %v1828
        %v2033 = vunpack.c.l.b16 %v418
        %v2034 = vunpack.c.h.b16 %v418
        %v2035 = vunpack.c.l.b16 %v419
        %v2036 = vunpack.c.l.b16 %v420
        %v2037 = vunpack.c.h.b16 %v420
        %v2038 = vunpack.c.l.b16 %v421
        %v2039 = vunpack.c.l.b16 %v422
        %v2040 = vunpack.c.h.b16 %v422
        %v2041 = vunpack.c.l.b16 %v423
        %v2042 = vunpack.c.l.b16 %v424
        %v2043 = vunpack.c.h.b16 %v424
        %v2044 = vunpack.c.l.b16 %v425
        %v2045 = vunpack.c.l.b16 %v426
        %v2046 = vunpack.c.h.b16 %v426
        %v2047 = vunpack.c.l.b16 %v427
        %v2048 = vunpack.c.l.b16 %v428
        %v2049 = vunpack.c.h.b16 %v428
        %v2050 = vunpack.c.l.b16 %v429
        %v2051 = vunpack.c.l.b16 %v430
        %v2052 = vunpack.c.h.b16 %v430
        %v2053 = vunpack.c.l.b16 %v431
        %v2054 = vunpack.c.l.b16 %v432
        %v2055 = vunpack.c.h.b16 %v432
        %v2056 = vunpack.c.l.b16 %v433
        %v2057 = vunpack.c.l.b16 %v434
        %v2058 = vunpack.c.h.b16 %v434
        %v2059 = vunpack.c.l.b16 %v435
        %v2060 = vunpack.c.l.b16 %v436
        %v2061 = vunpack.c.h.b16 %v436
        %v2062 = vunpack.c.l.b16 %v437
        %v2063 = vunpack.c.l.b16 %v438
        %v2064 = vunpack.c.h.b16 %v438
        %v2065 = vunpack.c.l.b16 %v439
        %v2066 = vunpack.c.l.b16 %v440
        %v2067 = vunpack.c.h.b16 %v440
        %v2068 = vunpack.c.l.b16 %v441
        %v2069 = vunpack.c.l.b16 %v442
        %v2070 = vunpack.c.h.b16 %v442
        %v2071 = vunpack.c.l.b16 %v443
        %v2072 = vunpack.c.l.b16 %v444
        %v2073 = vunpack.c.h.b16 %v444
        %v2074 = vunpack.c.l.b16 %v445
        %v2075 = vunpack.c.l.b16 %v446
        %v2076 = vunpack.c.h.b16 %v446
        %v2077 = vunpack.c.l.b16 %v447
        %v2078 = vunpack.c.l.b16 %v448
        %v2079 = vunpack.c.h.b16 %v448
        %v2080 = vunpack.c.l.b16 %v449
        %v2081 = vunpack.c.l.b16 %v450
        %v2082 = vunpack.c.h.b16 %v450
        %v2083 = vunpack.c.l.b16 %v451
        %v2084 = vunpack.c.l.b16 %v452
        %v2085 = vunpack.c.h.b16 %v452
        %v2086 = vunpack.c.l.b16 %v453
        %v2087 = vunpack.c.l.b16 %v454
        %v2088 = vunpack.c.h.b16 %v454
        %v2089 = vunpack.c.l.b16 %v455
        %v2090 = vunpack.c.l.b16 %v456
        %v2091 = vunpack.c.h.b16 %v456
        %v2092 = vunpack.c.l.b16 %v457
        %v2093 = vunpack.c.l.b16 %v458
        %v2094 = vunpack.c.h.b16 %v458
        %v2095 = vunpack.c.l.b16 %v459
        %v2096 = vunpack.c.l.b16 %v460
        %v2097 = vunpack.c.h.b16 %v460
        %v2098 = vunpack.c.l.b16 %v461
        %v2099 = vunpack.c.l.b16 %v462
        %v2100 = vunpack.c.h.b16 %v462
        %v2101 = vunpack.c.l.b16 %v463
        %v2102 = vunpack.c.l.b16 %v464
        %v2103 = vunpack.c.h.b16 %v464
        %v2104 = vunpack.c.l.b16 %v465
        %v2105 = vunpack.c.l.b16 %v466
        %v2106 = vunpack.c.h.b16 %v466
        %v2107 = vunpack.c.l.b16 %v467
        %v2108 = vunpack.c.l.b16 %v468
        %v2109 = vunpack.c.h.b16 %v468
        %v2110 = vunpack.c.l.b16 %v469
        %v2111 = vunpack.c.l.b16 %v470
        %v2112 = vunpack.c.h.b16 %v470
        %v2113 = vunpack.c.l.b16 %v471
        %v2114 = vunpack.c.l.b16 %v472
        %v2115 = vunpack.c.h.b16 %v472
        %v2116 = vunpack.c.l.b16 %v473
        %v2117 = vunpack.c.l.b16 %v474
        %v2118 = vunpack.c.h.b16 %v474
        %v2119 = vunpack.c.l.b16 %v475
        %v2120 = vunpack.c.l.b16 %v476
        %v2121 = vunpack.c.h.b16 %v476
        %v2122 = vunpack.c.l.b16 %v477
        %v2123 = vunpack.c.l.b16 %v478
        %v2124 = vunpack.c.h.b16 %v478
        %v2125 = vunpack.c.l.b16 %v479
        %v2126 = vunpack.c.l.b16 %v480
        %v2127 = vunpack.c.h.b16 %v480
        %v2128 = vunpack.c.l.b16 %v481
        %v2129 = vunpack.c.l.b16 %v482
        %v2130 = vunpack.c.h.b16 %v482
        %v2131 = vunpack.c.l.b16 %v483
        %v2132 = vunpack.c.l.b16 %v484
        %v2133 = vunpack.c.h.b16 %v484
        %v2134 = vunpack.c.l.b16 %v485
        %v2135 = vunpack.c.l.b16 %v486
        %v2136 = vunpack.c.h.b16 %v486
        %v2137 = vunpack.c.l.b16 %v487
        %v2138 = vunpack.c.l.b16 %v488
        %v2139 = vunpack.c.h.b16 %v488
        %v2140 = vunpack.c.l.b16 %v489
        %v2141 = vunpack.c.l.b16 %v490
        %v2142 = vunpack.c.h.b16 %v490
        %v2143 = vunpack.c.l.b16 %v491
        %v2144 = vunpack.c.l.b16 %v492
        %v2145 = vunpack.c.h.b16 %v492
        %v2146 = vunpack.c.l.b16 %v493
        %v2147 = vunpack.c.l.b16 %v494
        %v2148 = vunpack.c.h.b16 %v494
        %v2149 = vunpack.c.l.b16 %v495
        %v2150 = vunpack.c.l.b16 %v496
        %v2151 = vunpack.c.h.b16 %v496
        %v2152 = vunpack.c.l.b16 %v497
        %v2153 = vunpack.c.l.b16 %v498
        %v2154 = vunpack.c.h.b16 %v498
        %v2155 = vunpack.c.l.b16 %v499
        %v2156 = vunpack.c.l.b16 %v500
        %v2157 = vunpack.c.h.b16 %v500
        %v2158 = vunpack.c.l.b16 %v501
        %v2159 = vunpack.c.l.b16 %v502
        %v2160 = vunpack.c.h.b16 %v502
        %v2161 = vunpack.c.l.b16 %v503
        %v2162 = vunpack.c.l.b16 %v504
        %v2163 = vunpack.c.h.b16 %v504
        %v2164 = vunpack.c.l.b16 %v505
        %v2165 = vunpack.c.l.b16 %v506
        %v2166 = vunpack.c.h.b16 %v506
        %v2167 = vunpack.c.l.b16 %v507
        %v2168 = vunpack.c.l.b16 %v508
        %v2169 = vunpack.c.h.b16 %v508
        %v2170 = vunpack.c.l.b16 %v509
        %v2171 = vunpack.c.l.b16 %v510
        %v2172 = vunpack.c.h.b16 %v510
        %v2173 = vunpack.c.l.b16 %v511
        %v2174 = vunpack.c.l.b16 %v512
        %v2175 = vunpack.c.h.b16 %v512
        %v2176 = vunpack.c.l.b16 %v513
        %v2177 = vunpack.c.l.b16 %v514
        %v2178 = vunpack.c.h.b16 %v514
        %v2179 = vunpack.c.l.b16 %v515
        %v2180 = vunpack.c.l.b16 %v516
        %v2181 = vunpack.c.h.b16 %v516
        %v2182 = vunpack.c.l.b16 %v517
        %v2183 = vunpack.c.l.b16 %v518
        %v2184 = vunpack.c.h.b16 %v518
        %v2185 = vunpack.c.l.b16 %v519
        %v2186 = vunpack.c.l.b16 %v520
        %v2187 = vunpack.c.h.b16 %v520
        %v2188 = vunpack.c.l.b16 %v521
        %v2189 = vunpack.c.l.b16 %v522
        %v2190 = vunpack.c.h.b16 %v522
        %v2191 = vunpack.c.l.b16 %v523
        %v2192 = vunpack.c.l.b16 %v524
        %v2193 = vunpack.c.h.b16 %v524
        %v2194 = vunpack.c.l.b16 %v525
        %v2195 = vunpack.c.l.b16 %v526
        %v2196 = vunpack.c.h.b16 %v526
        %v2197 = vunpack.c.l.b16 %v527
        %v2198 = vunpack.c.l.b16 %v528
        %v2199 = vunpack.c.h.b16 %v528
        %v2200 = vunpack.c.l.b16 %v529
        %v2201 = vunpack.c.l.b16 %v530
        %v2202 = vunpack.c.h.b16 %v530
        %v2203 = vunpack.c.l.b16 %v531
        %v2204 = vunpack.c.l.b16 %v532
        %v2205 = vunpack.c.h.b16 %v532
        %v2206 = vunpack.c.l.b16 %v533
        %v2207 = vunpack.c.l.b16 %v534
        %v2208 = vunpack.c.h.b16 %v534
        %v2209 = vunpack.c.l.b16 %v535
        %v2210 = vunpack.c.l.b16 %v536
        %v2211 = vunpack.c.h.b16 %v536
        %v2212 = vunpack.c.l.b16 %v537
        %v2213 = vunpack.c.l.b16 %v538
        %v2214 = vunpack.c.h.b16 %v538
        %v2215 = vunpack.c.l.b16 %v539
        %v2216 = vunpack.c.l.b16 %v540
        %v2217 = vunpack.c.h.b16 %v540
        %v2218 = vunpack.c.l.b16 %v541
        %v2219 = vunpack.c.l.b16 %v542
        %v2220 = vunpack.c.h.b16 %v542
        %v2221 = vunpack.c.l.b16 %v543
        %v2222 = vunpack.c.l.b16 %v544
        %v2223 = vunpack.c.h.b16 %v544
        %v2224 = vunpack.c.l.b16 %v545
        %v2225 = vunpack.c.l.b16 %v546
        %v2226 = vunpack.c.h.b16 %v546
        %v2227 = vunpack.c.l.b16 %v547
        %v2228 = vunpack.c.l.b16 %v548
        %v2229 = vunpack.c.h.b16 %v548
        %v2230 = vunpack.c.l.b16 %v549
        %v2231 = vunpack.c.l.b16 %v550
        %v2232 = vunpack.c.h.b16 %v550
        %v2233 = vunpack.c.l.b16 %v551
        %v2234 = vunpack.c.l.b16 %v552
        %v2235 = vunpack.c.h.b16 %v552
        %v2236 = vunpack.c.l.b16 %v553
        %v2237 = vunpack.c.l.b16 %v554
        %v2238 = vunpack.c.h.b16 %v554
        %v2239 = vunpack.c.l.b16 %v555
        %v2240 = vunpack.c.l.b16 %v556
        %v2241 = vunpack.c.h.b16 %v556
        %v2242 = vunpack.c.l.b16 %v557
        %v2243 = vunpack.c.l.b16 %v558
        %v2244 = vunpack.c.h.b16 %v558
        %v2245 = vunpack.c.l.b16 %v559
        %v2246 = vunpack.c.l.b16 %v560
        %v2247 = vunpack.c.h.b16 %v560
        %v2248 = vunpack.c.l.b16 %v561
        %v2249 = vunpack.c.l.b16 %v562
        %v2250 = vunpack.c.h.b16 %v562
        %v2251 = vunpack.c.l.b16 %v563
        %v2252 = vunpack.c.l.b16 %v564
        %v2253 = vunpack.c.h.b16 %v564
        %v2254 = vunpack.c.l.b16 %v565
        %v2255 = vunpack.c.l.b16 %v566
        %v2256 = vunpack.c.h.b16 %v566
        %v2257 = vunpack.c.l.b16 %v567
        %v2258 = vunpack.c.l.b16 %v568
        %v2259 = vunpack.c.h.b16 %v568
        %v2260 = vunpack.c.l.b16 %v569
        %v2261 = vunpack.c.l.b16 %v570
        %v2262 = vunpack.c.h.b16 %v570
        %v2263 = vunpack.c.l.b16 %v571
        %v2264 = vunpack.c.l.b16 %v572
        %v2265 = vunpack.c.h.b16 %v572
        %v2266 = vunpack.c.l.b16 %v573
        %v2267 = vunpack.c.l.b16 %v574
        %v2268 = vunpack.c.h.b16 %v574
        %v2269 = vunpack.c.l.b16 %v575
        %v2270 = vunpack.c.l.b16 %v576
        %v2271 = vunpack.c.h.b16 %v576
        %v2272 = vunpack.c.l.b16 %v577
        %v2273 = vunpack.c.l.b16 %v578
        %v2274 = vunpack.c.h.b16 %v578
        %v2275 = vunpack.c.l.b16 %v579
        %v2276 = vunpack.c.l.b16 %v580
        %v2277 = vunpack.c.h.b16 %v580
        %v2278 = vunpack.c.l.b16 %v581
        %v2279 = vunpack.c.l.b16 %v582
        %v2280 = vunpack.c.h.b16 %v582
        %v2281 = vunpack.c.l.b16 %v583
        %v2282 = vunpack.c.l.b16 %v584
        %v2283 = vunpack.c.h.b16 %v584
        %v2284 = vunpack.c.l.b16 %v585
        %v2285 = vunpack.c.l.b16 %v586
        %v2286 = vunpack.c.h.b16 %v586
        %v2287 = vunpack.c.l.b16 %v587
        %v2288 = vunpack.c.l.b16 %v588
        %v2289 = vunpack.c.h.b16 %v588
        %v2290 = vunpack.c.l.b16 %v589
        %v2291 = vunpack.c.l.b16 %v590
        %v2292 = vunpack.c.h.b16 %v590
        %v2293 = vunpack.c.l.b16 %v591
        %v2294 = vunpack.c.l.b16 %v592
        %v2295 = vunpack.c.h.b16 %v592
        %v2296 = vunpack.c.l.b16 %v593
        %v2297 = vunpack.c.l.b16 %v594
        %v2298 = vunpack.c.h.b16 %v594
        %v2299 = vunpack.c.l.b16 %v595
        %v2300 = vunpack.c.l.b16 %v596
        %v2301 = vunpack.c.h.b16 %v596
        %v2302 = vunpack.c.l.b16 %v597
        %v2303 = vunpack.c.l.b16 %v598
        %v2304 = vunpack.c.h.b16 %v598
        %v2305 = vunpack.c.l.b16 %v599
        %v2306 = vunpack.c.l.b16 %v600
        %v2307 = vunpack.c.h.b16 %v600
        %v2308 = vunpack.c.l.b16 %v601
        %v2309 = vunpack.c.l.b16 %v602
        %v2310 = vunpack.c.h.b16 %v602
        %v2311 = vunpack.c.l.b16 %v603
        %v2312 = vunpack.c.l.b16 %v604
        %v2313 = vunpack.c.h.b16 %v604
        %v2314 = vunpack.c.l.b16 %v605
        %v2315 = vunpack.c.l.b16 %v606
        %v2316 = vunpack.c.h.b16 %v606
        %v2317 = vunpack.c.l.b16 %v607
        %v2318 = vunpack.c.l.b16 %v608
        %v2319 = vunpack.c.h.b16 %v608
        %v2320 = vunpack.c.l.b16 %v609
        %v2321 = vpack.c.b16 %v2036, %v2033
        %v2322 = vpack.c.b16 %v2037, %v2034
        %v2323 = vpack.c.b16 %v2038, %v2035
        %v2324 = vpack.c.b16 %v2042, %v2039
        %v2325 = vpack.c.b16 %v2043, %v2040
        %v2326 = vpack.c.b16 %v2044, %v2041
        %v2327 = vpack.c.b16 %v2048, %v2045
        %v2328 = vpack.c.b16 %v2049, %v2046
        %v2329 = vpack.c.b16 %v2050, %v2047
        %v2330 = vpack.c.b16 %v2054, %v2051
        %v2331 = vpack.c.b16 %v2055, %v2052
        %v2332 = vpack.c.b16 %v2056, %v2053
        %v2333 = vpack.c.b16 %v2060, %v2057
        %v2334 = vpack.c.b16 %v2061, %v2058
        %v2335 = vpack.c.b16 %v2062, %v2059
        %v2336 = vpack.c.b16 %v2066, %v2063
        %v2337 = vpack.c.b16 %v2067, %v2064
        %v2338 = vpack.c.b16 %v2068, %v2065
        %v2339 = vpack.c.b16 %v2072, %v2069
        %v2340 = vpack.c.b16 %v2073, %v2070
        %v2341 = vpack.c.b16 %v2074, %v2071
        %v2342 = vpack.c.b16 %v2078, %v2075
        %v2343 = vpack.c.b16 %v2079, %v2076
        %v2344 = vpack.c.b16 %v2080, %v2077
        %v2345 = vpack.c.b16 %v2084, %v2081
        %v2346 = vpack.c.b16 %v2085, %v2082
        %v2347 = vpack.c.b16 %v2086, %v2083
        %v2348 = vpack.c.b16 %v2090, %v2087
        %v2349 = vpack.c.b16 %v2091, %v2088
        %v2350 = vpack.c.b16 %v2092, %v2089
        %v2351 = vpack.c.b16 %v2096, %v2093
        %v2352 = vpack.c.b16 %v2097, %v2094
        %v2353 = vpack.c.b16 %v2098, %v2095
        %v2354 = vpack.c.b16 %v2102, %v2099
        %v2355 = vpack.c.b16 %v2103, %v2100
        %v2356 = vpack.c.b16 %v2104, %v2101
        %v2357 = vpack.c.b16 %v2108, %v2105
        %v2358 = vpack.c.b16 %v2109, %v2106
        %v2359 = vpack.c.b16 %v2110, %v2107
        %v2360 = vpack.c.b16 %v2114, %v2111
        %v2361 = vpack.c.b16 %v2115, %v2112
        %v2362 = vpack.c.b16 %v2116, %v2113
        %v2363 = vpack.c.b16 %v2120, %v2117
        %v2364 = vpack.c.b16 %v2121, %v2118
        %v2365 = vpack.c.b16 %v2122, %v2119
        %v2366 = vpack.c.b16 %v2126, %v2123
        %v2367 = vpack.c.b16 %v2127, %v2124
        %v2368 = vpack.c.b16 %v2128, %v2125
        %v2369 = vpack.c.b16 %v2132, %v2129
        %v2370 = vpack.c.b16 %v2133, %v2130
        %v2371 = vpack.c.b16 %v2134, %v2131
        %v2372 = vpack.c.b16 %v2138, %v2135
        %v2373 = vpack.c.b16 %v2139, %v2136
        %v2374 = vpack.c.b16 %v2140, %v2137
        %v2375 = vpack.c.b16 %v2144, %v2141
        %v2376 = vpack.c.b16 %v2145, %v2142
        %v2377 = vpack.c.b16 %v2146, %v2143
        %v2378 = vpack.c.b16 %v2150, %v2147
        %v2379 = vpack.c.b16 %v2151, %v2148
        %v2380 = vpack.c.b16 %v2152, %v2149
        %v2381 = vpack.c.b16 %v2156, %v2153
        %v2382 = vpack.c.b16 %v2157, %v2154
        %v2383 = vpack.c.b16 %v2158, %v2155
        %v2384 = vpack.c.b16 %v2162, %v2159
        %v2385 = vpack.c.b16 %v2163, %v2160
        %v2386 = vpack.c.b16 %v2164, %v2161
        %v2387 = vpack.c.b16 %v2168, %v2165
        %v2388 = vpack.c.b16 %v2169, %v2166
        %v2389 = vpack.c.b16 %v2170, %v2167
        %v2390 = vpack.c.b16 %v2174, %v2171
        %v2391 = vpack.c.b16 %v2175, %v2172
        %v2392 = vpack.c.b16 %v2176, %v2173
        %v2393 = vpack.c.b16 %v2180, %v2177
        %v2394 = vpack.c.b16 %v2181, %v2178
        %v2395 = vpack.c.b16 %v2182, %v2179
        %v2396 = vpack.c.b16 %v2186, %v2183
        %v2397 = vpack.c.b16 %v2187, %v2184
        %v2398 = vpack.c.b16 %v2188, %v2185
        %v2399 = vpack.c.b16 %v2192, %v2189
        %v2400 = vpack.c.b16 %v2193, %v2190
        %v2401 = vpack.c.b16 %v2194, %v2191
        %v2402 = vpack.c.b16 %v2198, %v2195
        %v2403 = vpack.c.b16 %v2199, %v2196
        %v2404 = vpack.c.b16 %v2200, %v2197
        %v2405 = vpack.c.b16 %v2204, %v2201
        %v2406 = vpack.c.b16 %v2205, %v2202
        %v2407 = vpack.c.b16 %v2206, %v2203
        %v2408 = vpack.c.b16 %v2210, %v2207
        %v2409 = vpack.c.b16 %v2211, %v2208
        %v2410 = vpack.c.b16 %v2212, %v2209
        %v2411 = vpack.c.b16 %v2216, %v2213
        %v2412 = vpack.c.b16 %v2217, %v2214
        %v2413 = vpack.c.b16 %v2218, %v2215
        %v2414 = vpack.c.b16 %v2222, %v2219
        %v2415 = vpack.c.b16 %v2223, %v2220
        %v2416 = vpack.c.b16 %v2224, %v2221
        %v2417 = vpack.c.b16 %v2228, %v2225
        %v2418 = vpack.c.b16 %v2229, %v2226
        %v2419 = vpack.c.b16 %v2230, %v2227
        %v2420 = vpack.c.b16 %v2234, %v2231
        %v2421 = vpack.c.b16 %v2235, %v2232
        %v2422 = vpack.c.b16 %v2236, %v2233
        %v2423 = vpack.c.b16 %v2240, %v2237
        %v2424 = vpack.c.b16 %v2241, %v2238
        %v2425 = vpack.c.b16 %v2242, %v2239
        %v2426 = vpack.c.b16 %v2246, %v2243
        %v2427 = vpack.c.b16 %v2247, %v2244
        %v2428 = vpack.c.b16 %v2248, %v2245
        %v2429 = vpack.c.b16 %v2252, %v2249
        %v2430 = vpack.c.b16 %v2253, %v2250
        %v2431 = vpack.c.b16 %v2254, %v2251
        %v2432 = vpack.c.b16 %v2258, %v2255
        %v2433 = vpack.c.b16 %v2259, %v2256
        %v2434 = vpack.c.b16 %v2260, %v2257
        %v2435 = vpack.c.b16 %v2264, %v2261
        %v2436 = vpack.c.b16 %v2265, %v2262
        %v2437 = vpack.c.b16 %v2266, %v2263
        %v2438 = vpack.c.b16 %v2270, %v2267
        %v2439 = vpack.c.b16 %v2271, %v2268
        %v2440 = vpack.c.b16 %v2272, %v2269
        %v2441 = vpack.c.b16 %v2276, %v2273
        %v2442 = vpack.c.b16 %v2277, %v2274
        %v2443 = vpack.c.b16 %v2278, %v2275
        %v2444 = vpack.c.b16 %v2282, %v2279
        %v2445 = vpack.c.b16 %v2283, %v2280
        %v2446 = vpack.c.b16 %v2284, %v2281
        %v2447 = vpack.c.b16 %v2288, %v2285
        %v2448 = vpack.c.b16 %v2289, %v2286
        %v2449 = vpack.c.b16 %v2290, %v2287
        %v2450 = vpack.c.b16 %v2294, %v2291
        %v2451 = vpack.c.b16 %v2295, %v2292
        %v2452 = vpack.c.b16 %v2296, %v2293
        %v2453 = vpack.c.b16 %v2300, %v2297
        %v2454 = vpack.c.b16 %v2301, %v2298
        %v2455 = vpack.c.b16 %v2302, %v2299
        %v2456 = vpack.c.b16 %v2306, %v2303
        %v2457 = vpack.c.b16 %v2307, %v2304
        %v2458 = vpack.c.b16 %v2308, %v2305
        %v2459 = vpack.c.b16 %v2312, %v2309
        %v2460 = vpack.c.b16 %v2313, %v2310
        %v2461 = vpack.c.b16 %v2314, %v2311
        %v2462 = vpack.c.b16 %v2318, %v2315
        %v2463 = vpack.c.b16 %v2319, %v2316
        %v2464 = vpack.c.b16 %v2320, %v2317
        %2609 = vmatprep.subr.bf16.mxu0 %v2322
        %2610 = vmatpush1.bf16.msra.mxu0 %v2321
        %2611 = vmatprep.subr.bf16.mxu0 %v2325
        %2612 = vmatpush1.bf16.msra.mxu0 %v2324
        %2613 = vmatprep.subr.bf16.mxu0 %v2328
        %2614 = vmatpush1.bf16.msra.mxu0 %v2327
        %2615 = vmatprep.subr.bf16.mxu0 %v2331
        %2616 = vmatpush1.bf16.msra.mxu0 %v2330
        %2617 = vmatprep.subr.bf16.mxu0 %v2334
        %2618 = vmatpush1.bf16.msra.mxu0 %v2333
        %2619 = vmatprep.subr.bf16.mxu0 %v2337
        %2620 = vmatpush1.bf16.msra.mxu0 %v2336
        %2621 = vmatprep.subr.bf16.mxu0 %v2340
        %2622 = vmatpush1.bf16.msra.mxu0 %v2339
        %2623 = vmatprep.subr.bf16.mxu0 %v2343
        %2624 = vmatpush1.bf16.msra.mxu0 %v2342
        %2625 = vmatprep.subr.bf16.mxu0 %v2346
        %2626 = vmatpush1.bf16.msra.mxu0 %v2345
        %2627 = vmatprep.subr.bf16.mxu0 %v2349
        %2628 = vmatpush1.bf16.msra.mxu0 %v2348
        %2629 = vmatprep.subr.bf16.mxu0 %v2352
        %2630 = vmatpush1.bf16.msra.mxu0 %v2351
        %2631 = vmatprep.subr.bf16.mxu0 %v2355
        %2632 = vmatpush1.bf16.msra.mxu0 %v2354
        %2633 = vmatprep.subr.bf16.mxu0 %v2358
        %2634 = vmatpush1.bf16.msra.mxu0 %v2357
        %2635 = vmatprep.subr.bf16.mxu0 %v2361
        %2636 = vmatpush1.bf16.msra.mxu0 %v2360
        %2637 = vmatprep.subr.bf16.mxu0 %v2364
        %2638 = vmatpush1.bf16.msra.mxu0 %v2363
        %2639 = vmatprep.subr.bf16.mxu0 %v2367
        %2640 = vmatpush1.bf16.msra.mxu0 %v2366
        %2641 = vmatprep.mubr.bf16.mxu0 %v1830
        %2642 = vmatmul.mubr.bf16.gmra.mrb[0].mxu0 %v1829
        %v2643 = vpop.f32.mrb[0].mxu0
        %v2644 = vadd.f32 %v1694, %v2643
        %v2645 = vpop.f32.mrb[0].mxu0
        %v2646 = vadd.f32 %v1696, %v2645
        %v2647 = vpop.f32.mrb[0].mxu0
        %v2648 = vpop.f32.mrb[0].mxu0
        %2649 = vdwg.mxu0
        %2650 = vmatprep.subr.bf16.mxu0 %v2370
        %2651 = vmatpush1.bf16.msra.mxu0 %v2369
        %2652 = vmatprep.subr.bf16.mxu0 %v2373
        %2653 = vmatpush1.bf16.msra.mxu0 %v2372
        %2654 = vmatprep.subr.bf16.mxu0 %v2376
        %2655 = vmatpush1.bf16.msra.mxu0 %v2375
        %2656 = vmatprep.subr.bf16.mxu0 %v2379
        %2657 = vmatpush1.bf16.msra.mxu0 %v2378
        %2658 = vmatprep.subr.bf16.mxu0 %v2382
        %2659 = vmatpush1.bf16.msra.mxu0 %v2381
        %2660 = vmatprep.subr.bf16.mxu0 %v2385
        %2661 = vmatpush1.bf16.msra.mxu0 %v2384
        %2662 = vmatprep.subr.bf16.mxu0 %v2388
        %2663 = vmatpush1.bf16.msra.mxu0 %v2387
        %2664 = vmatprep.subr.bf16.mxu0 %v2391
        %2665 = vmatpush1.bf16.msra.mxu0 %v2390
        %2666 = vmatprep.subr.bf16.mxu0 %v2394
        %2667 = vmatpush1.bf16.msra.mxu0 %v2393
        %2668 = vmatprep.subr.bf16.mxu0 %v2397
        %2669 = vmatpush1.bf16.msra.mxu0 %v2396
        %2670 = vmatprep.subr.bf16.mxu0 %v2400
        %2671 = vmatpush1.bf16.msra.mxu0 %v2399
        %2672 = vmatprep.subr.bf16.mxu0 %v2403
        %2673 = vmatpush1.bf16.msra.mxu0 %v2402
        %2674 = vmatprep.subr.bf16.mxu0 %v2406
        %2675 = vmatpush1.bf16.msra.mxu0 %v2405
        %2676 = vmatprep.subr.bf16.mxu0 %v2409
        %2677 = vmatpush1.bf16.msra.mxu0 %v2408
        %2678 = vmatprep.subr.bf16.mxu0 %v2412
        %2679 = vmatpush1.bf16.msra.mxu0 %v2411
        %2680 = vmatprep.subr.bf16.mxu0 %v2415
        %2681 = vmatpush1.bf16.msra.mxu0 %v2414
        %2682 = vmatprep.mubr.bf16.mxu0 %v1832
        %2683 = vmatmul.mubr.bf16.gmra.mrb[0].mxu0 %v1831
        %v2684 = vpop.f32.mrb[0].mxu0
        %v2685 = vadd.f32 %v2644, %v2684
        %v2686 = vpop.f32.mrb[0].mxu0
        %v2687 = vadd.f32 %v2646, %v2686
        %v2688 = vpop.f32.mrb[0].mxu0
        %v2689 = vpop.f32.mrb[0].mxu0
        %2690 = vdwg.mxu0
        %2691 = vmatprep.subr.bf16.mxu0 %v2418
        %2692 = vmatpush1.bf16.msra.mxu0 %v2417
        %2693 = vmatprep.subr.bf16.mxu0 %v2421
        %2694 = vmatpush1.bf16.msra.mxu0 %v2420
        %2695 = vmatprep.subr.bf16.mxu0 %v2424
        %2696 = vmatpush1.bf16.msra.mxu0 %v2423
        %2697 = vmatprep.subr.bf16.mxu0 %v2427
        %2698 = vmatpush1.bf16.msra.mxu0 %v2426
        %2699 = vmatprep.subr.bf16.mxu0 %v2430
        %2700 = vmatpush1.bf16.msra.mxu0 %v2429
        %2701 = vmatprep.subr.bf16.mxu0 %v2433
        %2702 = vmatpush1.bf16.msra.mxu0 %v2432
        %2703 = vmatprep.subr.bf16.mxu0 %v2436
        %2704 = vmatpush1.bf16.msra.mxu0 %v2435
        %2705 = vmatprep.subr.bf16.mxu0 %v2439
        %2706 = vmatpush1.bf16.msra.mxu0 %v2438
        %2707 = vmatprep.subr.bf16.mxu0 %v2442
        %2708 = vmatpush1.bf16.msra.mxu0 %v2441
        %2709 = vmatprep.subr.bf16.mxu0 %v2445
        %2710 = vmatpush1.bf16.msra.mxu0 %v2444
        %2711 = vmatprep.subr.bf16.mxu0 %v2448
        %2712 = vmatpush1.bf16.msra.mxu0 %v2447
        %2713 = vmatprep.subr.bf16.mxu0 %v2451
        %2714 = vmatpush1.bf16.msra.mxu0 %v2450
        %2715 = vmatprep.subr.bf16.mxu0 %v2454
        %2716 = vmatpush1.bf16.msra.mxu0 %v2453
        %2717 = vmatprep.subr.bf16.mxu0 %v2457
        %2718 = vmatpush1.bf16.msra.mxu0 %v2456
        %2719 = vmatprep.subr.bf16.mxu0 %v2460
        %2720 = vmatpush1.bf16.msra.mxu0 %v2459
        %2721 = vmatprep.subr.bf16.mxu0 %v2463
        %2722 = vmatpush1.bf16.msra.mxu0 %v2462
        %2723 = vmatprep.mubr.bf16.mxu0 %v1834
        %2724 = vmatmul.mubr.bf16.gmra.mrb[0].mxu0 %v1833
        %v2725 = vpop.f32.mrb[0].mxu0
        %v2726 = vadd.f32 %v2685, %v2725
        %v2727 = vpop.f32.mrb[0].mxu0
        %v2728 = vadd.f32 %v2687, %v2727
        %v2729 = vpop.f32.mrb[0].mxu0
        %v2730 = vpop.f32.mrb[0].mxu0
        %2731 = vdwg.mxu0
        %2732 = vmatprep.subr.bf16.mxu0 0
        %2733 = vmatpush1.bf16.msra.mxu0 %v2323
        %2734 = vmatprep.subr.bf16.mxu0 0
        %2735 = vmatpush1.bf16.msra.mxu0 %v2326
        %2736 = vmatprep.subr.bf16.mxu0 0
        %2737 = vmatpush1.bf16.msra.mxu0 %v2329
        %2738 = vmatprep.subr.bf16.mxu0 0
        %2739 = vmatpush1.bf16.msra.mxu0 %v2332
        %2740 = vmatprep.subr.bf16.mxu0 0
        %2741 = vmatpush1.bf16.msra.mxu0 %v2335
        %2742 = vmatprep.subr.bf16.mxu0 0
        %2743 = vmatpush1.bf16.msra.mxu0 %v2338
        %2744 = vmatprep.subr.bf16.mxu0 0
        %2745 = vmatpush1.bf16.msra.mxu0 %v2341
        %2746 = vmatprep.subr.bf16.mxu0 0
        %2747 = vmatpush1.bf16.msra.mxu0 %v2344
        %2748 = vmatprep.subr.bf16.mxu0 0
        %2749 = vmatpush1.bf16.msra.mxu0 %v2347
        %2750 = vmatprep.subr.bf16.mxu0 0
        %2751 = vmatpush1.bf16.msra.mxu0 %v2350
        %2752 = vmatprep.subr.bf16.mxu0 0
        %2753 = vmatpush1.bf16.msra.mxu0 %v2353
        %2754 = vmatprep.subr.bf16.mxu0 0
        %2755 = vmatpush1.bf16.msra.mxu0 %v2356
        %2756 = vmatprep.subr.bf16.mxu0 0
        %2757 = vmatpush1.bf16.msra.mxu0 %v2359
        %2758 = vmatprep.subr.bf16.mxu0 0
        %2759 = vmatpush1.bf16.msra.mxu0 %v2362
        %2760 = vmatprep.subr.bf16.mxu0 0
        %2761 = vmatpush1.bf16.msra.mxu0 %v2365
        %2762 = vmatprep.subr.bf16.mxu0 0
        %2763 = vmatpush1.bf16.msra.mxu0 %v2368
        %2764 = vmatprep.mubr.bf16.mxu0 %v1830
        %2765 = vmatmul.mubr.bf16.gmra.mrb[0].mxu0 %v1829
        %v2766 = vpop.f32.mrb[0].mxu0
        %v2767 = vadd.f32 %v1815, %v2766
        %v2768 = vpop.f32.mrb[0].mxu0
        %v2769 = vpop.f32.mrb[0].mxu0
        %v2770 = vpop.f32.mrb[0].mxu0
        %2771 = vdwg.mxu0
        %2772 = vmatprep.subr.bf16.mxu0 0
        %2773 = vmatpush1.bf16.msra.mxu0 %v2371
        %2774 = vmatprep.subr.bf16.mxu0 0
        %2775 = vmatpush1.bf16.msra.mxu0 %v2374
        %2776 = vmatprep.subr.bf16.mxu0 0
        %2777 = vmatpush1.bf16.msra.mxu0 %v2377
        %2778 = vmatprep.subr.bf16.mxu0 0
        %2779 = vmatpush1.bf16.msra.mxu0 %v2380
        %2780 = vmatprep.subr.bf16.mxu0 0
        %2781 = vmatpush1.bf16.msra.mxu0 %v2383
        %2782 = vmatprep.subr.bf16.mxu0 0
        %2783 = vmatpush1.bf16.msra.mxu0 %v2386
        %2784 = vmatprep.subr.bf16.mxu0 0
        %2785 = vmatpush1.bf16.msra.mxu0 %v2389
        %2786 = vmatprep.subr.bf16.mxu0 0
        %2787 = vmatpush1.bf16.msra.mxu0 %v2392
        %2788 = vmatprep.subr.bf16.mxu0 0
        %2789 = vmatpush1.bf16.msra.mxu0 %v2395
        %2790 = vmatprep.subr.bf16.mxu0 0
        %2791 = vmatpush1.bf16.msra.mxu0 %v2398
        %2792 = vmatprep.subr.bf16.mxu0 0
        %2793 = vmatpush1.bf16.msra.mxu0 %v2401
        %2794 = vmatprep.subr.bf16.mxu0 0
        %2795 = vmatpush1.bf16.msra.mxu0 %v2404
        %2796 = vmatprep.subr.bf16.mxu0 0
        %2797 = vmatpush1.bf16.msra.mxu0 %v2407
        %2798 = vmatprep.subr.bf16.mxu0 0
        %2799 = vmatpush1.bf16.msra.mxu0 %v2410
        %2800 = vmatprep.subr.bf16.mxu0 0
        %2801 = vmatpush1.bf16.msra.mxu0 %v2413
        %2802 = vmatprep.subr.bf16.mxu0 0
        %2803 = vmatpush1.bf16.msra.mxu0 %v2416
        %2804 = vmatprep.mubr.bf16.mxu0 %v1832
        %2805 = vmatmul.mubr.bf16.gmra.mrb[0].mxu0 %v1831
        %v2806 = vpop.f32.mrb[0].mxu0
        %v2807 = vadd.f32 %v2767, %v2806
        %v2808 = vpop.f32.mrb[0].mxu0
        %v2809 = vpop.f32.mrb[0].mxu0
        %v2810 = vpop.f32.mrb[0].mxu0
        %2811 = vdwg.mxu0
        %2812 = vmatprep.subr.bf16.mxu0 0
        %2813 = vmatpush1.bf16.msra.mxu0 %v2419
        %2814 = vmatprep.subr.bf16.mxu0 0
        %2815 = vmatpush1.bf16.msra.mxu0 %v2422
        %2816 = vmatprep.subr.bf16.mxu0 0
        %2817 = vmatpush1.bf16.msra.mxu0 %v2425
        %2818 = vmatprep.subr.bf16.mxu0 0
        %2819 = vmatpush1.bf16.msra.mxu0 %v2428
        %2820 = vmatprep.subr.bf16.mxu0 0
        %2821 = vmatpush1.bf16.msra.mxu0 %v2431
        %2822 = vmatprep.subr.bf16.mxu0 0
        %2823 = vmatpush1.bf16.msra.mxu0 %v2434
        %2824 = vmatprep.subr.bf16.mxu0 0
        %2825 = vmatpush1.bf16.msra.mxu0 %v2437
        %2826 = vmatprep.subr.bf16.mxu0 0
        %2827 = vmatpush1.bf16.msra.mxu0 %v2440
        %2828 = vmatprep.subr.bf16.mxu0 0
        %2829 = vmatpush1.bf16.msra.mxu0 %v2443
        %2830 = vmatprep.subr.bf16.mxu0 0
        %2831 = vmatpush1.bf16.msra.mxu0 %v2446
        %2832 = vmatprep.subr.bf16.mxu0 0
        %2833 = vmatpush1.bf16.msra.mxu0 %v2449
        %2834 = vmatprep.subr.bf16.mxu0 0
        %2835 = vmatpush1.bf16.msra.mxu0 %v2452
        %2836 = vmatprep.subr.bf16.mxu0 0
        %2837 = vmatpush1.bf16.msra.mxu0 %v2455
        %2838 = vmatprep.subr.bf16.mxu0 0
        %2839 = vmatpush1.bf16.msra.mxu0 %v2458
        %2840 = vmatprep.subr.bf16.mxu0 0
        %2841 = vmatpush1.bf16.msra.mxu0 %v2461
        %2842 = vmatprep.subr.bf16.mxu0 0
        %2843 = vmatpush1.bf16.msra.mxu0 %v2464
        %2844 = vmatprep.mubr.bf16.mxu0 %v1834
        %2845 = vmatmul.mubr.bf16.gmra.mrb[0].mxu0 %v1833
        %v2846 = vpop.f32.mrb[0].mxu0
        %v2847 = vadd.f32 %v2807, %v2846
        %v2848 = vpop.f32.mrb[0].mxu0
        %v2849 = vpop.f32.mrb[0].mxu0
        %v2850 = vpop.f32.mrb[0].mxu0
        %2851 = vdwg.mxu0
        %v2852 = vpack.c.bf16 %v412, %v412
        %v2853 = vpack.c.bf16 %v413, %v413
        %v2854 = vpack.c.bf16 %v414, %v414
        %v2855 = vpack.c.bf16 %v415, %v415
        %v2856 = vpack.c.bf16 %v416, %v416
        %v2857 = vpack.c.bf16 %v417, %v417
        %s2858 = scalar_lea.vmem [#allocation8], 2304
        %v2859 = vld [vmem:[%s2858] sm:$0xff]
        %v2860 = vld [vmem:[%s2858 + $0x8] sm:$0xf]
        %v2861 = vld [vmem:[%s2858 + $0xc] sm:$0xff]
        %v2862 = vld [vmem:[%s2858 + $0x14] sm:$0xf]
        %v2863 = vld [vmem:[%s2858 + $0x18] sm:$0xff]
        %v2864 = vld [vmem:[%s2858 + $0x20] sm:$0xf]
        %v2865 = vld [vmem:[%s2858 + $0x24] sm:$0xff]
        %v2866 = vld [vmem:[%s2858 + $0x2c] sm:$0xf]
        %v2867 = vld [vmem:[%s2858 + $0x30] sm:$0xff]
        %v2868 = vld [vmem:[%s2858 + $0x38] sm:$0xf]
        %v2869 = vld [vmem:[%s2858 + $0x3c] sm:$0xff]
        %v2870 = vld [vmem:[%s2858 + $0x44] sm:$0xf]
        %v2871 = vld [vmem:[%s2858 + $0x48] sm:$0xff]
        %v2872 = vld [vmem:[%s2858 + $0x50] sm:$0xf]
        %v2873 = vld [vmem:[%s2858 + $0x54] sm:$0xff]
        %v2874 = vld [vmem:[%s2858 + $0x5c] sm:$0xf]
        %v2875 = vld [vmem:[%s2858 + $0x60] sm:$0xff]
        %v2876 = vld [vmem:[%s2858 + $0x68] sm:$0xf]
        %v2877 = vld [vmem:[%s2858 + $0x6c] sm:$0xff]
        %v2878 = vld [vmem:[%s2858 + $0x74] sm:$0xf]
        %v2879 = vld [vmem:[%s2858 + $0x78] sm:$0xff]
        %v2880 = vld [vmem:[%s2858 + $0x80] sm:$0xf]
        %v2881 = vld [vmem:[%s2858 + $0x84] sm:$0xff]
        %v2882 = vld [vmem:[%s2858 + $0x8c] sm:$0xf]
        %v2883 = vld [vmem:[%s2858 + $0x90] sm:$0xff]
        %v2884 = vld [vmem:[%s2858 + $0x98] sm:$0xf]
        %v2885 = vld [vmem:[%s2858 + $0x9c] sm:$0xff]
        %v2886 = vld [vmem:[%s2858 + $0xa4] sm:$0xf]
        %v2887 = vld [vmem:[%s2858 + $0xa8] sm:$0xff]
        %v2888 = vld [vmem:[%s2858 + $0xb0] sm:$0xf]
        %v2889 = vld [vmem:[%s2858 + $0xb4] sm:$0xff]
        %v2890 = vld [vmem:[%s2858 + $0xbc] sm:$0xf]
        %v2891 = vld [vmem:[%s2858 + $0xc0] sm:$0xff]
        %v2892 = vld [vmem:[%s2858 + $0xc8] sm:$0xf]
        %v2893 = vld [vmem:[%s2858 + $0xcc] sm:$0xff]
        %v2894 = vld [vmem:[%s2858 + $0xd4] sm:$0xf]
        %v2895 = vld [vmem:[%s2858 + $0xd8] sm:$0xff]
        %v2896 = vld [vmem:[%s2858 + $0xe0] sm:$0xf]
        %v2897 = vld [vmem:[%s2858 + $0xe4] sm:$0xff]
        %v2898 = vld [vmem:[%s2858 + $0xec] sm:$0xf]
        %v2899 = vld [vmem:[%s2858 + $0xf0] sm:$0xff]
        %v2900 = vld [vmem:[%s2858 + $0xf8] sm:$0xf]
        %v2901 = vld [vmem:[%s2858 + $0xfc] sm:$0xff]
        %v2902 = vld [vmem:[%s2858 + $0x104] sm:$0xf]
        %v2903 = vld [vmem:[%s2858 + $0x108] sm:$0xff]
        %v2904 = vld [vmem:[%s2858 + $0x110] sm:$0xf]
        %v2905 = vld [vmem:[%s2858 + $0x114] sm:$0xff]
        %v2906 = vld [vmem:[%s2858 + $0x11c] sm:$0xf]
        %v2907 = vld [vmem:[%s2858 + $0x120] sm:$0xff]
        %v2908 = vld [vmem:[%s2858 + $0x128] sm:$0xf]
        %v2909 = vld [vmem:[%s2858 + $0x12c] sm:$0xff]
        %v2910 = vld [vmem:[%s2858 + $0x134] sm:$0xf]
        %v2911 = vld [vmem:[%s2858 + $0x138] sm:$0xff]
        %v2912 = vld [vmem:[%s2858 + $0x140] sm:$0xf]
        %v2913 = vld [vmem:[%s2858 + $0x144] sm:$0xff]
        %v2914 = vld [vmem:[%s2858 + $0x14c] sm:$0xf]
        %v2915 = vld [vmem:[%s2858 + $0x150] sm:$0xff]
        %v2916 = vld [vmem:[%s2858 + $0x158] sm:$0xf]
        %v2917 = vld [vmem:[%s2858 + $0x15c] sm:$0xff]
        %v2918 = vld [vmem:[%s2858 + $0x164] sm:$0xf]
        %v2919 = vld [vmem:[%s2858 + $0x168] sm:$0xff]
        %v2920 = vld [vmem:[%s2858 + $0x170] sm:$0xf]
        %v2921 = vld [vmem:[%s2858 + $0x174] sm:$0xff]
        %v2922 = vld [vmem:[%s2858 + $0x17c] sm:$0xf]
        %v2923 = vld [vmem:[%s2858 + $0x180] sm:$0xff]
        %v2924 = vld [vmem:[%s2858 + $0x188] sm:$0xf]
        %v2925 = vld [vmem:[%s2858 + $0x18c] sm:$0xff]
        %v2926 = vld [vmem:[%s2858 + $0x194] sm:$0xf]
        %v2927 = vld [vmem:[%s2858 + $0x198] sm:$0xff]
        %v2928 = vld [vmem:[%s2858 + $0x1a0] sm:$0xf]
        %v2929 = vld [vmem:[%s2858 + $0x1a4] sm:$0xff]
        %v2930 = vld [vmem:[%s2858 + $0x1ac] sm:$0xf]
        %v2931 = vld [vmem:[%s2858 + $0x1b0] sm:$0xff]
        %v2932 = vld [vmem:[%s2858 + $0x1b8] sm:$0xf]
        %v2933 = vld [vmem:[%s2858 + $0x1bc] sm:$0xff]
        %v2934 = vld [vmem:[%s2858 + $0x1c4] sm:$0xf]
        %v2935 = vld [vmem:[%s2858 + $0x1c8] sm:$0xff]
        %v2936 = vld [vmem:[%s2858 + $0x1d0] sm:$0xf]
        %v2937 = vld [vmem:[%s2858 + $0x1d4] sm:$0xff]
        %v2938 = vld [vmem:[%s2858 + $0x1dc] sm:$0xf]
        %v2939 = vld [vmem:[%s2858 + $0x1e0] sm:$0xff]
        %v2940 = vld [vmem:[%s2858 + $0x1e8] sm:$0xf]
        %v2941 = vld [vmem:[%s2858 + $0x1ec] sm:$0xff]
        %v2942 = vld [vmem:[%s2858 + $0x1f4] sm:$0xf]
        %v2943 = vld [vmem:[%s2858 + $0x1f8] sm:$0xff]
        %v2944 = vld [vmem:[%s2858 + $0x200] sm:$0xf]
        %v2945 = vld [vmem:[%s2858 + $0x204] sm:$0xff]
        %v2946 = vld [vmem:[%s2858 + $0x20c] sm:$0xf]
        %v2947 = vld [vmem:[%s2858 + $0x210] sm:$0xff]
        %v2948 = vld [vmem:[%s2858 + $0x218] sm:$0xf]
        %v2949 = vld [vmem:[%s2858 + $0x21c] sm:$0xff]
        %v2950 = vld [vmem:[%s2858 + $0x224] sm:$0xf]
        %v2951 = vld [vmem:[%s2858 + $0x228] sm:$0xff]
        %v2952 = vld [vmem:[%s2858 + $0x230] sm:$0xf]
        %v2953 = vld [vmem:[%s2858 + $0x234] sm:$0xff]
        %v2954 = vld [vmem:[%s2858 + $0x23c] sm:$0xf]
        %v2955 = vld [vmem:[%s2858 + $0x240] sm:$0xff]
        %v2956 = vld [vmem:[%s2858 + $0x248] sm:$0xf]
        %v2957 = vld [vmem:[%s2858 + $0x24c] sm:$0xff]
        %v2958 = vld [vmem:[%s2858 + $0x254] sm:$0xf]
        %v2959 = vld [vmem:[%s2858 + $0x258] sm:$0xff]
        %v2960 = vld [vmem:[%s2858 + $0x260] sm:$0xf]
        %v2961 = vld [vmem:[%s2858 + $0x264] sm:$0xff]
        %v2962 = vld [vmem:[%s2858 + $0x26c] sm:$0xf]
        %v2963 = vld [vmem:[%s2858 + $0x270] sm:$0xff]
        %v2964 = vld [vmem:[%s2858 + $0x278] sm:$0xf]
        %v2965 = vld [vmem:[%s2858 + $0x27c] sm:$0xff]
        %v2966 = vld [vmem:[%s2858 + $0x284] sm:$0xf]
        %v2967 = vld [vmem:[%s2858 + $0x288] sm:$0xff]
        %v2968 = vld [vmem:[%s2858 + $0x290] sm:$0xf]
        %v2969 = vld [vmem:[%s2858 + $0x294] sm:$0xff]
        %v2970 = vld [vmem:[%s2858 + $0x29c] sm:$0xf]
        %v2971 = vld [vmem:[%s2858 + $0x2a0] sm:$0xff]
        %v2972 = vld [vmem:[%s2858 + $0x2a8] sm:$0xf]
        %v2973 = vld [vmem:[%s2858 + $0x2ac] sm:$0xff]
        %v2974 = vld [vmem:[%s2858 + $0x2b4] sm:$0xf]
        %v2975 = vld [vmem:[%s2858 + $0x2b8] sm:$0xff]
        %v2976 = vld [vmem:[%s2858 + $0x2c0] sm:$0xf]
        %v2977 = vld [vmem:[%s2858 + $0x2c4] sm:$0xff]
        %v2978 = vld [vmem:[%s2858 + $0x2cc] sm:$0xf]
        %v2979 = vld [vmem:[%s2858 + $0x2d0] sm:$0xff]
        %v2980 = vld [vmem:[%s2858 + $0x2d8] sm:$0xf]
        %v2981 = vld [vmem:[%s2858 + $0x2dc] sm:$0xff]
        %v2982 = vld [vmem:[%s2858 + $0x2e4] sm:$0xf]
        %v2983 = vld [vmem:[%s2858 + $0x2e8] sm:$0xff]
        %v2984 = vld [vmem:[%s2858 + $0x2f0] sm:$0xf]
        %v2985 = vld [vmem:[%s2858 + $0x2f4] sm:$0xff]
        %v2986 = vld [vmem:[%s2858 + $0x2fc] sm:$0xf]
        %v2987 = vld [vmem:[%s2858 + $0x300] sm:$0xff]
        %v2988 = vld [vmem:[%s2858 + $0x308] sm:$0xf]
        %v2989 = vld [vmem:[%s2858 + $0x30c] sm:$0xff]
        %v2990 = vld [vmem:[%s2858 + $0x314] sm:$0xf]
        %v2991 = vld [vmem:[%s2858 + $0x318] sm:$0xff]
        %v2992 = vld [vmem:[%s2858 + $0x320] sm:$0xf]
        %v2993 = vld [vmem:[%s2858 + $0x324] sm:$0xff]
        %v2994 = vld [vmem:[%s2858 + $0x32c] sm:$0xf]
        %v2995 = vld [vmem:[%s2858 + $0x330] sm:$0xff]
        %v2996 = vld [vmem:[%s2858 + $0x338] sm:$0xf]
        %v2997 = vld [vmem:[%s2858 + $0x33c] sm:$0xff]
        %v2998 = vld [vmem:[%s2858 + $0x344] sm:$0xf]
        %v2999 = vld [vmem:[%s2858 + $0x348] sm:$0xff]
        %v3000 = vld [vmem:[%s2858 + $0x350] sm:$0xf]
        %v3001 = vld [vmem:[%s2858 + $0x354] sm:$0xff]
        %v3002 = vld [vmem:[%s2858 + $0x35c] sm:$0xf]
        %v3003 = vld [vmem:[%s2858 + $0x360] sm:$0xff]
        %v3004 = vld [vmem:[%s2858 + $0x368] sm:$0xf]
        %v3005 = vld [vmem:[%s2858 + $0x36c] sm:$0xff]
        %v3006 = vld [vmem:[%s2858 + $0x374] sm:$0xf]
        %v3007 = vld [vmem:[%s2858 + $0x378] sm:$0xff]
        %v3008 = vld [vmem:[%s2858 + $0x380] sm:$0xf]
        %v3009 = vld [vmem:[%s2858 + $0x384] sm:$0xff]
        %v3010 = vld [vmem:[%s2858 + $0x38c] sm:$0xf]
        %v3011 = vld [vmem:[%s2858 + $0x390] sm:$0xff]
        %v3012 = vld [vmem:[%s2858 + $0x398] sm:$0xf]
        %v3013 = vld [vmem:[%s2858 + $0x39c] sm:$0xff]
        %v3014 = vld [vmem:[%s2858 + $0x3a4] sm:$0xf]
        %v3015 = vld [vmem:[%s2858 + $0x3a8] sm:$0xff]
        %v3016 = vld [vmem:[%s2858 + $0x3b0] sm:$0xf]
        %v3017 = vld [vmem:[%s2858 + $0x3b4] sm:$0xff]
        %v3018 = vld [vmem:[%s2858 + $0x3bc] sm:$0xf]
        %v3019 = vld [vmem:[%s2858 + $0x3c0] sm:$0xff]
        %v3020 = vld [vmem:[%s2858 + $0x3c8] sm:$0xf]
        %v3021 = vld [vmem:[%s2858 + $0x3cc] sm:$0xff]
        %v3022 = vld [vmem:[%s2858 + $0x3d4] sm:$0xf]
        %v3023 = vld [vmem:[%s2858 + $0x3d8] sm:$0xff]
        %v3024 = vld [vmem:[%s2858 + $0x3e0] sm:$0xf]
        %v3025 = vld [vmem:[%s2858 + $0x3e4] sm:$0xff]
        %v3026 = vld [vmem:[%s2858 + $0x3ec] sm:$0xf]
        %v3027 = vld [vmem:[%s2858 + $0x3f0] sm:$0xff]
        %v3028 = vld [vmem:[%s2858 + $0x3f8] sm:$0xf]
        %v3029 = vld [vmem:[%s2858 + $0x3fc] sm:$0xff]
        %v3030 = vld [vmem:[%s2858 + $0x404] sm:$0xf]
        %v3031 = vld [vmem:[%s2858 + $0x408] sm:$0xff]
        %v3032 = vld [vmem:[%s2858 + $0x410] sm:$0xf]
        %v3033 = vld [vmem:[%s2858 + $0x414] sm:$0xff]
        %v3034 = vld [vmem:[%s2858 + $0x41c] sm:$0xf]
        %v3035 = vld [vmem:[%s2858 + $0x420] sm:$0xff]
        %v3036 = vld [vmem:[%s2858 + $0x428] sm:$0xf]
        %v3037 = vld [vmem:[%s2858 + $0x42c] sm:$0xff]
        %v3038 = vld [vmem:[%s2858 + $0x434] sm:$0xf]
        %v3039 = vld [vmem:[%s2858 + $0x438] sm:$0xff]
        %v3040 = vld [vmem:[%s2858 + $0x440] sm:$0xf]
        %v3041 = vld [vmem:[%s2858 + $0x444] sm:$0xff]
        %v3042 = vld [vmem:[%s2858 + $0x44c] sm:$0xf]
        %v3043 = vld [vmem:[%s2858 + $0x450] sm:$0xff]
        %v3044 = vld [vmem:[%s2858 + $0x458] sm:$0xf]
        %v3045 = vld [vmem:[%s2858 + $0x45c] sm:$0xff]
        %v3046 = vld [vmem:[%s2858 + $0x464] sm:$0xf]
        %v3047 = vld [vmem:[%s2858 + $0x468] sm:$0xff]
        %v3048 = vld [vmem:[%s2858 + $0x470] sm:$0xf]
        %v3049 = vld [vmem:[%s2858 + $0x474] sm:$0xff]
        %v3050 = vld [vmem:[%s2858 + $0x47c] sm:$0xf]
        %v3243 = vunpack.c.l.b16 %v2859
        %v3244 = vunpack.c.h.b16 %v2859
        %v3245 = vunpack.c.l.b16 %v2860
        %v3246 = vunpack.c.l.b16 %v2861
        %v3247 = vunpack.c.h.b16 %v2861
        %v3248 = vunpack.c.l.b16 %v2862
        %v3249 = vunpack.c.l.b16 %v2863
        %v3250 = vunpack.c.h.b16 %v2863
        %v3251 = vunpack.c.l.b16 %v2864
        %v3252 = vunpack.c.l.b16 %v2865
        %v3253 = vunpack.c.h.b16 %v2865
        %v3254 = vunpack.c.l.b16 %v2866
        %v3255 = vunpack.c.l.b16 %v2867
        %v3256 = vunpack.c.h.b16 %v2867
        %v3257 = vunpack.c.l.b16 %v2868
        %v3258 = vunpack.c.l.b16 %v2869
        %v3259 = vunpack.c.h.b16 %v2869
        %v3260 = vunpack.c.l.b16 %v2870
        %v3261 = vunpack.c.l.b16 %v2871
        %v3262 = vunpack.c.h.b16 %v2871
        %v3263 = vunpack.c.l.b16 %v2872
        %v3264 = vunpack.c.l.b16 %v2873
        %v3265 = vunpack.c.h.b16 %v2873
        %v3266 = vunpack.c.l.b16 %v2874
        %v3267 = vunpack.c.l.b16 %v2875
        %v3268 = vunpack.c.h.b16 %v2875
        %v3269 = vunpack.c.l.b16 %v2876
        %v3270 = vunpack.c.l.b16 %v2877
        %v3271 = vunpack.c.h.b16 %v2877
        %v3272 = vunpack.c.l.b16 %v2878
        %v3273 = vunpack.c.l.b16 %v2879
        %v3274 = vunpack.c.h.b16 %v2879
        %v3275 = vunpack.c.l.b16 %v2880
        %v3276 = vunpack.c.l.b16 %v2881
        %v3277 = vunpack.c.h.b16 %v2881
        %v3278 = vunpack.c.l.b16 %v2882
        %v3279 = vunpack.c.l.b16 %v2883
        %v3280 = vunpack.c.h.b16 %v2883
        %v3281 = vunpack.c.l.b16 %v2884
        %v3282 = vunpack.c.l.b16 %v2885
        %v3283 = vunpack.c.h.b16 %v2885
        %v3284 = vunpack.c.l.b16 %v2886
        %v3285 = vunpack.c.l.b16 %v2887
        %v3286 = vunpack.c.h.b16 %v2887
        %v3287 = vunpack.c.l.b16 %v2888
        %v3288 = vunpack.c.l.b16 %v2889
        %v3289 = vunpack.c.h.b16 %v2889
        %v3290 = vunpack.c.l.b16 %v2890
        %v3291 = vunpack.c.l.b16 %v2891
        %v3292 = vunpack.c.h.b16 %v2891
        %v3293 = vunpack.c.l.b16 %v2892
        %v3294 = vunpack.c.l.b16 %v2893
        %v3295 = vunpack.c.h.b16 %v2893
        %v3296 = vunpack.c.l.b16 %v2894
        %v3297 = vunpack.c.l.b16 %v2895
        %v3298 = vunpack.c.h.b16 %v2895
        %v3299 = vunpack.c.l.b16 %v2896
        %v3300 = vunpack.c.l.b16 %v2897
        %v3301 = vunpack.c.h.b16 %v2897
        %v3302 = vunpack.c.l.b16 %v2898
        %v3303 = vunpack.c.l.b16 %v2899
        %v3304 = vunpack.c.h.b16 %v2899
        %v3305 = vunpack.c.l.b16 %v2900
        %v3306 = vunpack.c.l.b16 %v2901
        %v3307 = vunpack.c.h.b16 %v2901
        %v3308 = vunpack.c.l.b16 %v2902
        %v3309 = vunpack.c.l.b16 %v2903
        %v3310 = vunpack.c.h.b16 %v2903
        %v3311 = vunpack.c.l.b16 %v2904
        %v3312 = vunpack.c.l.b16 %v2905
        %v3313 = vunpack.c.h.b16 %v2905
        %v3314 = vunpack.c.l.b16 %v2906
        %v3315 = vunpack.c.l.b16 %v2907
        %v3316 = vunpack.c.h.b16 %v2907
        %v3317 = vunpack.c.l.b16 %v2908
        %v3318 = vunpack.c.l.b16 %v2909
        %v3319 = vunpack.c.h.b16 %v2909
        %v3320 = vunpack.c.l.b16 %v2910
        %v3321 = vunpack.c.l.b16 %v2911
        %v3322 = vunpack.c.h.b16 %v2911
        %v3323 = vunpack.c.l.b16 %v2912
        %v3324 = vunpack.c.l.b16 %v2913
        %v3325 = vunpack.c.h.b16 %v2913
        %v3326 = vunpack.c.l.b16 %v2914
        %v3327 = vunpack.c.l.b16 %v2915
        %v3328 = vunpack.c.h.b16 %v2915
        %v3329 = vunpack.c.l.b16 %v2916
        %v3330 = vunpack.c.l.b16 %v2917
        %v3331 = vunpack.c.h.b16 %v2917
        %v3332 = vunpack.c.l.b16 %v2918
        %v3333 = vunpack.c.l.b16 %v2919
        %v3334 = vunpack.c.h.b16 %v2919
        %v3335 = vunpack.c.l.b16 %v2920
        %v3336 = vunpack.c.l.b16 %v2921
        %v3337 = vunpack.c.h.b16 %v2921
        %v3338 = vunpack.c.l.b16 %v2922
        %v3339 = vunpack.c.l.b16 %v2923
        %v3340 = vunpack.c.h.b16 %v2923
        %v3341 = vunpack.c.l.b16 %v2924
        %v3342 = vunpack.c.l.b16 %v2925
        %v3343 = vunpack.c.h.b16 %v2925
        %v3344 = vunpack.c.l.b16 %v2926
        %v3345 = vunpack.c.l.b16 %v2927
        %v3346 = vunpack.c.h.b16 %v2927
        %v3347 = vunpack.c.l.b16 %v2928
        %v3348 = vunpack.c.l.b16 %v2929
        %v3349 = vunpack.c.h.b16 %v2929
        %v3350 = vunpack.c.l.b16 %v2930
        %v3351 = vunpack.c.l.b16 %v2931
        %v3352 = vunpack.c.h.b16 %v2931
        %v3353 = vunpack.c.l.b16 %v2932
        %v3354 = vunpack.c.l.b16 %v2933
        %v3355 = vunpack.c.h.b16 %v2933
        %v3356 = vunpack.c.l.b16 %v2934
        %v3357 = vunpack.c.l.b16 %v2935
        %v3358 = vunpack.c.h.b16 %v2935
        %v3359 = vunpack.c.l.b16 %v2936
        %v3360 = vunpack.c.l.b16 %v2937
        %v3361 = vunpack.c.h.b16 %v2937
        %v3362 = vunpack.c.l.b16 %v2938
        %v3363 = vunpack.c.l.b16 %v2939
        %v3364 = vunpack.c.h.b16 %v2939
        %v3365 = vunpack.c.l.b16 %v2940
        %v3366 = vunpack.c.l.b16 %v2941
        %v3367 = vunpack.c.h.b16 %v2941
        %v3368 = vunpack.c.l.b16 %v2942
        %v3369 = vunpack.c.l.b16 %v2943
        %v3370 = vunpack.c.h.b16 %v2943
        %v3371 = vunpack.c.l.b16 %v2944
        %v3372 = vunpack.c.l.b16 %v2945
        %v3373 = vunpack.c.h.b16 %v2945
        %v3374 = vunpack.c.l.b16 %v2946
        %v3375 = vunpack.c.l.b16 %v2947
        %v3376 = vunpack.c.h.b16 %v2947
        %v3377 = vunpack.c.l.b16 %v2948
        %v3378 = vunpack.c.l.b16 %v2949
        %v3379 = vunpack.c.h.b16 %v2949
        %v3380 = vunpack.c.l.b16 %v2950
        %v3381 = vunpack.c.l.b16 %v2951
        %v3382 = vunpack.c.h.b16 %v2951
        %v3383 = vunpack.c.l.b16 %v2952
        %v3384 = vunpack.c.l.b16 %v2953
        %v3385 = vunpack.c.h.b16 %v2953
        %v3386 = vunpack.c.l.b16 %v2954
        %v3387 = vunpack.c.l.b16 %v2955
        %v3388 = vunpack.c.h.b16 %v2955
        %v3389 = vunpack.c.l.b16 %v2956
        %v3390 = vunpack.c.l.b16 %v2957
        %v3391 = vunpack.c.h.b16 %v2957
        %v3392 = vunpack.c.l.b16 %v2958
        %v3393 = vunpack.c.l.b16 %v2959
        %v3394 = vunpack.c.h.b16 %v2959
        %v3395 = vunpack.c.l.b16 %v2960
        %v3396 = vunpack.c.l.b16 %v2961
        %v3397 = vunpack.c.h.b16 %v2961
        %v3398 = vunpack.c.l.b16 %v2962
        %v3399 = vunpack.c.l.b16 %v2963
        %v3400 = vunpack.c.h.b16 %v2963
        %v3401 = vunpack.c.l.b16 %v2964
        %v3402 = vunpack.c.l.b16 %v2965
        %v3403 = vunpack.c.h.b16 %v2965
        %v3404 = vunpack.c.l.b16 %v2966
        %v3405 = vunpack.c.l.b16 %v2967
        %v3406 = vunpack.c.h.b16 %v2967
        %v3407 = vunpack.c.l.b16 %v2968
        %v3408 = vunpack.c.l.b16 %v2969
        %v3409 = vunpack.c.h.b16 %v2969
        %v3410 = vunpack.c.l.b16 %v2970
        %v3411 = vunpack.c.l.b16 %v2971
        %v3412 = vunpack.c.h.b16 %v2971
        %v3413 = vunpack.c.l.b16 %v2972
        %v3414 = vunpack.c.l.b16 %v2973
        %v3415 = vunpack.c.h.b16 %v2973
        %v3416 = vunpack.c.l.b16 %v2974
        %v3417 = vunpack.c.l.b16 %v2975
        %v3418 = vunpack.c.h.b16 %v2975
        %v3419 = vunpack.c.l.b16 %v2976
        %v3420 = vunpack.c.l.b16 %v2977
        %v3421 = vunpack.c.h.b16 %v2977
        %v3422 = vunpack.c.l.b16 %v2978
        %v3423 = vunpack.c.l.b16 %v2979
        %v3424 = vunpack.c.h.b16 %v2979
        %v3425 = vunpack.c.l.b16 %v2980
        %v3426 = vunpack.c.l.b16 %v2981
        %v3427 = vunpack.c.h.b16 %v2981
        %v3428 = vunpack.c.l.b16 %v2982
        %v3429 = vunpack.c.l.b16 %v2983
        %v3430 = vunpack.c.h.b16 %v2983
        %v3431 = vunpack.c.l.b16 %v2984
        %v3432 = vunpack.c.l.b16 %v2985
        %v3433 = vunpack.c.h.b16 %v2985
        %v3434 = vunpack.c.l.b16 %v2986
        %v3435 = vunpack.c.l.b16 %v2987
        %v3436 = vunpack.c.h.b16 %v2987
        %v3437 = vunpack.c.l.b16 %v2988
        %v3438 = vunpack.c.l.b16 %v2989
        %v3439 = vunpack.c.h.b16 %v2989
        %v3440 = vunpack.c.l.b16 %v2990
        %v3441 = vunpack.c.l.b16 %v2991
        %v3442 = vunpack.c.h.b16 %v2991
        %v3443 = vunpack.c.l.b16 %v2992
        %v3444 = vunpack.c.l.b16 %v2993
        %v3445 = vunpack.c.h.b16 %v2993
        %v3446 = vunpack.c.l.b16 %v2994
        %v3447 = vunpack.c.l.b16 %v2995
        %v3448 = vunpack.c.h.b16 %v2995
        %v3449 = vunpack.c.l.b16 %v2996
        %v3450 = vunpack.c.l.b16 %v2997
        %v3451 = vunpack.c.h.b16 %v2997
        %v3452 = vunpack.c.l.b16 %v2998
        %v3453 = vunpack.c.l.b16 %v2999
        %v3454 = vunpack.c.h.b16 %v2999
        %v3455 = vunpack.c.l.b16 %v3000
        %v3456 = vunpack.c.l.b16 %v3001
        %v3457 = vunpack.c.h.b16 %v3001
        %v3458 = vunpack.c.l.b16 %v3002
        %v3459 = vunpack.c.l.b16 %v3003
        %v3460 = vunpack.c.h.b16 %v3003
        %v3461 = vunpack.c.l.b16 %v3004
        %v3462 = vunpack.c.l.b16 %v3005
        %v3463 = vunpack.c.h.b16 %v3005
        %v3464 = vunpack.c.l.b16 %v3006
        %v3465 = vunpack.c.l.b16 %v3007
        %v3466 = vunpack.c.h.b16 %v3007
        %v3467 = vunpack.c.l.b16 %v3008
        %v3468 = vunpack.c.l.b16 %v3009
        %v3469 = vunpack.c.h.b16 %v3009
        %v3470 = vunpack.c.l.b16 %v3010
        %v3471 = vunpack.c.l.b16 %v3011
        %v3472 = vunpack.c.h.b16 %v3011
        %v3473 = vunpack.c.l.b16 %v3012
        %v3474 = vunpack.c.l.b16 %v3013
        %v3475 = vunpack.c.h.b16 %v3013
        %v3476 = vunpack.c.l.b16 %v3014
        %v3477 = vunpack.c.l.b16 %v3015
        %v3478 = vunpack.c.h.b16 %v3015
        %v3479 = vunpack.c.l.b16 %v3016
        %v3480 = vunpack.c.l.b16 %v3017
        %v3481 = vunpack.c.h.b16 %v3017
        %v3482 = vunpack.c.l.b16 %v3018
        %v3483 = vunpack.c.l.b16 %v3019
        %v3484 = vunpack.c.h.b16 %v3019
        %v3485 = vunpack.c.l.b16 %v3020
        %v3486 = vunpack.c.l.b16 %v3021
        %v3487 = vunpack.c.h.b16 %v3021
        %v3488 = vunpack.c.l.b16 %v3022
        %v3489 = vunpack.c.l.b16 %v3023
        %v3490 = vunpack.c.h.b16 %v3023
        %v3491 = vunpack.c.l.b16 %v3024
        %v3492 = vunpack.c.l.b16 %v3025
        %v3493 = vunpack.c.h.b16 %v3025
        %v3494 = vunpack.c.l.b16 %v3026
        %v3495 = vunpack.c.l.b16 %v3027
        %v3496 = vunpack.c.h.b16 %v3027
        %v3497 = vunpack.c.l.b16 %v3028
        %v3498 = vunpack.c.l.b16 %v3029
        %v3499 = vunpack.c.h.b16 %v3029
        %v3500 = vunpack.c.l.b16 %v3030
        %v3501 = vunpack.c.l.b16 %v3031
        %v3502 = vunpack.c.h.b16 %v3031
        %v3503 = vunpack.c.l.b16 %v3032
        %v3504 = vunpack.c.l.b16 %v3033
        %v3505 = vunpack.c.h.b16 %v3033
        %v3506 = vunpack.c.l.b16 %v3034
        %v3507 = vunpack.c.l.b16 %v3035
        %v3508 = vunpack.c.h.b16 %v3035
        %v3509 = vunpack.c.l.b16 %v3036
        %v3510 = vunpack.c.l.b16 %v3037
        %v3511 = vunpack.c.h.b16 %v3037
        %v3512 = vunpack.c.l.b16 %v3038
        %v3513 = vunpack.c.l.b16 %v3039
        %v3514 = vunpack.c.h.b16 %v3039
        %v3515 = vunpack.c.l.b16 %v3040
        %v3516 = vunpack.c.l.b16 %v3041
        %v3517 = vunpack.c.h.b16 %v3041
        %v3518 = vunpack.c.l.b16 %v3042
        %v3519 = vunpack.c.l.b16 %v3043
        %v3520 = vunpack.c.h.b16 %v3043
        %v3521 = vunpack.c.l.b16 %v3044
        %v3522 = vunpack.c.l.b16 %v3045
        %v3523 = vunpack.c.h.b16 %v3045
        %v3524 = vunpack.c.l.b16 %v3046
        %v3525 = vunpack.c.l.b16 %v3047
        %v3526 = vunpack.c.h.b16 %v3047
        %v3527 = vunpack.c.l.b16 %v3048
        %v3528 = vunpack.c.l.b16 %v3049
        %v3529 = vunpack.c.h.b16 %v3049
        %v3530 = vunpack.c.l.b16 %v3050
        %v3531 = vpack.c.b16 %v3246, %v3243
        %v3532 = vpack.c.b16 %v3247, %v3244
        %v3533 = vpack.c.b16 %v3248, %v3245
        %v3534 = vpack.c.b16 %v3252, %v3249
        %v3535 = vpack.c.b16 %v3253, %v3250
        %v3536 = vpack.c.b16 %v3254, %v3251
        %v3537 = vpack.c.b16 %v3258, %v3255
        %v3538 = vpack.c.b16 %v3259, %v3256
        %v3539 = vpack.c.b16 %v3260, %v3257
        %v3540 = vpack.c.b16 %v3264, %v3261
        %v3541 = vpack.c.b16 %v3265, %v3262
        %v3542 = vpack.c.b16 %v3266, %v3263
        %v3543 = vpack.c.b16 %v3270, %v3267
        %v3544 = vpack.c.b16 %v3271, %v3268
        %v3545 = vpack.c.b16 %v3272, %v3269
        %v3546 = vpack.c.b16 %v3276, %v3273
        %v3547 = vpack.c.b16 %v3277, %v3274
        %v3548 = vpack.c.b16 %v3278, %v3275
        %v3549 = vpack.c.b16 %v3282, %v3279
        %v3550 = vpack.c.b16 %v3283, %v3280
        %v3551 = vpack.c.b16 %v3284, %v3281
        %v3552 = vpack.c.b16 %v3288, %v3285
        %v3553 = vpack.c.b16 %v3289, %v3286
        %v3554 = vpack.c.b16 %v3290, %v3287
        %v3555 = vpack.c.b16 %v3294, %v3291
        %v3556 = vpack.c.b16 %v3295, %v3292
        %v3557 = vpack.c.b16 %v3296, %v3293
        %v3558 = vpack.c.b16 %v3300, %v3297
        %v3559 = vpack.c.b16 %v3301, %v3298
        %v3560 = vpack.c.b16 %v3302, %v3299
        %v3561 = vpack.c.b16 %v3306, %v3303
        %v3562 = vpack.c.b16 %v3307, %v3304
        %v3563 = vpack.c.b16 %v3308, %v3305
        %v3564 = vpack.c.b16 %v3312, %v3309
        %v3565 = vpack.c.b16 %v3313, %v3310
        %v3566 = vpack.c.b16 %v3314, %v3311
        %v3567 = vpack.c.b16 %v3318, %v3315
        %v3568 = vpack.c.b16 %v3319, %v3316
        %v3569 = vpack.c.b16 %v3320, %v3317
        %v3570 = vpack.c.b16 %v3324, %v3321
        %v3571 = vpack.c.b16 %v3325, %v3322
        %v3572 = vpack.c.b16 %v3326, %v3323
        %v3573 = vpack.c.b16 %v3330, %v3327
        %v3574 = vpack.c.b16 %v3331, %v3328
        %v3575 = vpack.c.b16 %v3332, %v3329
        %v3576 = vpack.c.b16 %v3336, %v3333
        %v3577 = vpack.c.b16 %v3337, %v3334
        %v3578 = vpack.c.b16 %v3338, %v3335
        %v3579 = vpack.c.b16 %v3342, %v3339
        %v3580 = vpack.c.b16 %v3343, %v3340
        %v3581 = vpack.c.b16 %v3344, %v3341
        %v3582 = vpack.c.b16 %v3348, %v3345
        %v3583 = vpack.c.b16 %v3349, %v3346
        %v3584 = vpack.c.b16 %v3350, %v3347
        %v3585 = vpack.c.b16 %v3354, %v3351
        %v3586 = vpack.c.b16 %v3355, %v3352
        %v3587 = vpack.c.b16 %v3356, %v3353
        %v3588 = vpack.c.b16 %v3360, %v3357
        %v3589 = vpack.c.b16 %v3361, %v3358
        %v3590 = vpack.c.b16 %v3362, %v3359
        %v3591 = vpack.c.b16 %v3366, %v3363
        %v3592 = vpack.c.b16 %v3367, %v3364
        %v3593 = vpack.c.b16 %v3368, %v3365
        %v3594 = vpack.c.b16 %v3372, %v3369
        %v3595 = vpack.c.b16 %v3373, %v3370
        %v3596 = vpack.c.b16 %v3374, %v3371
        %v3597 = vpack.c.b16 %v3378, %v3375
        %v3598 = vpack.c.b16 %v3379, %v3376
        %v3599 = vpack.c.b16 %v3380, %v3377
        %v3600 = vpack.c.b16 %v3384, %v3381
        %v3601 = vpack.c.b16 %v3385, %v3382
        %v3602 = vpack.c.b16 %v3386, %v3383
        %v3603 = vpack.c.b16 %v3390, %v3387
        %v3604 = vpack.c.b16 %v3391, %v3388
        %v3605 = vpack.c.b16 %v3392, %v3389
        %v3606 = vpack.c.b16 %v3396, %v3393
        %v3607 = vpack.c.b16 %v3397, %v3394
        %v3608 = vpack.c.b16 %v3398, %v3395
        %v3609 = vpack.c.b16 %v3402, %v3399
        %v3610 = vpack.c.b16 %v3403, %v3400
        %v3611 = vpack.c.b16 %v3404, %v3401
        %v3612 = vpack.c.b16 %v3408, %v3405
        %v3613 = vpack.c.b16 %v3409, %v3406
        %v3614 = vpack.c.b16 %v3410, %v3407
        %v3615 = vpack.c.b16 %v3414, %v3411
        %v3616 = vpack.c.b16 %v3415, %v3412
        %v3617 = vpack.c.b16 %v3416, %v3413
        %v3618 = vpack.c.b16 %v3420, %v3417
        %v3619 = vpack.c.b16 %v3421, %v3418
        %v3620 = vpack.c.b16 %v3422, %v3419
        %v3621 = vpack.c.b16 %v3426, %v3423
        %v3622 = vpack.c.b16 %v3427, %v3424
        %v3623 = vpack.c.b16 %v3428, %v3425
        %v3624 = vpack.c.b16 %v3432, %v3429
        %v3625 = vpack.c.b16 %v3433, %v3430
        %v3626 = vpack.c.b16 %v3434, %v3431
        %v3627 = vpack.c.b16 %v3438, %v3435
        %v3628 = vpack.c.b16 %v3439, %v3436
        %v3629 = vpack.c.b16 %v3440, %v3437
        %v3630 = vpack.c.b16 %v3444, %v3441
        %v3631 = vpack.c.b16 %v3445, %v3442
        %v3632 = vpack.c.b16 %v3446, %v3443
        %v3633 = vpack.c.b16 %v3450, %v3447
        %v3634 = vpack.c.b16 %v3451, %v3448
        %v3635 = vpack.c.b16 %v3452, %v3449
        %v3636 = vpack.c.b16 %v3456, %v3453
        %v3637 = vpack.c.b16 %v3457, %v3454
        %v3638 = vpack.c.b16 %v3458, %v3455
        %v3639 = vpack.c.b16 %v3462, %v3459
        %v3640 = vpack.c.b16 %v3463, %v3460
        %v3641 = vpack.c.b16 %v3464, %v3461
        %v3642 = vpack.c.b16 %v3468, %v3465
        %v3643 = vpack.c.b16 %v3469, %v3466
        %v3644 = vpack.c.b16 %v3470, %v3467
        %v3645 = vpack.c.b16 %v3474, %v3471
        %v3646 = vpack.c.b16 %v3475, %v3472
        %v3647 = vpack.c.b16 %v3476, %v3473
        %v3648 = vpack.c.b16 %v3480, %v3477
        %v3649 = vpack.c.b16 %v3481, %v3478
        %v3650 = vpack.c.b16 %v3482, %v3479
        %v3651 = vpack.c.b16 %v3486, %v3483
        %v3652 = vpack.c.b16 %v3487, %v3484
        %v3653 = vpack.c.b16 %v3488, %v3485
        %v3654 = vpack.c.b16 %v3492, %v3489
        %v3655 = vpack.c.b16 %v3493, %v3490
        %v3656 = vpack.c.b16 %v3494, %v3491
        %v3657 = vpack.c.b16 %v3498, %v3495
        %v3658 = vpack.c.b16 %v3499, %v3496
        %v3659 = vpack.c.b16 %v3500, %v3497
        %v3660 = vpack.c.b16 %v3504, %v3501
        %v3661 = vpack.c.b16 %v3505, %v3502
        %v3662 = vpack.c.b16 %v3506, %v3503
        %v3663 = vpack.c.b16 %v3510, %v3507
        %v3664 = vpack.c.b16 %v3511, %v3508
        %v3665 = vpack.c.b16 %v3512, %v3509
        %v3666 = vpack.c.b16 %v3516, %v3513
        %v3667 = vpack.c.b16 %v3517, %v3514
        %v3668 = vpack.c.b16 %v3518, %v3515
        %v3669 = vpack.c.b16 %v3522, %v3519
        %v3670 = vpack.c.b16 %v3523, %v3520
        %v3671 = vpack.c.b16 %v3524, %v3521
        %v3672 = vpack.c.b16 %v3528, %v3525
        %v3673 = vpack.c.b16 %v3529, %v3526
        %v3674 = vpack.c.b16 %v3530, %v3527
        %3819 = vmatprep.subr.bf16.mxu0 %v3532
        %3820 = vmatpush1.bf16.msra.mxu0 %v3531
        %3821 = vmatprep.subr.bf16.mxu0 %v3535
        %3822 = vmatpush1.bf16.msra.mxu0 %v3534
        %3823 = vmatprep.subr.bf16.mxu0 %v3538
        %3824 = vmatpush1.bf16.msra.mxu0 %v3537
        %3825 = vmatprep.subr.bf16.mxu0 %v3541
        %3826 = vmatpush1.bf16.msra.mxu0 %v3540
        %3827 = vmatprep.subr.bf16.mxu0 %v3544
        %3828 = vmatpush1.bf16.msra.mxu0 %v3543
        %3829 = vmatprep.subr.bf16.mxu0 %v3547
        %3830 = vmatpush1.bf16.msra.mxu0 %v3546
        %3831 = vmatprep.subr.bf16.mxu0 %v3550
        %3832 = vmatpush1.bf16.msra.mxu0 %v3549
        %3833 = vmatprep.subr.bf16.mxu0 %v3553
        %3834 = vmatpush1.bf16.msra.mxu0 %v3552
        %3835 = vmatprep.subr.bf16.mxu0 %v3556
        %3836 = vmatpush1.bf16.msra.mxu0 %v3555
        %3837 = vmatprep.subr.bf16.mxu0 %v3559
        %3838 = vmatpush1.bf16.msra.mxu0 %v3558
        %3839 = vmatprep.subr.bf16.mxu0 %v3562
        %3840 = vmatpush1.bf16.msra.mxu0 %v3561
        %3841 = vmatprep.subr.bf16.mxu0 %v3565
        %3842 = vmatpush1.bf16.msra.mxu0 %v3564
        %3843 = vmatprep.subr.bf16.mxu0 %v3568
        %3844 = vmatpush1.bf16.msra.mxu0 %v3567
        %3845 = vmatprep.subr.bf16.mxu0 %v3571
        %3846 = vmatpush1.bf16.msra.mxu0 %v3570
        %3847 = vmatprep.subr.bf16.mxu0 %v3574
        %3848 = vmatpush1.bf16.msra.mxu0 %v3573
        %3849 = vmatprep.subr.bf16.mxu0 %v3577
        %3850 = vmatpush1.bf16.msra.mxu0 %v3576
        %3851 = vmatprep.mubr.bf16.mxu0 %v2853
        %3852 = vmatmul.mubr.bf16.gmra.mrb[0].mxu0 %v2852
        %v3853 = vpop.f32.mrb[0].mxu0
        %v3854 = vadd.f32 0.0, %v3853
        %v3855 = vpop.f32.mrb[0].mxu0
        %v3856 = vadd.f32 0.0, %v3855
        %v3857 = vpop.f32.mrb[0].mxu0
        %v3858 = vpop.f32.mrb[0].mxu0
        %3859 = vdwg.mxu0
        %3860 = vmatprep.subr.bf16.mxu0 %v3580
        %3861 = vmatpush1.bf16.msra.mxu0 %v3579
        %3862 = vmatprep.subr.bf16.mxu0 %v3583
        %3863 = vmatpush1.bf16.msra.mxu0 %v3582
        %3864 = vmatprep.subr.bf16.mxu0 %v3586
        %3865 = vmatpush1.bf16.msra.mxu0 %v3585
        %3866 = vmatprep.subr.bf16.mxu0 %v3589
        %3867 = vmatpush1.bf16.msra.mxu0 %v3588
        %3868 = vmatprep.subr.bf16.mxu0 %v3592
        %3869 = vmatpush1.bf16.msra.mxu0 %v3591
        %3870 = vmatprep.subr.bf16.mxu0 %v3595
        %3871 = vmatpush1.bf16.msra.mxu0 %v3594
        %3872 = vmatprep.subr.bf16.mxu0 %v3598
        %3873 = vmatpush1.bf16.msra.mxu0 %v3597
        %3874 = vmatprep.subr.bf16.mxu0 %v3601
        %3875 = vmatpush1.bf16.msra.mxu0 %v3600
        %3876 = vmatprep.subr.bf16.mxu0 %v3604
        %3877 = vmatpush1.bf16.msra.mxu0 %v3603
        %3878 = vmatprep.subr.bf16.mxu0 %v3607
        %3879 = vmatpush1.bf16.msra.mxu0 %v3606
        %3880 = vmatprep.subr.bf16.mxu0 %v3610
        %3881 = vmatpush1.bf16.msra.mxu0 %v3609
        %3882 = vmatprep.subr.bf16.mxu0 %v3613
        %3883 = vmatpush1.bf16.msra.mxu0 %v3612
        %3884 = vmatprep.subr.bf16.mxu0 %v3616
        %3885 = vmatpush1.bf16.msra.mxu0 %v3615
        %3886 = vmatprep.subr.bf16.mxu0 %v3619
        %3887 = vmatpush1.bf16.msra.mxu0 %v3618
        %3888 = vmatprep.subr.bf16.mxu0 %v3622
        %3889 = vmatpush1.bf16.msra.mxu0 %v3621
        %3890 = vmatprep.subr.bf16.mxu0 %v3625
        %3891 = vmatpush1.bf16.msra.mxu0 %v3624
        %3892 = vmatprep.mubr.bf16.mxu0 %v2855
        %3893 = vmatmul.mubr.bf16.gmra.mrb[0].mxu0 %v2854
        %v3894 = vpop.f32.mrb[0].mxu0
        %v3895 = vadd.f32 %v3854, %v3894
        %v3896 = vpop.f32.mrb[0].mxu0
        %v3897 = vadd.f32 %v3856, %v3896
        %v3898 = vpop.f32.mrb[0].mxu0
        %v3899 = vpop.f32.mrb[0].mxu0
        %3900 = vdwg.mxu0
        %3901 = vmatprep.subr.bf16.mxu0 %v3628
        %3902 = vmatpush1.bf16.msra.mxu0 %v3627
        %3903 = vmatprep.subr.bf16.mxu0 %v3631
        %3904 = vmatpush1.bf16.msra.mxu0 %v3630
        %3905 = vmatprep.subr.bf16.mxu0 %v3634
        %3906 = vmatpush1.bf16.msra.mxu0 %v3633
        %3907 = vmatprep.subr.bf16.mxu0 %v3637
        %3908 = vmatpush1.bf16.msra.mxu0 %v3636
        %3909 = vmatprep.subr.bf16.mxu0 %v3640
        %3910 = vmatpush1.bf16.msra.mxu0 %v3639
        %3911 = vmatprep.subr.bf16.mxu0 %v3643
        %3912 = vmatpush1.bf16.msra.mxu0 %v3642
        %3913 = vmatprep.subr.bf16.mxu0 %v3646
        %3914 = vmatpush1.bf16.msra.mxu0 %v3645
        %3915 = vmatprep.subr.bf16.mxu0 %v3649
        %3916 = vmatpush1.bf16.msra.mxu0 %v3648
        %3917 = vmatprep.subr.bf16.mxu0 %v3652
        %3918 = vmatpush1.bf16.msra.mxu0 %v3651
        %3919 = vmatprep.subr.bf16.mxu0 %v3655
        %3920 = vmatpush1.bf16.msra.mxu0 %v3654
        %3921 = vmatprep.subr.bf16.mxu0 %v3658
        %3922 = vmatpush1.bf16.msra.mxu0 %v3657
        %3923 = vmatprep.subr.bf16.mxu0 %v3661
        %3924 = vmatpush1.bf16.msra.mxu0 %v3660
        %3925 = vmatprep.subr.bf16.mxu0 %v3664
        %3926 = vmatpush1.bf16.msra.mxu0 %v3663
        %3927 = vmatprep.subr.bf16.mxu0 %v3667
        %3928 = vmatpush1.bf16.msra.mxu0 %v3666
        %3929 = vmatprep.subr.bf16.mxu0 %v3670
        %3930 = vmatpush1.bf16.msra.mxu0 %v3669
        %3931 = vmatprep.subr.bf16.mxu0 %v3673
        %3932 = vmatpush1.bf16.msra.mxu0 %v3672
        %3933 = vmatprep.mubr.bf16.mxu0 %v2857
        %3934 = vmatmul.mubr.bf16.gmra.mrb[0].mxu0 %v2856
        %v3935 = vpop.f32.mrb[0].mxu0
        %v3936 = vadd.f32 %v3895, %v3935
        %v3937 = vpop.f32.mrb[0].mxu0
        %v3938 = vadd.f32 %v3897, %v3937
        %v3939 = vpop.f32.mrb[0].mxu0
        %v3940 = vpop.f32.mrb[0].mxu0
        %3941 = vdwg.mxu0
        %3942 = vmatprep.subr.bf16.mxu0 0
        %3943 = vmatpush1.bf16.msra.mxu0 %v3533
        %3944 = vmatprep.subr.bf16.mxu0 0
        %3945 = vmatpush1.bf16.msra.mxu0 %v3536
        %3946 = vmatprep.subr.bf16.mxu0 0
        %3947 = vmatpush1.bf16.msra.mxu0 %v3539
        %3948 = vmatprep.subr.bf16.mxu0 0
        %3949 = vmatpush1.bf16.msra.mxu0 %v3542
        %3950 = vmatprep.subr.bf16.mxu0 0
        %3951 = vmatpush1.bf16.msra.mxu0 %v3545
        %3952 = vmatprep.subr.bf16.mxu0 0
        %3953 = vmatpush1.bf16.msra.mxu0 %v3548
        %3954 = vmatprep.subr.bf16.mxu0 0
        %3955 = vmatpush1.bf16.msra.mxu0 %v3551
        %3956 = vmatprep.subr.bf16.mxu0 0
        %3957 = vmatpush1.bf16.msra.mxu0 %v3554
        %3958 = vmatprep.subr.bf16.mxu0 0
        %3959 = vmatpush1.bf16.msra.mxu0 %v3557
        %3960 = vmatprep.subr.bf16.mxu0 0
        %3961 = vmatpush1.bf16.msra.mxu0 %v3560
        %3962 = vmatprep.subr.bf16.mxu0 0
        %3963 = vmatpush1.bf16.msra.mxu0 %v3563
        %3964 = vmatprep.subr.bf16.mxu0 0
        %3965 = vmatpush1.bf16.msra.mxu0 %v3566
        %3966 = vmatprep.subr.bf16.mxu0 0
        %3967 = vmatpush1.bf16.msra.mxu0 %v3569
        %3968 = vmatprep.subr.bf16.mxu0 0
        %3969 = vmatpush1.bf16.msra.mxu0 %v3572
        %3970 = vmatprep.subr.bf16.mxu0 0
        %3971 = vmatpush1.bf16.msra.mxu0 %v3575
        %3972 = vmatprep.subr.bf16.mxu0 0
        %3973 = vmatpush1.bf16.msra.mxu0 %v3578
        %3974 = vmatprep.mubr.bf16.mxu0 %v2853
        %3975 = vmatmul.mubr.bf16.gmra.mrb[0].mxu0 %v2852
        %v3976 = vpop.f32.mrb[0].mxu0
        %v3977 = vadd.f32 0.0, %v3976
        %v3978 = vpop.f32.mrb[0].mxu0
        %v3979 = vpop.f32.mrb[0].mxu0
        %v3980 = vpop.f32.mrb[0].mxu0
        %3981 = vdwg.mxu0
        %3982 = vmatprep.subr.bf16.mxu0 0
        %3983 = vmatpush1.bf16.msra.mxu0 %v3581
        %3984 = vmatprep.subr.bf16.mxu0 0
        %3985 = vmatpush1.bf16.msra.mxu0 %v3584
        %3986 = vmatprep.subr.bf16.mxu0 0
        %3987 = vmatpush1.bf16.msra.mxu0 %v3587
        %3988 = vmatprep.subr.bf16.mxu0 0
        %3989 = vmatpush1.bf16.msra.mxu0 %v3590
        %3990 = vmatprep.subr.bf16.mxu0 0
        %3991 = vmatpush1.bf16.msra.mxu0 %v3593
        %3992 = vmatprep.subr.bf16.mxu0 0
        %3993 = vmatpush1.bf16.msra.mxu0 %v3596
        %3994 = vmatprep.subr.bf16.mxu0 0
        %3995 = vmatpush1.bf16.msra.mxu0 %v3599
        %3996 = vmatprep.subr.bf16.mxu0 0
        %3997 = vmatpush1.bf16.msra.mxu0 %v3602
        %3998 = vmatprep.subr.bf16.mxu0 0
        %3999 = vmatpush1.bf16.msra.mxu0 %v3605
        %4000 = vmatprep.subr.bf16.mxu0 0
        %4001 = vmatpush1.bf16.msra.mxu0 %v3608
        %4002 = vmatprep.subr.bf16.mxu0 0
        %4003 = vmatpush1.bf16.msra.mxu0 %v3611
        %4004 = vmatprep.subr.bf16.mxu0 0
        %4005 = vmatpush1.bf16.msra.mxu0 %v3614
        %4006 = vmatprep.subr.bf16.mxu0 0
        %4007 = vmatpush1.bf16.msra.mxu0 %v3617
        %4008 = vmatprep.subr.bf16.mxu0 0
        %4009 = vmatpush1.bf16.msra.mxu0 %v3620
        %4010 = vmatprep.subr.bf16.mxu0 0
        %4011 = vmatpush1.bf16.msra.mxu0 %v3623
        %4012 = vmatprep.subr.bf16.mxu0 0
        %4013 = vmatpush1.bf16.msra.mxu0 %v3626
        %4014 = vmatprep.mubr.bf16.mxu0 %v2855
        %4015 = vmatmul.mubr.bf16.gmra.mrb[0].mxu0 %v2854
        %v4016 = vpop.f32.mrb[0].mxu0
        %v4017 = vadd.f32 %v3977, %v4016
        %v4018 = vpop.f32.mrb[0].mxu0
        %v4019 = vpop.f32.mrb[0].mxu0
        %v4020 = vpop.f32.mrb[0].mxu0
        %4021 = vdwg.mxu0
        %4022 = vmatprep.subr.bf16.mxu0 0
        %4023 = vmatpush1.bf16.msra.mxu0 %v3629
        %4024 = vmatprep.subr.bf16.mxu0 0
        %4025 = vmatpush1.bf16.msra.mxu0 %v3632
        %4026 = vmatprep.subr.bf16.mxu0 0
        %4027 = vmatpush1.bf16.msra.mxu0 %v3635
        %4028 = vmatprep.subr.bf16.mxu0 0
        %4029 = vmatpush1.bf16.msra.mxu0 %v3638
        %4030 = vmatprep.subr.bf16.mxu0 0
        %4031 = vmatpush1.bf16.msra.mxu0 %v3641
        %4032 = vmatprep.subr.bf16.mxu0 0
        %4033 = vmatpush1.bf16.msra.mxu0 %v3644
        %4034 = vmatprep.subr.bf16.mxu0 0
        %4035 = vmatpush1.bf16.msra.mxu0 %v3647
        %4036 = vmatprep.subr.bf16.mxu0 0
        %4037 = vmatpush1.bf16.msra.mxu0 %v3650
        %4038 = vmatprep.subr.bf16.mxu0 0
        %4039 = vmatpush1.bf16.msra.mxu0 %v3653
        %4040 = vmatprep.subr.bf16.mxu0 0
        %4041 = vmatpush1.bf16.msra.mxu0 %v3656
        %4042 = vmatprep.subr.bf16.mxu0 0
        %4043 = vmatpush1.bf16.msra.mxu0 %v3659
        %4044 = vmatprep.subr.bf16.mxu0 0
        %4045 = vmatpush1.bf16.msra.mxu0 %v3662
        %4046 = vmatprep.subr.bf16.mxu0 0
        %4047 = vmatpush1.bf16.msra.mxu0 %v3665
        %4048 = vmatprep.subr.bf16.mxu0 0
        %4049 = vmatpush1.bf16.msra.mxu0 %v3668
        %4050 = vmatprep.subr.bf16.mxu0 0
        %4051 = vmatpush1.bf16.msra.mxu0 %v3671
        %4052 = vmatprep.subr.bf16.mxu0 0
        %4053 = vmatpush1.bf16.msra.mxu0 %v3674
        %4054 = vmatprep.mubr.bf16.mxu0 %v2857
        %4055 = vmatmul.mubr.bf16.gmra.mrb[0].mxu0 %v2856
        %v4056 = vpop.f32.mrb[0].mxu0
        %v4057 = vadd.f32 %v4017, %v4056
        %v4058 = vpop.f32.mrb[0].mxu0
        %v4059 = vpop.f32.mrb[0].mxu0
        %v4060 = vpop.f32.mrb[0].mxu0
        %4061 = vdwg.mxu0
        %v4062 = vadd.f32 %v2726, %v3936
        %v4063 = vadd.f32 %v2728, %v3938
        %v4064 = vadd.f32 %v2847, %v4057
        %v4065 = vld [vmem:[%s296] sm:$0x7]
        %v4067 = vlaneseq
        %v4068 = vshrl.u32 %v4067, 7
        %v4069 = vsub.s32 0, %v4068
        %v4070 = vrot.slane %v4065, %v4069
        %v4071 = vlaneseq
        %v4072 = vshrl.u32 %v4071, 7
        %v4073 = vsub.s32 1, %v4072
        %v4074 = vrot.slane %v4065, %v4073
        %v4075 = vlaneseq
        %v4076 = vshrl.u32 %v4075, 7
        %v4077 = vsub.s32 2, %v4076
        %v4078 = vrot.slane %v4065, %v4077
        %v4082 = vadd.f32 %v4062, %v4070
        %v4083 = vadd.f32 %v4063, %v4074
        %v4084 = vadd.f32 %v4064, %v4078
        %v4085 = vmax.f32 %v4082, 0.0
        %v4086 = vmax.f32 %v4083, 0.0
        %v4087 = vmax.f32 %v4084, 0.0
        %v4088 = vld [vmem:[#allocation10] sm:$0x7]
        %v4090 = vlaneseq
        %v4091 = vshrl.u32 %v4090, 7
        %v4092 = vsub.s32 0, %v4091
        %v4093 = vrot.slane %v4088, %v4092
        %v4094 = vlaneseq
        %v4095 = vshrl.u32 %v4094, 7
        %v4096 = vsub.s32 1, %v4095
        %v4097 = vrot.slane %v4088, %v4096
        %v4098 = vlaneseq
        %v4099 = vshrl.u32 %v4098, 7
        %v4100 = vsub.s32 2, %v4099
        %v4101 = vrot.slane %v4088, %v4100
        %v4105 = vmul.f32 %v4085, %v4093
        %v4106 = vmul.f32 %v4086, %v4097
        %v4107 = vmul.f32 %v4087, %v4101
        %v4108 = vadd.f32 %v4105, %v4106
        %v4109 = vadd.f32 %v4108, %v4107
        %4110 = vadd.xlane.f32.xlu0 %v4109
        %v4111 = vpop.xlane.xlu0 %4110
        %v4113 = vlaneseq
        %v4114 = vand.u32 %v4113, 127
        %v4115 = vlaneseq
        %v4116 = vshrl.u32 %v4115, 7
        %v4117 = vsub.s32 %v4114, %v4116
        %v4118 = vrot.slane %v4111, %v4117
        %vm4120 = vcmask 57344
        %4121 = vst.msk [vmem:[%s357] sm:$0x1] %vm4120, %v4118
        %s4122 = sand.u32 %s170, 1
        %s4123 = scalar_lea.sflag [#allocation4], %s4122
        %s4124 = sand.u32 %s170, 1
        %s4125 = scalar_lea.vmem [#allocation11], %s4124
        // Predicated region
        $region61: #{tpu_custom_call.1} parent=39 // pred_check
          %p4126 = pneg %p180
        $region62: #{tpu_custom_call.1} parent=39 // pred_check_branch
          %4128 = sbr.rel (%p4126) target = $region64
        $region63: #{tpu_custom_call.1} parent=39 // pred_region
          %s4130 = ssub.s32 16, 16
          %4131 = vsyncadd %s4123, %s4130
          %s4132 = sadd.s32 %s31, %s30
          %s4133 = smul.addr %s4132, 16
          %s4134 = scalar_lea.hbm %s5, %s4133
          %s4136 = sshll.u32 %s4125, 4
          %s4137 = int_to_ptr.vmem [resolvable:$true] %s4136
          %4139 = dma.vmem_to_hbm [thread:$0]  %s4137, 16, %s4134, %s4123
        $region64: #{tpu_custom_call.1} parent=39 // pred_fallthru
          _
      $region40: #{tpu_custom_call.1} parent=5 // pred_fallthru
        _
      %p4140 = scmp.le.s32.totalorder 2, %s21
      // Predicated region
      $region65: #{tpu_custom_call.1} parent=5 // pred_check
        %p4141 = pneg %p4140
      $region66: #{tpu_custom_call.1} parent=5 // pred_check_branch
        %4143 = sbr.rel (%p4141) target = $region68
      $region67: #{tpu_custom_call.1} parent=5 // pred_region
        %s4144 = ssub.s32 %s21, 2
        // Predicated region
        $region69: #{tpu_custom_call.1} parent=67 // pred_check
          %p4145 = pneg %p186
        $region70: #{tpu_custom_call.1} parent=67 // pred_check_branch
          %4147 = sbr.rel (%p4145) target = $region72
        $region71: #{tpu_custom_call.1} parent=67 // pred_region
          %s4148 = sand.u32 %s171, 1
          %s4149 = scalar_lea.sflag [#allocation4], %s4148
          %s4150 = sand.u32 %s171, 1
          %s4151 = scalar_lea.vmem [#allocation11], %s4150
          %4152 = dma.done %s4149, 16
        $region72: #{tpu_custom_call.1} parent=67 // pred_fallthru
          _
      $region68: #{tpu_custom_call.1} parent=5 // pred_fallthru
        _
    $region6: #{tpu_custom_call.1} parent=1 // loop_footer
      %s25 = sadd.s32 1, %s21
    $region7: #{tpu_custom_call.1} parent=1 // loop_footer_branch
      %20 = sbr.rel target = $region3
    $region8: #{tpu_custom_call.1} parent=1 // loop_exit
      _
    %4153 = vsyncpa [#allocation3], 1
    %s4154 = scalar_lea.sflag [#allocation3], 1
    %4155 = vsyncpa %s4154, 1
    %4156 = vsyncpa [#allocation6], 1
    %s4157 = scalar_lea.sflag [#allocation6], 1
    %4158 = vsyncpa %s4157, 1
    %4159 = vsyncpa [#allocation9], 1
    %4160 = vsyncpa [#allocation4], 1
    %s4161 = scalar_lea.sflag [#allocation4], 1
    %4162 = vsyncpa %s4161, 1

</llo_original>
